<compile_context>
chip_gen: v5e
topology: v5e:2x2
jax: 0.10.0
libtpu: 0.0.40
codegen_flags: <defaults>
</compile_context>

<pallas_src>
import functools

import jax
import jax.numpy as jnp
from jax.experimental import pallas as pl
from jax.experimental.pallas import tpu as pltpu


def _round_up(x, m):
    return (x + m - 1) // m * m


# ---------------------------------------------------------------------------
# Pallas kernel: one GRU direction, one chunk of timesteps per grid step.
# grid = (num_directions, num_time_chunks); hidden state carried in VMEM.
# ---------------------------------------------------------------------------
def _gru_chunk_kernel(T, TC, n_chunks,
                      x_ref, wih_ref, whh_ref, bih_ref, bhn_ref,
                      out_ref, gi_ref, h_ref):
    """x_ref  : (TC*Bp, Ein)  raw layer input for this chunk (rows = t*Bp + b)
       wih_ref: (Ein, 3Hp)    W_ih^T (gate columns padded to Hp)
       whh_ref: (Hp, 3Hp)     W_hh^T
       bih_ref: (1, 3Hp)      b_ih with b_hr / b_hz folded in
       bhn_ref: (1, Hp)       b_hn (must stay inside r * (...))
       out_ref: (TC*Bp, Hp)   hidden state at every step of the chunk
       gi_ref : (TC*Bp, 3Hp)  VMEM scratch: fused input projection of the chunk
       h_ref  : (Bp, Hp)      VMEM scratch: carried hidden state"""
    d = pl.program_id(0)
    c = pl.program_id(1)
    Bp, Hp = h_ref.shape

    @pl.when(c == 0)
    def _():
        h_ref[...] = jnp.zeros_like(h_ref)           # torch default h0 = 0

    # Fused input projection for the whole chunk: one large MXU matmul.
    gi_ref[...] = (jnp.dot(x_ref[...], wih_ref[...],
                           preferred_element_type=jnp.float32)
                   + bih_ref[...])

    whh = whh_ref[...]                               # VMEM-resident across steps
    bhn = bhn_ref[...]                               # (1, Hp)

    # Time-block this grid step processes (backward direction walks reversed).
    cb = c + d * (n_chunks - 1 - 2 * c)
    base_t = cb * TC
    mask_pad = (n_chunks * TC != T)                  # static: T was padded?

    def step(i, h):
        # within-chunk timestep (reversed for the backward direction)
        t = i + d * (TC - 1 - 2 * i)
        row = pl.multiple_of(t * Bp, 8)
        gi = gi_ref[pl.ds(row, Bp), :]               # (Bp, 3Hp), lane-dense
        gh = jnp.dot(h, whh, preferred_element_type=jnp.float32)
        r = jax.nn.sigmoid(gi[:, :Hp] + gh[:, :Hp])
        z = jax.nn.sigmoid(gi[:, Hp:2 * Hp] + gh[:, Hp:2 * Hp])
        n = jnp.tanh(gi[:, 2 * Hp:] + r * (gh[:, 2 * Hp:] + bhn))
        h_new = (1.0 - z) * n + z * h
        out_ref[pl.ds(row, Bp), :] = h_new           # unmasked (Bp, Hp) store
        if mask_pad:
            # padded timesteps must not touch the carried hidden state
            h_new = jnp.where(base_t + t < T, h_new, h)
        return h_new

    h_ref[...] = jax.lax.fori_loop(0, TC, step, h_ref[...],
                                   unroll=min(8, TC))


def _choose_time_chunk(T, Bp, Ein, Hp, budget_bytes=20 * 1024 * 1024,
                       max_chunk=128):
    """Largest time chunk (<= max_chunk) whose VMEM footprint fits the budget."""
    G = 3 * Hp

    def est(tc):
        return 4 * (2 * tc * Bp * (Ein + Hp)          # x + out, double-buffered
                    + tc * Bp * G                     # gi scratch
                    + 2 * (Ein * G + Hp * G + G + Hp) # weights (double-buffered)
                    + Bp * Hp)                        # carried hidden

    tc = max(1, min(max_chunk, T))
    while tc > 1 and est(tc) > budget_bytes:
        tc = max(1, tc // 2)
    return tc


def _vmem_estimate(TC, Bp, Ein, Hp):
    G = 3 * Hp
    return 4 * (2 * TC * Bp * (Ein + Hp) + TC * Bp * G
                + 2 * (Ein * G + Hp * G + G + Hp) + Bp * Hp)


def gru_layer(x2d, wih, whh, bih, bhn, *, T, TC, Bp, Hp):
    """Run one GRU layer (both directions fused into one pallas_call).

    x2d : (Tpad*Bp, Ein)  layer input, row index = t*Bp + b
    wih : (D, Ein, 3Hp), whh: (D, Hp, 3Hp), bih: (D, 1, 3Hp), bhn: (D, 1, Hp)
    returns (Tpad*Bp, D*Hp): forward hidden in cols [:Hp], backward in [Hp:2Hp],
    both already in original time order.
    """
    TBp, Ein = x2d.shape
    D = wih.shape[0]
    G = 3 * Hp
    n_chunks = TBp // (TC * Bp)
    kernel = functools.partial(_gru_chunk_kernel, T, TC, n_chunks)

    def cb(d, c):                                   # backward dir walks chunks reversed
        return c + d * (n_chunks - 1 - 2 * c)

    est = _vmem_estimate(TC, Bp, Ein, Hp)
    vmem_limit = min(max(int(1.5 * est), 16 * 1024 * 1024), 40 * 1024 * 1024)

    return pl.pallas_call(
        kernel,
        out_shape=jax.ShapeDtypeStruct((TBp, D * Hp), jnp.float32),
        grid_spec=pltpu.PrefetchScalarGridSpec(
            num_scalar_prefetch=0,
            grid=(D, n_chunks),
            in_specs=[
                # raw layer input, chunked along time (direction-dependent order)
                pl.BlockSpec((TC * Bp, Ein), lambda d, c: (cb(d, c), 0)),
                # per-direction weights / biases: constant block index within a
                # direction -> DMA'd once per direction, VMEM-resident across chunks
                pl.BlockSpec((None, Ein, G), lambda d, c: (d, 0, 0)),
                pl.BlockSpec((None, Hp, G), lambda d, c: (d, 0, 0)),
                pl.BlockSpec((None, 1, G), lambda d, c: (d, 0, 0)),
                pl.BlockSpec((None, 1, Hp), lambda d, c: (d, 0, 0)),
            ],
            out_specs=pl.BlockSpec((TC * Bp, Hp), lambda d, c: (cb(d, c), d)),
            scratch_shapes=[
                pltpu.VMEM((TC * Bp, G), jnp.float32),   # gi for the chunk
                pltpu.VMEM((Bp, Hp), jnp.float32),       # carried hidden state
            ],
        ),
        compiler_params=pltpu.CompilerParams(
            dimension_semantics=("parallel", "arbitrary"),
            vmem_limit_bytes=vmem_limit),
    )(x2d, wih, whh, bih, bhn)


def _pad_gate_cols(w, H, Hp):
    """Pad the stacked-gate trailing dim (..., 3*H) -> (..., 3*Hp) with zeros."""
    if Hp == H:
        return w
    lead = w.shape[:-1]
    w = w.reshape(lead + (3, H))
    w = jnp.pad(w, [(0, 0)] * len(lead) + [(0, 0), (0, Hp - H)])
    return w.reshape(lead + (3 * Hp,))


# ---------------------------------------------------------------------------
# Encoder module (parameter setup + glue in plain JAX)
# ---------------------------------------------------------------------------
class Encoder:
    def __init__(self, vocab_size, embedding_dim, hidden_size,
                 bidirectional, num_layers, key, max_time_chunk=128):
        self.embedding_dim = embedding_dim
        self.hidden_size = hidden_size
        self.hidden_pad = _round_up(hidden_size, 128)
        self.bidirectional = bidirectional
        self.num_layers = num_layers
        self.num_directions = 2 if bidirectional else 1
        self.max_time_chunk = max_time_chunk

        H, Hp = hidden_size, self.hidden_pad
        D = self.num_directions
        k = float(hidden_size) ** -0.5
        keys = jax.random.split(key, 1 + 4 * num_layers)

        # embedding table (like nn.Embedding default init ~ N(0,1))
        self.embedding = jax.random.normal(
            keys[0], (vocab_size, embedding_dim), jnp.float32)

        self.layers = []          # real (torch-layout, transposed) parameters
        self.kernel_params = []   # padded / folded parameters for the kernel
        for layer in range(num_layers):
            in_size = embedding_dim if layer == 0 else hidden_size * D
            kk = keys[1 + 4 * layer: 1 + 4 * layer + 4]
            u = lambda kkk, shape: jax.random.uniform(
                kkk, shape, jnp.float32, minval=-k, maxval=k)
            wih = u(kk[0], (D, in_size, 3 * H))   # W_ih^T
            whh = u(kk[1], (D, H, 3 * H))         # W_hh^T
            bih = u(kk[2], (D, 3 * H))
            bhh = u(kk[3], (D, 3 * H))
            self.layers.append(dict(wih=wih, whh=whh, bih=bih, bhh=bhh))

            # ---- lane-dense, gate-padded kernel weights ----
            if layer == 0:
                wih_k = _pad_gate_cols(wih, H, Hp)                # (D, E, 3Hp)
            else:
                # layer>0 input is (.., D*Hp): real rows land at d2*Hp .. d2*Hp+H
                wih_k = jnp.zeros((D, D * Hp, 3 * H), jnp.float32)
                for d2 in range(D):
                    wih_k = wih_k.at[:, d2 * Hp:d2 * Hp + H, :].set(
                        wih[:, d2 * H:(d2 + 1) * H, :])
                wih_k = _pad_gate_cols(wih_k, H, Hp)              # (D, D*Hp, 3Hp)
            whh_k = jnp.zeros((D, Hp, 3 * H), jnp.float32).at[:, :H, :].set(whh)
            whh_k = _pad_gate_cols(whh_k, H, Hp)                  # (D, Hp, 3Hp)
            # fold b_hr, b_hz into the input bias (b_hn must stay separate)
            bih_fold = bih.at[:, :2 * H].add(bhh[:, :2 * H])
            bih_k = _pad_gate_cols(bih_fold, H, Hp)[:, None, :]   # (D, 1, 3Hp)
            bhn_k = jnp.zeros((D, 1, Hp), jnp.float32).at[:, 0, :H].set(
                bhh[:, 2 * H:])
            self.kernel_params.append(
                dict(wih=wih_k, whh=whh_k, bih=bih_k, bhn=bhn_k))

    @functools.partial(jax.jit, static_argnums=0)
    def __call__(self, x):
        """x: (batch, t_len) int32 token ids.

        Returns (h, out) matching the PyTorch module:
          h:   (num_layers, batch, hidden_size)
          out: (batch, t_len, hidden_size)
        """
        B, T = x.shape
        H, Hp = self.hidden_size, self.hidden_pad
        D = self.num_directions
        Bp = _round_up(B, 8)                          # sublane-aligned batch

        e = self.embedding[x]                         # (B, T, E) embedding lookup
        inp = jnp.transpose(e, (1, 0, 2))             # (T, B, E) sequence-major

        # one time chunk / padded length shared by all layers
        ein_max = (self.embedding_dim if self.num_layers == 1
                   else max(self.embedding_dim, D * Hp))
        TC = _choose_time_chunk(T, Bp, ein_max, Hp,
                                max_chunk=self.max_time_chunk)
        Tpad = _round_up(T, TC)

        inp = jnp.pad(inp, ((0, Tpad - T), (0, Bp - B), (0, 0)))
        inp = inp.reshape(Tpad * Bp, -1)              # 2-D, feature dim on lanes

        h_list = []
        for p in self.kernel_params:
            out2d = gru_layer(inp, p['wih'], p['whh'], p['bih'], p['bhn'],
                              T=T, TC=TC, Bp=Bp, Hp=Hp)   # (Tpad*Bp, D*Hp)
            # final hidden per direction: fwd = state at t=T-1, bwd = state at t=0
            h_list.append(out2d[(T - 1) * Bp:(T - 1) * Bp + B, :H])
            if D == 2:
                h_list.append(out2d[:B, Hp:Hp + H])
            inp = out2d                               # next layer input as-is

        out = inp.reshape(Tpad, Bp, D * Hp)[:T, :B]   # drop time/batch padding
        out = jnp.transpose(out, (1, 0, 2))           # (B, T, D*Hp)
        if self.bidirectional:
            out = out[:, :, :H] + out[:, :, Hp:Hp + H]   # sum fwd + bwd halves
        else:
            out = out[:, :, :H]
        h = jnp.stack(h_list, axis=0)[:self.num_layers]  # torch h[:num_layers]
        return h, out


# ---------------------------------------------------------------------------
# Pure-JAX reference (same GRU math, lax.scan) for a numeric sanity check.
# ---------------------------------------------------------------------------
def _reference_forward(enc, x):
    H = enc.hidden_size
    D = enc.num_directions
    hi = jax.lax.Precision.HIGHEST
    B = x.shape[0]

    e = enc.embedding[x]
    inp = jnp.transpose(e, (1, 0, 2))
    h_list = []
    for p in enc.layers:
        outs = []
        for d in range(D):
            wih, whh = p['wih'][d], p['whh'][d]
            bih, bhh = p['bih'][d], p['bhh'][d]
            seq = inp[::-1] if d == 1 else inp

            def step(h, xt):
                gi = jnp.dot(xt, wih, precision=hi) + bih
                gh = jnp.dot(h, whh, precision=hi) + bhh
                r = jax.nn.sigmoid(gi[:, :H] + gh[:, :H])
                z = jax.nn.sigmoid(gi[:, H:2 * H] + gh[:, H:2 * H])
                n = jnp.tanh(gi[:, 2 * H:] + r * gh[:, 2 * H:])
                hn = (1.0 - z) * n + z * h
                return hn, hn

            h0 = jnp.zeros((B, H), jnp.float32)
            hT, out_seq = jax.lax.scan(step, h0, seq)
            if d == 1:
                out_seq = out_seq[::-1]
            outs.append(out_seq)
            h_list.append(hT)
        inp = jnp.concatenate(outs, axis=-1) if D == 2 else outs[0]

    out = jnp.transpose(inp, (1, 0, 2))
    h = jnp.stack(h_list, axis=0)
    if enc.bidirectional:
        out = out[:, :, :H] + out[:, :, H:]
    return h[:enc.num_layers], out


def _check(enc, x, tol=1e-3):
    h, out = enc(x)
    jax.block_until_ready((h, out))
    B, T = x.shape
    assert h.shape == (enc.num_layers, B, enc.hidden_size), h.shape
    assert out.shape == (B, T, enc.hidden_size), out.shape
    h_chk, out_chk = _reference_forward(enc, x)
    assert jnp.allclose(h, h_chk, atol=tol, rtol=tol), \
        float(jnp.max(jnp.abs(h - h_chk)))
    assert jnp.allclose(out, out_chk, atol=tol, rtol=tol), \
        float(jnp.max(jnp.abs(out - out_chk)))


if __name__ == "__main__":
    vocab_size = 50
    embedding_dim = 16
    hidden_size = 32

    key = jax.random.PRNGKey(0)
    kp1, kp2, kp3, kx1, kx2, kx3 = jax.random.split(key, 6)

    # (a) spec-like config: bidirectional, 2 layers, T divisible by the chunk
    enc_a = Encoder(vocab_size, embedding_dim, hidden_size,
                    bidirectional=True, num_layers=2, key=kp1)
    x_a = jax.random.randint(kx1, (2, 8), 0, vocab_size, dtype=jnp.int32)
    _check(enc_a, x_a)

    # (b) bidirectional, 1 layer, T=11 with a forced small chunk:
    #     exercises the padded-timestep masking in BOTH directions
    enc_b = Encoder(vocab_size, embedding_dim, hidden_size,
                    bidirectional=True, num_layers=1, key=kp2, max_time_chunk=4)
    x_b = jax.random.randint(kx2, (2, 11), 0, vocab_size, dtype=jnp.int32)
    _check(enc_b, x_b)

    # (c) unidirectional path (D=1), odd batch (tests batch padding)
    enc_c = Encoder(vocab_size, embedding_dim, hidden_size,
                    bidirectional=False, num_layers=1, key=kp3)
    x_c = jax.random.randint(kx3, (3, 8), 0, vocab_size, dtype=jnp.int32)
    _check(enc_c, x_c)

    print("KERNEL_OK")
</pallas_src>

<mosaic_0001>
module attributes {stable_mosaic.version = 11 : i64} {
  func.func @_gru_chunk_kernel(%arg0: i32, %arg1: i32, %arg2: memref<64x16xf32, #tpu.memory_space<vmem>>, %arg3: memref<1x16x384xf32, #tpu.memory_space<vmem>>, %arg4: memref<1x128x384xf32, #tpu.memory_space<vmem>>, %arg5: memref<1x1x384xf32, #tpu.memory_space<vmem>>, %arg6: memref<1x1x128xf32, #tpu.memory_space<vmem>>, %arg7: memref<64x128xf32, #tpu.memory_space<vmem>>, %arg8: memref<64x384xf32, #tpu.memory_space<vmem>>, %arg9: memref<8x128xf32, #tpu.memory_space<vmem>>) attributes {dimension_semantics = [#tpu.dimension_semantics<parallel>, #tpu.dimension_semantics<arbitrary>], iteration_bounds = array<i64: 2, 1>, scalar_prefetch = 0 : i64, scratch_operands = 2 : i64, tpu.core_type = #tpu.core_type<tc>, window_params = [{transform_indices = @transform_0, window_bounds = array<i64: 64, 16>}, {transform_indices = @transform_1, window_bounds = array<i64: 1, 16, 384>}, {transform_indices = @transform_2, window_bounds = array<i64: 1, 128, 384>}, {transform_indices = @transform_3, window_bounds = array<i64: 1, 1, 384>}, {transform_indices = @transform_4, window_bounds = array<i64: 1, 1, 128>}, {transform_indices = @transform_5, window_bounds = array<i64: 64, 128>}]} {
    %c0_i32 = arith.constant 0 : i32
    %0 = arith.cmpi eq, %arg1, %c0_i32 : i32
    %1 = arith.extui %0 : i1 to i32
    %c0_i32_0 = arith.constant 0 : i32
    %2 = arith.cmpi ne, %1, %c0_i32_0 : i32
    scf.if %2 {
      %cst_93 = arith.constant 0.000000e+00 : f32
      %330 = vector.broadcast %cst_93 : f32 to vector<8x128xf32>
      %c0_94 = arith.constant 0 : index
      %c0_95 = arith.constant 0 : index
      %331 = vector.load %arg9[%c0_94, %c0_95] : memref<8x128xf32, #tpu.memory_space<vmem>>, vector<8x128xf32>
      tpu.vector_store %arg9[%c0_94, %c0_95], %330 {strides = array<i32>} : memref<8x128xf32, #tpu.memory_space<vmem>>, vector<8x128xf32>,
    } else {
    }
    %c0 = arith.constant 0 : index
    %c0_1 = arith.constant 0 : index
    %3 = vector.load %arg2[%c0, %c0_1] : memref<64x16xf32, #tpu.memory_space<vmem>>, vector<64x16xf32>
    %c0_2 = arith.constant 0 : index
    %c0_3 = arith.constant 0 : index
    %c0_4 = arith.constant 0 : index
    %4 = vector.load %arg3[%c0_2, %c0_3, %c0_4] : memref<1x16x384xf32, #tpu.memory_space<vmem>>, vector<1x16x384xf32>
    %5 = vector.shape_cast %4 : vector<1x16x384xf32> to vector<16x384xf32>
    %cst = arith.constant dense<0.000000e+00> : vector<64x384xf32>
    %6 = tpu.matmul %3, %5, %cst {dimension_numbers = #tpu.dot_dimension_numbers<[1], [0], [0], [1], [0, 0, 1, 1], [], []>} : vector<64x16xf32>, vector<16x384xf32>, vector<64x384xf32> -> vector<64x384xf32>
    %c0_5 = arith.constant 0 : index
    %c0_6 = arith.constant 0 : index
    %c0_7 = arith.constant 0 : index
    %7 = vector.load %arg5[%c0_5, %c0_6, %c0_7] : memref<1x1x384xf32, #tpu.memory_space<vmem>>, vector<1x1x384xf32>
    %8 = vector.shape_cast %7 : vector<1x1x384xf32> to vector<1x384xf32>
    %9 = vector.broadcast %8 : vector<1x384xf32> to vector<64x384xf32>
    %10 = arith.addf %6, %9 : vector<64x384xf32>
    %c0_8 = arith.constant 0 : index
    %c0_9 = arith.constant 0 : index
    %11 = vector.load %arg8[%c0_8, %c0_9] : memref<64x384xf32, #tpu.memory_space<vmem>>, vector<64x384xf32>
    tpu.vector_store %arg8[%c0_8, %c0_9], %10 {strides = array<i32>} : memref<64x384xf32, #tpu.memory_space<vmem>>, vector<64x384xf32>,
    %c0_10 = arith.constant 0 : index
    %c0_11 = arith.constant 0 : index
    %c0_12 = arith.constant 0 : index
    %12 = vector.load %arg4[%c0_10, %c0_11, %c0_12] : memref<1x128x384xf32, #tpu.memory_space<vmem>>, vector<1x128x384xf32>
    %13 = vector.shape_cast %12 : vector<1x128x384xf32> to vector<128x384xf32>
    %c0_13 = arith.constant 0 : index
    %c0_14 = arith.constant 0 : index
    %c0_15 = arith.constant 0 : index
    %14 = vector.load %arg6[%c0_13, %c0_14, %c0_15] : memref<1x1x128xf32, #tpu.memory_space<vmem>>, vector<1x1x128xf32>
    %15 = vector.shape_cast %14 : vector<1x1x128xf32> to vector<1x128xf32>
    %c0_16 = arith.constant 0 : index
    %c0_17 = arith.constant 0 : index
    %16 = vector.load %arg9[%c0_16, %c0_17] : memref<8x128xf32, #tpu.memory_space<vmem>>, vector<8x128xf32>
    %c0_i32_18 = arith.constant 0 : i32
    %c2_i32 = arith.constant 2 : i32
    %17 = arith.muli %c2_i32, %c0_i32_18 : i32
    %c7_i32 = arith.constant 7 : i32
    %18 = arith.subi %c7_i32, %17 : i32
    %19 = arith.muli %arg0, %18 : i32
    %20 = arith.addi %c0_i32_18, %19 : i32
    %c8_i32 = arith.constant 8 : i32
    %21 = arith.muli %20, %c8_i32 : i32
    %22 = tpu.assume_multiple %21, 8 : i32
    %23 = arith.index_cast %22 : i32 to index
    %c0_19 = arith.constant 0 : index
    %24 = vector.load %arg8[%23, %c0_19] : memref<64x384xf32, #tpu.memory_space<vmem>>, vector<8x384xf32>
    %cst_20 = arith.constant dense<0.000000e+00> : vector<8x384xf32>
    %25 = tpu.matmul %16, %13, %cst_20 {dimension_numbers = #tpu.dot_dimension_numbers<[1], [0], [0], [1], [0, 0, 1, 1], [], []>} : vector<8x128xf32>, vector<128x384xf32>, vector<8x384xf32> -> vector<8x384xf32>
    %26 = vector.extract_strided_slice %24 {offsets = [0, 0], sizes = [8, 128], strides = [1, 1]} : vector<8x384xf32> to vector<8x128xf32>
    %27 = vector.extract_strided_slice %25 {offsets = [0, 0], sizes = [8, 128], strides = [1, 1]} : vector<8x384xf32> to vector<8x128xf32>
    %28 = arith.addf %26, %27 : vector<8x128xf32>
    %29 = arith.negf %28 : vector<8x128xf32>
    %30 = math.exp %29 : vector<8x128xf32>
    %cst_21 = arith.constant 1.000000e+00 : f32
    %31 = vector.broadcast %cst_21 : f32 to vector<8x128xf32>
    %32 = arith.addf %31, %30 : vector<8x128xf32>
    %33 = arith.divf %31, %32 : vector<8x128xf32>
    %34 = vector.extract_strided_slice %24 {offsets = [0, 128], sizes = [8, 128], strides = [1, 1]} : vector<8x384xf32> to vector<8x128xf32>
    %35 = vector.extract_strided_slice %25 {offsets = [0, 128], sizes = [8, 128], strides = [1, 1]} : vector<8x384xf32> to vector<8x128xf32>
    %36 = arith.addf %34, %35 : vector<8x128xf32>
    %37 = arith.negf %36 : vector<8x128xf32>
    %38 = math.exp %37 : vector<8x128xf32>
    %cst_22 = arith.constant 1.000000e+00 : f32
    %39 = vector.broadcast %cst_22 : f32 to vector<8x128xf32>
    %40 = arith.addf %39, %38 : vector<8x128xf32>
    %41 = arith.divf %39, %40 : vector<8x128xf32>
    %42 = vector.extract_strided_slice %24 {offsets = [0, 256], sizes = [8, 128], strides = [1, 1]} : vector<8x384xf32> to vector<8x128xf32>
    %43 = vector.extract_strided_slice %25 {offsets = [0, 256], sizes = [8, 128], strides = [1, 1]} : vector<8x384xf32> to vector<8x128xf32>
    %44 = vector.broadcast %15 : vector<1x128xf32> to vector<8x128xf32>
    %45 = arith.addf %43, %44 : vector<8x128xf32>
    %46 = arith.mulf %33, %45 : vector<8x128xf32>
    %47 = arith.addf %42, %46 : vector<8x128xf32>
    %48 = math.tanh %47 : vector<8x128xf32>
    %cst_23 = arith.constant 1.000000e+00 : f32
    %49 = vector.broadcast %cst_23 : f32 to vector<8x128xf32>
    %50 = arith.subf %49, %41 : vector<8x128xf32>
    %51 = arith.mulf %50, %48 : vector<8x128xf32>
    %52 = arith.mulf %41, %16 : vector<8x128xf32>
    %53 = arith.addf %51, %52 : vector<8x128xf32>
    %54 = arith.index_cast %22 : i32 to index
    %c0_24 = arith.constant 0 : index
    %55 = vector.load %arg7[%54, %c0_24] : memref<64x128xf32, #tpu.memory_space<vmem>>, vector<8x128xf32>
    tpu.vector_store %arg7[%54, %c0_24], %53 {strides = array<i32>} : memref<64x128xf32, #tpu.memory_space<vmem>>, vector<8x128xf32>,
    %c1_i32 = arith.constant 1 : i32
    %c2_i32_25 = arith.constant 2 : i32
    %56 = arith.muli %c2_i32_25, %c1_i32 : i32
    %c7_i32_26 = arith.constant 7 : i32
    %57 = arith.subi %c7_i32_26, %56 : i32
    %58 = arith.muli %arg0, %57 : i32
    %59 = arith.addi %c1_i32, %58 : i32
    %c8_i32_27 = arith.constant 8 : i32
    %60 = arith.muli %59, %c8_i32_27 : i32
    %61 = tpu.assume_multiple %60, 8 : i32
    %62 = arith.index_cast %61 : i32 to index
    %c0_28 = arith.constant 0 : index
    %63 = vector.load %arg8[%62, %c0_28] : memref<64x384xf32, #tpu.memory_space<vmem>>, vector<8x384xf32>
    %cst_29 = arith.constant dense<0.000000e+00> : vector<8x384xf32>
    %64 = tpu.matmul %53, %13, %cst_29 {dimension_numbers = #tpu.dot_dimension_numbers<[1], [0], [0], [1], [0, 0, 1, 1], [], []>} : vector<8x128xf32>, vector<128x384xf32>, vector<8x384xf32> -> vector<8x384xf32>
    %65 = vector.extract_strided_slice %63 {offsets = [0, 0], sizes = [8, 128], strides = [1, 1]} : vector<8x384xf32> to vector<8x128xf32>
    %66 = vector.extract_strided_slice %64 {offsets = [0, 0], sizes = [8, 128], strides = [1, 1]} : vector<8x384xf32> to vector<8x128xf32>
    %67 = arith.addf %65, %66 : vector<8x128xf32>
    %68 = arith.negf %67 : vector<8x128xf32>
    %69 = math.exp %68 : vector<8x128xf32>
    %cst_30 = arith.constant 1.000000e+00 : f32
    %70 = vector.broadcast %cst_30 : f32 to vector<8x128xf32>
    %71 = arith.addf %70, %69 : vector<8x128xf32>
    %72 = arith.divf %70, %71 : vector<8x128xf32>
    %73 = vector.extract_strided_slice %63 {offsets = [0, 128], sizes = [8, 128], strides = [1, 1]} : vector<8x384xf32> to vector<8x128xf32>
    %74 = vector.extract_strided_slice %64 {offsets = [0, 128], sizes = [8, 128], strides = [1, 1]} : vector<8x384xf32> to vector<8x128xf32>
    %75 = arith.addf %73, %74 : vector<8x128xf32>
    %76 = arith.negf %75 : vector<8x128xf32>
    %77 = math.exp %76 : vector<8x128xf32>
    %cst_31 = arith.constant 1.000000e+00 : f32
    %78 = vector.broadcast %cst_31 : f32 to vector<8x128xf32>
    %79 = arith.addf %78, %77 : vector<8x128xf32>
    %80 = arith.divf %78, %79 : vector<8x128xf32>
    %81 = vector.extract_strided_slice %63 {offsets = [0, 256], sizes = [8, 128], strides = [1, 1]} : vector<8x384xf32> to vector<8x128xf32>
    %82 = vector.extract_strided_slice %64 {offsets = [0, 256], sizes = [8, 128], strides = [1, 1]} : vector<8x384xf32> to vector<8x128xf32>
    %83 = vector.broadcast %15 : vector<1x128xf32> to vector<8x128xf32>
    %84 = arith.addf %82, %83 : vector<8x128xf32>
    %85 = arith.mulf %72, %84 : vector<8x128xf32>
    %86 = arith.addf %81, %85 : vector<8x128xf32>
    %87 = math.tanh %86 : vector<8x128xf32>
    %cst_32 = arith.constant 1.000000e+00 : f32
    %88 = vector.broadcast %cst_32 : f32 to vector<8x128xf32>
    %89 = arith.subf %88, %80 : vector<8x128xf32>
    %90 = arith.mulf %89, %87 : vector<8x128xf32>
    %91 = arith.mulf %80, %53 : vector<8x128xf32>
    %92 = arith.addf %90, %91 : vector<8x128xf32>
    %93 = arith.index_cast %61 : i32 to index
    %c0_33 = arith.constant 0 : index
    %94 = vector.load %arg7[%93, %c0_33] : memref<64x128xf32, #tpu.memory_space<vmem>>, vector<8x128xf32>
    tpu.vector_store %arg7[%93, %c0_33], %92 {strides = array<i32>} : memref<64x128xf32, #tpu.memory_space<vmem>>, vector<8x128xf32>,
    %c2_i32_34 = arith.constant 2 : i32
    %c2_i32_35 = arith.constant 2 : i32
    %95 = arith.muli %c2_i32_35, %c2_i32_34 : i32
    %c7_i32_36 = arith.constant 7 : i32
    %96 = arith.subi %c7_i32_36, %95 : i32
    %97 = arith.muli %arg0, %96 : i32
    %98 = arith.addi %c2_i32_34, %97 : i32
    %c8_i32_37 = arith.constant 8 : i32
    %99 = arith.muli %98, %c8_i32_37 : i32
    %100 = tpu.assume_multiple %99, 8 : i32
    %101 = arith.index_cast %100 : i32 to index
    %c0_38 = arith.constant 0 : index
    %102 = vector.load %arg8[%101, %c0_38] : memref<64x384xf32, #tpu.memory_space<vmem>>, vector<8x384xf32>
    %cst_39 = arith.constant dense<0.000000e+00> : vector<8x384xf32>
    %103 = tpu.matmul %92, %13, %cst_39 {dimension_numbers = #tpu.dot_dimension_numbers<[1], [0], [0], [1], [0, 0, 1, 1], [], []>} : vector<8x128xf32>, vector<128x384xf32>, vector<8x384xf32> -> vector<8x384xf32>
    %104 = vector.extract_strided_slice %102 {offsets = [0, 0], sizes = [8, 128], strides = [1, 1]} : vector<8x384xf32> to vector<8x128xf32>
    %105 = vector.extract_strided_slice %103 {offsets = [0, 0], sizes = [8, 128], strides = [1, 1]} : vector<8x384xf32> to vector<8x128xf32>
    %106 = arith.addf %104, %105 : vector<8x128xf32>
    %107 = arith.negf %106 : vector<8x128xf32>
    %108 = math.exp %107 : vector<8x128xf32>
    %cst_40 = arith.constant 1.000000e+00 : f32
    %109 = vector.broadcast %cst_40 : f32 to vector<8x128xf32>
    %110 = arith.addf %109, %108 : vector<8x128xf32>
    %111 = arith.divf %109, %110 : vector<8x128xf32>
    %112 = vector.extract_strided_slice %102 {offsets = [0, 128], sizes = [8, 128], strides = [1, 1]} : vector<8x384xf32> to vector<8x128xf32>
    %113 = vector.extract_strided_slice %103 {offsets = [0, 128], sizes = [8, 128], strides = [1, 1]} : vector<8x384xf32> to vector<8x128xf32>
    %114 = arith.addf %112, %113 : vector<8x128xf32>
    %115 = arith.negf %114 : vector<8x128xf32>
    %116 = math.exp %115 : vector<8x128xf32>
    %cst_41 = arith.constant 1.000000e+00 : f32
    %117 = vector.broadcast %cst_41 : f32 to vector<8x128xf32>
    %118 = arith.addf %117, %116 : vector<8x128xf32>
    %119 = arith.divf %117, %118 : vector<8x128xf32>
    %120 = vector.extract_strided_slice %102 {offsets = [0, 256], sizes = [8, 128], strides = [1, 1]} : vector<8x384xf32> to vector<8x128xf32>
    %121 = vector.extract_strided_slice %103 {offsets = [0, 256], sizes = [8, 128], strides = [1, 1]} : vector<8x384xf32> to vector<8x128xf32>
    %122 = vector.broadcast %15 : vector<1x128xf32> to vector<8x128xf32>
    %123 = arith.addf %121, %122 : vector<8x128xf32>
    %124 = arith.mulf %111, %123 : vector<8x128xf32>
    %125 = arith.addf %120, %124 : vector<8x128xf32>
    %126 = math.tanh %125 : vector<8x128xf32>
    %cst_42 = arith.constant 1.000000e+00 : f32
    %127 = vector.broadcast %cst_42 : f32 to vector<8x128xf32>
    %128 = arith.subf %127, %119 : vector<8x128xf32>
    %129 = arith.mulf %128, %126 : vector<8x128xf32>
    %130 = arith.mulf %119, %92 : vector<8x128xf32>
    %131 = arith.addf %129, %130 : vector<8x128xf32>
    %132 = arith.index_cast %100 : i32 to index
    %c0_43 = arith.constant 0 : index
    %133 = vector.load %arg7[%132, %c0_43] : memref<64x128xf32, #tpu.memory_space<vmem>>, vector<8x128xf32>
    tpu.vector_store %arg7[%132, %c0_43], %131 {strides = array<i32>} : memref<64x128xf32, #tpu.memory_space<vmem>>, vector<8x128xf32>,
    %c3_i32 = arith.constant 3 : i32
    %c2_i32_44 = arith.constant 2 : i32
    %134 = arith.muli %c2_i32_44, %c3_i32 : i32
    %c7_i32_45 = arith.constant 7 : i32
    %135 = arith.subi %c7_i32_45, %134 : i32
    %136 = arith.muli %arg0, %135 : i32
    %137 = arith.addi %c3_i32, %136 : i32
    %c8_i32_46 = arith.constant 8 : i32
    %138 = arith.muli %137, %c8_i32_46 : i32
    %139 = tpu.assume_multiple %138, 8 : i32
    %140 = arith.index_cast %139 : i32 to index
    %c0_47 = arith.constant 0 : index
    %141 = vector.load %arg8[%140, %c0_47] : memref<64x384xf32, #tpu.memory_space<vmem>>, vector<8x384xf32>
    %cst_48 = arith.constant dense<0.000000e+00> : vector<8x384xf32>
    %142 = tpu.matmul %131, %13, %cst_48 {dimension_numbers = #tpu.dot_dimension_numbers<[1], [0], [0], [1], [0, 0, 1, 1], [], []>} : vector<8x128xf32>, vector<128x384xf32>, vector<8x384xf32> -> vector<8x384xf32>
    %143 = vector.extract_strided_slice %141 {offsets = [0, 0], sizes = [8, 128], strides = [1, 1]} : vector<8x384xf32> to vector<8x128xf32>
    %144 = vector.extract_strided_slice %142 {offsets = [0, 0], sizes = [8, 128], strides = [1, 1]} : vector<8x384xf32> to vector<8x128xf32>
    %145 = arith.addf %143, %144 : vector<8x128xf32>
    %146 = arith.negf %145 : vector<8x128xf32>
    %147 = math.exp %146 : vector<8x128xf32>
    %cst_49 = arith.constant 1.000000e+00 : f32
    %148 = vector.broadcast %cst_49 : f32 to vector<8x128xf32>
    %149 = arith.addf %148, %147 : vector<8x128xf32>
    %150 = arith.divf %148, %149 : vector<8x128xf32>
    %151 = vector.extract_strided_slice %141 {offsets = [0, 128], sizes = [8, 128], strides = [1, 1]} : vector<8x384xf32> to vector<8x128xf32>
    %152 = vector.extract_strided_slice %142 {offsets = [0, 128], sizes = [8, 128], strides = [1, 1]} : vector<8x384xf32> to vector<8x128xf32>
    %153 = arith.addf %151, %152 : vector<8x128xf32>
    %154 = arith.negf %153 : vector<8x128xf32>
    %155 = math.exp %154 : vector<8x128xf32>
    %cst_50 = arith.constant 1.000000e+00 : f32
    %156 = vector.broadcast %cst_50 : f32 to vector<8x128xf32>
    %157 = arith.addf %156, %155 : vector<8x128xf32>
    %158 = arith.divf %156, %157 : vector<8x128xf32>
    %159 = vector.extract_strided_slice %141 {offsets = [0, 256], sizes = [8, 128], strides = [1, 1]} : vector<8x384xf32> to vector<8x128xf32>
    %160 = vector.extract_strided_slice %142 {offsets = [0, 256], sizes = [8, 128], strides = [1, 1]} : vector<8x384xf32> to vector<8x128xf32>
    %161 = vector.broadcast %15 : vector<1x128xf32> to vector<8x128xf32>
    %162 = arith.addf %160, %161 : vector<8x128xf32>
    %163 = arith.mulf %150, %162 : vector<8x128xf32>
    %164 = arith.addf %159, %163 : vector<8x128xf32>
    %165 = math.tanh %164 : vector<8x128xf32>
    %cst_51 = arith.constant 1.000000e+00 : f32
    %166 = vector.broadcast %cst_51 : f32 to vector<8x128xf32>
    %167 = arith.subf %166, %158 : vector<8x128xf32>
    %168 = arith.mulf %167, %165 : vector<8x128xf32>
    %169 = arith.mulf %158, %131 : vector<8x128xf32>
    %170 = arith.addf %168, %169 : vector<8x128xf32>
    %171 = arith.index_cast %139 : i32 to index
    %c0_52 = arith.constant 0 : index
    %172 = vector.load %arg7[%171, %c0_52] : memref<64x128xf32, #tpu.memory_space<vmem>>, vector<8x128xf32>
    tpu.vector_store %arg7[%171, %c0_52], %170 {strides = array<i32>} : memref<64x128xf32, #tpu.memory_space<vmem>>, vector<8x128xf32>,
    %c4_i32 = arith.constant 4 : i32
    %c2_i32_53 = arith.constant 2 : i32
    %173 = arith.muli %c2_i32_53, %c4_i32 : i32
    %c7_i32_54 = arith.constant 7 : i32
    %174 = arith.subi %c7_i32_54, %173 : i32
    %175 = arith.muli %arg0, %174 : i32
    %176 = arith.addi %c4_i32, %175 : i32
    %c8_i32_55 = arith.constant 8 : i32
    %177 = arith.muli %176, %c8_i32_55 : i32
    %178 = tpu.assume_multiple %177, 8 : i32
    %179 = arith.index_cast %178 : i32 to index
    %c0_56 = arith.constant 0 : index
    %180 = vector.load %arg8[%179, %c0_56] : memref<64x384xf32, #tpu.memory_space<vmem>>, vector<8x384xf32>
    %cst_57 = arith.constant dense<0.000000e+00> : vector<8x384xf32>
    %181 = tpu.matmul %170, %13, %cst_57 {dimension_numbers = #tpu.dot_dimension_numbers<[1], [0], [0], [1], [0, 0, 1, 1], [], []>} : vector<8x128xf32>, vector<128x384xf32>, vector<8x384xf32> -> vector<8x384xf32>
    %182 = vector.extract_strided_slice %180 {offsets = [0, 0], sizes = [8, 128], strides = [1, 1]} : vector<8x384xf32> to vector<8x128xf32>
    %183 = vector.extract_strided_slice %181 {offsets = [0, 0], sizes = [8, 128], strides = [1, 1]} : vector<8x384xf32> to vector<8x128xf32>
    %184 = arith.addf %182, %183 : vector<8x128xf32>
    %185 = arith.negf %184 : vector<8x128xf32>
    %186 = math.exp %185 : vector<8x128xf32>
    %cst_58 = arith.constant 1.000000e+00 : f32
    %187 = vector.broadcast %cst_58 : f32 to vector<8x128xf32>
    %188 = arith.addf %187, %186 : vector<8x128xf32>
    %189 = arith.divf %187, %188 : vector<8x128xf32>
    %190 = vector.extract_strided_slice %180 {offsets = [0, 128], sizes = [8, 128], strides = [1, 1]} : vector<8x384xf32> to vector<8x128xf32>
    %191 = vector.extract_strided_slice %181 {offsets = [0, 128], sizes = [8, 128], strides = [1, 1]} : vector<8x384xf32> to vector<8x128xf32>
    %192 = arith.addf %190, %191 : vector<8x128xf32>
    %193 = arith.negf %192 : vector<8x128xf32>
    %194 = math.exp %193 : vector<8x128xf32>
    %cst_59 = arith.constant 1.000000e+00 : f32
    %195 = vector.broadcast %cst_59 : f32 to vector<8x128xf32>
    %196 = arith.addf %195, %194 : vector<8x128xf32>
    %197 = arith.divf %195, %196 : vector<8x128xf32>
    %198 = vector.extract_strided_slice %180 {offsets = [0, 256], sizes = [8, 128], strides = [1, 1]} : vector<8x384xf32> to vector<8x128xf32>
    %199 = vector.extract_strided_slice %181 {offsets = [0, 256], sizes = [8, 128], strides = [1, 1]} : vector<8x384xf32> to vector<8x128xf32>
    %200 = vector.broadcast %15 : vector<1x128xf32> to vector<8x128xf32>
    %201 = arith.addf %199, %200 : vector<8x128xf32>
    %202 = arith.mulf %189, %201 : vector<8x128xf32>
    %203 = arith.addf %198, %202 : vector<8x128xf32>
    %204 = math.tanh %203 : vector<8x128xf32>
    %cst_60 = arith.constant 1.000000e+00 : f32
    %205 = vector.broadcast %cst_60 : f32 to vector<8x128xf32>
    %206 = arith.subf %205, %197 : vector<8x128xf32>
    %207 = arith.mulf %206, %204 : vector<8x128xf32>
    %208 = arith.mulf %197, %170 : vector<8x128xf32>
    %209 = arith.addf %207, %208 : vector<8x128xf32>
    %210 = arith.index_cast %178 : i32 to index
    %c0_61 = arith.constant 0 : index
    %211 = vector.load %arg7[%210, %c0_61] : memref<64x128xf32, #tpu.memory_space<vmem>>, vector<8x128xf32>
    tpu.vector_store %arg7[%210, %c0_61], %209 {strides = array<i32>} : memref<64x128xf32, #tpu.memory_space<vmem>>, vector<8x128xf32>,
    %c5_i32 = arith.constant 5 : i32
    %c2_i32_62 = arith.constant 2 : i32
    %212 = arith.muli %c2_i32_62, %c5_i32 : i32
    %c7_i32_63 = arith.constant 7 : i32
    %213 = arith.subi %c7_i32_63, %212 : i32
    %214 = arith.muli %arg0, %213 : i32
    %215 = arith.addi %c5_i32, %214 : i32
    %c8_i32_64 = arith.constant 8 : i32
    %216 = arith.muli %215, %c8_i32_64 : i32
    %217 = tpu.assume_multiple %216, 8 : i32
    %218 = arith.index_cast %217 : i32 to index
    %c0_65 = arith.constant 0 : index
    %219 = vector.load %arg8[%218, %c0_65] : memref<64x384xf32, #tpu.memory_space<vmem>>, vector<8x384xf32>
    %cst_66 = arith.constant dense<0.000000e+00> : vector<8x384xf32>
    %220 = tpu.matmul %209, %13, %cst_66 {dimension_numbers = #tpu.dot_dimension_numbers<[1], [0], [0], [1], [0, 0, 1, 1], [], []>} : vector<8x128xf32>, vector<128x384xf32>, vector<8x384xf32> -> vector<8x384xf32>
    %221 = vector.extract_strided_slice %219 {offsets = [0, 0], sizes = [8, 128], strides = [1, 1]} : vector<8x384xf32> to vector<8x128xf32>
    %222 = vector.extract_strided_slice %220 {offsets = [0, 0], sizes = [8, 128], strides = [1, 1]} : vector<8x384xf32> to vector<8x128xf32>
    %223 = arith.addf %221, %222 : vector<8x128xf32>
    %224 = arith.negf %223 : vector<8x128xf32>
    %225 = math.exp %224 : vector<8x128xf32>
    %cst_67 = arith.constant 1.000000e+00 : f32
    %226 = vector.broadcast %cst_67 : f32 to vector<8x128xf32>
    %227 = arith.addf %226, %225 : vector<8x128xf32>
    %228 = arith.divf %226, %227 : vector<8x128xf32>
    %229 = vector.extract_strided_slice %219 {offsets = [0, 128], sizes = [8, 128], strides = [1, 1]} : vector<8x384xf32> to vector<8x128xf32>
    %230 = vector.extract_strided_slice %220 {offsets = [0, 128], sizes = [8, 128], strides = [1, 1]} : vector<8x384xf32> to vector<8x128xf32>
    %231 = arith.addf %229, %230 : vector<8x128xf32>
    %232 = arith.negf %231 : vector<8x128xf32>
    %233 = math.exp %232 : vector<8x128xf32>
    %cst_68 = arith.constant 1.000000e+00 : f32
    %234 = vector.broadcast %cst_68 : f32 to vector<8x128xf32>
    %235 = arith.addf %234, %233 : vector<8x128xf32>
    %236 = arith.divf %234, %235 : vector<8x128xf32>
    %237 = vector.extract_strided_slice %219 {offsets = [0, 256], sizes = [8, 128], strides = [1, 1]} : vector<8x384xf32> to vector<8x128xf32>
    %238 = vector.extract_strided_slice %220 {offsets = [0, 256], sizes = [8, 128], strides = [1, 1]} : vector<8x384xf32> to vector<8x128xf32>
    %239 = vector.broadcast %15 : vector<1x128xf32> to vector<8x128xf32>
    %240 = arith.addf %238, %239 : vector<8x128xf32>
    %241 = arith.mulf %228, %240 : vector<8x128xf32>
    %242 = arith.addf %237, %241 : vector<8x128xf32>
    %243 = math.tanh %242 : vector<8x128xf32>
    %cst_69 = arith.constant 1.000000e+00 : f32
    %244 = vector.broadcast %cst_69 : f32 to vector<8x128xf32>
    %245 = arith.subf %244, %236 : vector<8x128xf32>
    %246 = arith.mulf %245, %243 : vector<8x128xf32>
    %247 = arith.mulf %236, %209 : vector<8x128xf32>
    %248 = arith.addf %246, %247 : vector<8x128xf32>
    %249 = arith.index_cast %217 : i32 to index
    %c0_70 = arith.constant 0 : index
    %250 = vector.load %arg7[%249, %c0_70] : memref<64x128xf32, #tpu.memory_space<vmem>>, vector<8x128xf32>
    tpu.vector_store %arg7[%249, %c0_70], %248 {strides = array<i32>} : memref<64x128xf32, #tpu.memory_space<vmem>>, vector<8x128xf32>,
    %c6_i32 = arith.constant 6 : i32
    %c2_i32_71 = arith.constant 2 : i32
    %251 = arith.muli %c2_i32_71, %c6_i32 : i32
    %c7_i32_72 = arith.constant 7 : i32
    %252 = arith.subi %c7_i32_72, %251 : i32
    %253 = arith.muli %arg0, %252 : i32
    %254 = arith.addi %c6_i32, %253 : i32
    %c8_i32_73 = arith.constant 8 : i32
    %255 = arith.muli %254, %c8_i32_73 : i32
    %256 = tpu.assume_multiple %255, 8 : i32
    %257 = arith.index_cast %256 : i32 to index
    %c0_74 = arith.constant 0 : index
    %258 = vector.load %arg8[%257, %c0_74] : memref<64x384xf32, #tpu.memory_space<vmem>>, vector<8x384xf32>
    %cst_75 = arith.constant dense<0.000000e+00> : vector<8x384xf32>
    %259 = tpu.matmul %248, %13, %cst_75 {dimension_numbers = #tpu.dot_dimension_numbers<[1], [0], [0], [1], [0, 0, 1, 1], [], []>} : vector<8x128xf32>, vector<128x384xf32>, vector<8x384xf32> -> vector<8x384xf32>
    %260 = vector.extract_strided_slice %258 {offsets = [0, 0], sizes = [8, 128], strides = [1, 1]} : vector<8x384xf32> to vector<8x128xf32>
    %261 = vector.extract_strided_slice %259 {offsets = [0, 0], sizes = [8, 128], strides = [1, 1]} : vector<8x384xf32> to vector<8x128xf32>
    %262 = arith.addf %260, %261 : vector<8x128xf32>
    %263 = arith.negf %262 : vector<8x128xf32>
    %264 = math.exp %263 : vector<8x128xf32>
    %cst_76 = arith.constant 1.000000e+00 : f32
    %265 = vector.broadcast %cst_76 : f32 to vector<8x128xf32>
    %266 = arith.addf %265, %264 : vector<8x128xf32>
    %267 = arith.divf %265, %266 : vector<8x128xf32>
    %268 = vector.extract_strided_slice %258 {offsets = [0, 128], sizes = [8, 128], strides = [1, 1]} : vector<8x384xf32> to vector<8x128xf32>
    %269 = vector.extract_strided_slice %259 {offsets = [0, 128], sizes = [8, 128], strides = [1, 1]} : vector<8x384xf32> to vector<8x128xf32>
    %270 = arith.addf %268, %269 : vector<8x128xf32>
    %271 = arith.negf %270 : vector<8x128xf32>
    %272 = math.exp %271 : vector<8x128xf32>
    %cst_77 = arith.constant 1.000000e+00 : f32
    %273 = vector.broadcast %cst_77 : f32 to vector<8x128xf32>
    %274 = arith.addf %273, %272 : vector<8x128xf32>
    %275 = arith.divf %273, %274 : vector<8x128xf32>
    %276 = vector.extract_strided_slice %258 {offsets = [0, 256], sizes = [8, 128], strides = [1, 1]} : vector<8x384xf32> to vector<8x128xf32>
    %277 = vector.extract_strided_slice %259 {offsets = [0, 256], sizes = [8, 128], strides = [1, 1]} : vector<8x384xf32> to vector<8x128xf32>
    %278 = vector.broadcast %15 : vector<1x128xf32> to vector<8x128xf32>
    %279 = arith.addf %277, %278 : vector<8x128xf32>
    %280 = arith.mulf %267, %279 : vector<8x128xf32>
    %281 = arith.addf %276, %280 : vector<8x128xf32>
    %282 = math.tanh %281 : vector<8x128xf32>
    %cst_78 = arith.constant 1.000000e+00 : f32
    %283 = vector.broadcast %cst_78 : f32 to vector<8x128xf32>
    %284 = arith.subf %283, %275 : vector<8x128xf32>
    %285 = arith.mulf %284, %282 : vector<8x128xf32>
    %286 = arith.mulf %275, %248 : vector<8x128xf32>
    %287 = arith.addf %285, %286 : vector<8x128xf32>
    %288 = arith.index_cast %256 : i32 to index
    %c0_79 = arith.constant 0 : index
    %289 = vector.load %arg7[%288, %c0_79] : memref<64x128xf32, #tpu.memory_space<vmem>>, vector<8x128xf32>
    tpu.vector_store %arg7[%288, %c0_79], %287 {strides = array<i32>} : memref<64x128xf32, #tpu.memory_space<vmem>>, vector<8x128xf32>,
    %c7_i32_80 = arith.constant 7 : i32
    %c2_i32_81 = arith.constant 2 : i32
    %290 = arith.muli %c2_i32_81, %c7_i32_80 : i32
    %c7_i32_82 = arith.constant 7 : i32
    %291 = arith.subi %c7_i32_82, %290 : i32
    %292 = arith.muli %arg0, %291 : i32
    %293 = arith.addi %c7_i32_80, %292 : i32
    %c8_i32_83 = arith.constant 8 : i32
    %294 = arith.muli %293, %c8_i32_83 : i32
    %295 = tpu.assume_multiple %294, 8 : i32
    %296 = arith.index_cast %295 : i32 to index
    %c0_84 = arith.constant 0 : index
    %297 = vector.load %arg8[%296, %c0_84] : memref<64x384xf32, #tpu.memory_space<vmem>>, vector<8x384xf32>
    %cst_85 = arith.constant dense<0.000000e+00> : vector<8x384xf32>
    %298 = tpu.matmul %287, %13, %cst_85 {dimension_numbers = #tpu.dot_dimension_numbers<[1], [0], [0], [1], [0, 0, 1, 1], [], []>} : vector<8x128xf32>, vector<128x384xf32>, vector<8x384xf32> -> vector<8x384xf32>
    %299 = vector.extract_strided_slice %297 {offsets = [0, 0], sizes = [8, 128], strides = [1, 1]} : vector<8x384xf32> to vector<8x128xf32>
    %300 = vector.extract_strided_slice %298 {offsets = [0, 0], sizes = [8, 128], strides = [1, 1]} : vector<8x384xf32> to vector<8x128xf32>
    %301 = arith.addf %299, %300 : vector<8x128xf32>
    %302 = arith.negf %301 : vector<8x128xf32>
    %303 = math.exp %302 : vector<8x128xf32>
    %cst_86 = arith.constant 1.000000e+00 : f32
    %304 = vector.broadcast %cst_86 : f32 to vector<8x128xf32>
    %305 = arith.addf %304, %303 : vector<8x128xf32>
    %306 = arith.divf %304, %305 : vector<8x128xf32>
    %307 = vector.extract_strided_slice %297 {offsets = [0, 128], sizes = [8, 128], strides = [1, 1]} : vector<8x384xf32> to vector<8x128xf32>
    %308 = vector.extract_strided_slice %298 {offsets = [0, 128], sizes = [8, 128], strides = [1, 1]} : vector<8x384xf32> to vector<8x128xf32>
    %309 = arith.addf %307, %308 : vector<8x128xf32>
    %310 = arith.negf %309 : vector<8x128xf32>
    %311 = math.exp %310 : vector<8x128xf32>
    %cst_87 = arith.constant 1.000000e+00 : f32
    %312 = vector.broadcast %cst_87 : f32 to vector<8x128xf32>
    %313 = arith.addf %312, %311 : vector<8x128xf32>
    %314 = arith.divf %312, %313 : vector<8x128xf32>
    %315 = vector.extract_strided_slice %297 {offsets = [0, 256], sizes = [8, 128], strides = [1, 1]} : vector<8x384xf32> to vector<8x128xf32>
    %316 = vector.extract_strided_slice %298 {offsets = [0, 256], sizes = [8, 128], strides = [1, 1]} : vector<8x384xf32> to vector<8x128xf32>
    %317 = vector.broadcast %15 : vector<1x128xf32> to vector<8x128xf32>
    %318 = arith.addf %316, %317 : vector<8x128xf32>
    %319 = arith.mulf %306, %318 : vector<8x128xf32>
    %320 = arith.addf %315, %319 : vector<8x128xf32>
    %321 = math.tanh %320 : vector<8x128xf32>
    %cst_88 = arith.constant 1.000000e+00 : f32
    %322 = vector.broadcast %cst_88 : f32 to vector<8x128xf32>
    %323 = arith.subf %322, %314 : vector<8x128xf32>
    %324 = arith.mulf %323, %321 : vector<8x128xf32>
    %325 = arith.mulf %314, %287 : vector<8x128xf32>
    %326 = arith.addf %324, %325 : vector<8x128xf32>
    %327 = arith.index_cast %295 : i32 to index
    %c0_89 = arith.constant 0 : index
    %328 = vector.load %arg7[%327, %c0_89] : memref<64x128xf32, #tpu.memory_space<vmem>>, vector<8x128xf32>
    tpu.vector_store %arg7[%327, %c0_89], %326 {strides = array<i32>} : memref<64x128xf32, #tpu.memory_space<vmem>>, vector<8x128xf32>,
    %c8_i32_90 = arith.constant 8 : i32
    %c0_91 = arith.constant 0 : index
    %c0_92 = arith.constant 0 : index
    %329 = vector.load %arg9[%c0_91, %c0_92] : memref<8x128xf32, #tpu.memory_space<vmem>>, vector<8x128xf32>
    tpu.vector_store %arg9[%c0_91, %c0_92], %326 {strides = array<i32>} : memref<8x128xf32, #tpu.memory_space<vmem>>, vector<8x128xf32>,
    return
  }
  func.func @transform_0(%arg0: i32, %arg1: i32) -> (i32, i32) {
    %c2_i32 = arith.constant 2 : i32
    %0 = arith.muli %c2_i32, %arg1 : i32
    %c0_i32 = arith.constant 0 : i32
    %1 = arith.subi %c0_i32, %0 : i32
    %2 = arith.muli %arg0, %1 : i32
    %3 = arith.addi %arg1, %2 : i32
    %c0_i32_0 = arith.constant 0 : i32
    %c0_i32_1 = arith.constant 0 : i32
    return %3, %c0_i32_0 : i32, i32
  }
  func.func @transform_1(%arg0: i32, %arg1: i32) -> (i32, i32, i32) {
    %c0_i32 = arith.constant 0 : i32
    %c0_i32_0 = arith.constant 0 : i32
    %c0_i32_1 = arith.constant 0 : i32
    return %arg0, %c0_i32, %c0_i32_0 : i32, i32, i32
  }
  func.func @transform_2(%arg0: i32, %arg1: i32) -> (i32, i32, i32) {
    %c0_i32 = arith.constant 0 : i32
    %c0_i32_0 = arith.constant 0 : i32
    %c0_i32_1 = arith.constant 0 : i32
    return %arg0, %c0_i32, %c0_i32_0 : i32, i32, i32
  }
  func.func @transform_3(%arg0: i32, %arg1: i32) -> (i32, i32, i32) {
    %c0_i32 = arith.constant 0 : i32
    %c0_i32_0 = arith.constant 0 : i32
    %c0_i32_1 = arith.constant 0 : i32
    return %arg0, %c0_i32, %c0_i32_0 : i32, i32, i32
  }
  func.func @transform_4(%arg0: i32, %arg1: i32) -> (i32, i32, i32) {
    %c0_i32 = arith.constant 0 : i32
    %c0_i32_0 = arith.constant 0 : i32
    %c0_i32_1 = arith.constant 0 : i32
    return %arg0, %c0_i32, %c0_i32_0 : i32, i32, i32
  }
  func.func @transform_5(%arg0: i32, %arg1: i32) -> (i32, i32) {
    %c2_i32 = arith.constant 2 : i32
    %0 = arith.muli %c2_i32, %arg1 : i32
    %c0_i32 = arith.constant 0 : i32
    %1 = arith.subi %c0_i32, %0 : i32
    %2 = arith.muli %arg0, %1 : i32
    %3 = arith.addi %arg1, %2 : i32
    %c0_i32_0 = arith.constant 0 : i32
    return %3, %arg0 : i32, i32
  }
}

module attributes {stable_mosaic.version = 11 : i64} {
  func.func @_gru_chunk_kernel(%arg0: i32, %arg1: i32, %arg2: memref<64x256xf32, #tpu.memory_space<vmem>>, %arg3: memref<1x256x384xf32, #tpu.memory_space<vmem>>, %arg4: memref<1x128x384xf32, #tpu.memory_space<vmem>>, %arg5: memref<1x1x384xf32, #tpu.memory_space<vmem>>, %arg6: memref<1x1x128xf32, #tpu.memory_space<vmem>>, %arg7: memref<64x128xf32, #tpu.memory_space<vmem>>, %arg8: memref<64x384xf32, #tpu.memory_space<vmem>>, %arg9: memref<8x128xf32, #tpu.memory_space<vmem>>) attributes {dimension_semantics = [#tpu.dimension_semantics<parallel>, #tpu.dimension_semantics<arbitrary>], iteration_bounds = array<i64: 2, 1>, scalar_prefetch = 0 : i64, scratch_operands = 2 : i64, tpu.core_type = #tpu.core_type<tc>, window_params = [{transform_indices = @transform_0, window_bounds = array<i64: 64, 256>}, {transform_indices = @transform_1, window_bounds = array<i64: 1, 256, 384>}, {transform_indices = @transform_2, window_bounds = array<i64: 1, 128, 384>}, {transform_indices = @transform_3, window_bounds = array<i64: 1, 1, 384>}, {transform_indices = @transform_4, window_bounds = array<i64: 1, 1, 128>}, {transform_indices = @transform_5, window_bounds = array<i64: 64, 128>}]} {
    %c0_i32 = arith.constant 0 : i32
    %0 = arith.cmpi eq, %arg1, %c0_i32 : i32
    %1 = arith.extui %0 : i1 to i32
    %c0_i32_0 = arith.constant 0 : i32
    %2 = arith.cmpi ne, %1, %c0_i32_0 : i32
    scf.if %2 {
      %cst_93 = arith.constant 0.000000e+00 : f32
      %330 = vector.broadcast %cst_93 : f32 to vector<8x128xf32>
      %c0_94 = arith.constant 0 : index
      %c0_95 = arith.constant 0 : index
      %331 = vector.load %arg9[%c0_94, %c0_95] : memref<8x128xf32, #tpu.memory_space<vmem>>, vector<8x128xf32>
      tpu.vector_store %arg9[%c0_94, %c0_95], %330 {strides = array<i32>} : memref<8x128xf32, #tpu.memory_space<vmem>>, vector<8x128xf32>,
    } else {
    }
    %c0 = arith.constant 0 : index
    %c0_1 = arith.constant 0 : index
    %3 = vector.load %arg2[%c0, %c0_1] : memref<64x256xf32, #tpu.memory_space<vmem>>, vector<64x256xf32>
    %c0_2 = arith.constant 0 : index
    %c0_3 = arith.constant 0 : index
    %c0_4 = arith.constant 0 : index
    %4 = vector.load %arg3[%c0_2, %c0_3, %c0_4] : memref<1x256x384xf32, #tpu.memory_space<vmem>>, vector<1x256x384xf32>
    %5 = vector.shape_cast %4 : vector<1x256x384xf32> to vector<256x384xf32>
    %cst = arith.constant dense<0.000000e+00> : vector<64x384xf32>
    %6 = tpu.matmul %3, %5, %cst {dimension_numbers = #tpu.dot_dimension_numbers<[1], [0], [0], [1], [0, 0, 1, 1], [], []>} : vector<64x256xf32>, vector<256x384xf32>, vector<64x384xf32> -> vector<64x384xf32>
    %c0_5 = arith.constant 0 : index
    %c0_6 = arith.constant 0 : index
    %c0_7 = arith.constant 0 : index
    %7 = vector.load %arg5[%c0_5, %c0_6, %c0_7] : memref<1x1x384xf32, #tpu.memory_space<vmem>>, vector<1x1x384xf32>
    %8 = vector.shape_cast %7 : vector<1x1x384xf32> to vector<1x384xf32>
    %9 = vector.broadcast %8 : vector<1x384xf32> to vector<64x384xf32>
    %10 = arith.addf %6, %9 : vector<64x384xf32>
    %c0_8 = arith.constant 0 : index
    %c0_9 = arith.constant 0 : index
    %11 = vector.load %arg8[%c0_8, %c0_9] : memref<64x384xf32, #tpu.memory_space<vmem>>, vector<64x384xf32>
    tpu.vector_store %arg8[%c0_8, %c0_9], %10 {strides = array<i32>} : memref<64x384xf32, #tpu.memory_space<vmem>>, vector<64x384xf32>,
    %c0_10 = arith.constant 0 : index
    %c0_11 = arith.constant 0 : index
    %c0_12 = arith.constant 0 : index
    %12 = vector.load %arg4[%c0_10, %c0_11, %c0_12] : memref<1x128x384xf32, #tpu.memory_space<vmem>>, vector<1x128x384xf32>
    %13 = vector.shape_cast %12 : vector<1x128x384xf32> to vector<128x384xf32>
    %c0_13 = arith.constant 0 : index
    %c0_14 = arith.constant 0 : index
    %c0_15 = arith.constant 0 : index
    %14 = vector.load %arg6[%c0_13, %c0_14, %c0_15] : memref<1x1x128xf32, #tpu.memory_space<vmem>>, vector<1x1x128xf32>
    %15 = vector.shape_cast %14 : vector<1x1x128xf32> to vector<1x128xf32>
    %c0_16 = arith.constant 0 : index
    %c0_17 = arith.constant 0 : index
    %16 = vector.load %arg9[%c0_16, %c0_17] : memref<8x128xf32, #tpu.memory_space<vmem>>, vector<8x128xf32>
    %c0_i32_18 = arith.constant 0 : i32
    %c2_i32 = arith.constant 2 : i32
    %17 = arith.muli %c2_i32, %c0_i32_18 : i32
    %c7_i32 = arith.constant 7 : i32
    %18 = arith.subi %c7_i32, %17 : i32
    %19 = arith.muli %arg0, %18 : i32
    %20 = arith.addi %c0_i32_18, %19 : i32
    %c8_i32 = arith.constant 8 : i32
    %21 = arith.muli %20, %c8_i32 : i32
    %22 = tpu.assume_multiple %21, 8 : i32
    %23 = arith.index_cast %22 : i32 to index
    %c0_19 = arith.constant 0 : index
    %24 = vector.load %arg8[%23, %c0_19] : memref<64x384xf32, #tpu.memory_space<vmem>>, vector<8x384xf32>
    %cst_20 = arith.constant dense<0.000000e+00> : vector<8x384xf32>
    %25 = tpu.matmul %16, %13, %cst_20 {dimension_numbers = #tpu.dot_dimension_numbers<[1], [0], [0], [1], [0, 0, 1, 1], [], []>} : vector<8x128xf32>, vector<128x384xf32>, vector<8x384xf32> -> vector<8x384xf32>
    %26 = vector.extract_strided_slice %24 {offsets = [0, 0], sizes = [8, 128], strides = [1, 1]} : vector<8x384xf32> to vector<8x128xf32>
    %27 = vector.extract_strided_slice %25 {offsets = [0, 0], sizes = [8, 128], strides = [1, 1]} : vector<8x384xf32> to vector<8x128xf32>
    %28 = arith.addf %26, %27 : vector<8x128xf32>
    %29 = arith.negf %28 : vector<8x128xf32>
    %30 = math.exp %29 : vector<8x128xf32>
    %cst_21 = arith.constant 1.000000e+00 : f32
    %31 = vector.broadcast %cst_21 : f32 to vector<8x128xf32>
    %32 = arith.addf %31, %30 : vector<8x128xf32>
    %33 = arith.divf %31, %32 : vector<8x128xf32>
    %34 = vector.extract_strided_slice %24 {offsets = [0, 128], sizes = [8, 128], strides = [1, 1]} : vector<8x384xf32> to vector<8x128xf32>
    %35 = vector.extract_strided_slice %25 {offsets = [0, 128], sizes = [8, 128], strides = [1, 1]} : vector<8x384xf32> to vector<8x128xf32>
    %36 = arith.addf %34, %35 : vector<8x128xf32>
    %37 = arith.negf %36 : vector<8x128xf32>
    %38 = math.exp %37 : vector<8x128xf32>
    %cst_22 = arith.constant 1.000000e+00 : f32
    %39 = vector.broadcast %cst_22 : f32 to vector<8x128xf32>
    %40 = arith.addf %39, %38 : vector<8x128xf32>
    %41 = arith.divf %39, %40 : vector<8x128xf32>
    %42 = vector.extract_strided_slice %24 {offsets = [0, 256], sizes = [8, 128], strides = [1, 1]} : vector<8x384xf32> to vector<8x128xf32>
    %43 = vector.extract_strided_slice %25 {offsets = [0, 256], sizes = [8, 128], strides = [1, 1]} : vector<8x384xf32> to vector<8x128xf32>
    %44 = vector.broadcast %15 : vector<1x128xf32> to vector<8x128xf32>
    %45 = arith.addf %43, %44 : vector<8x128xf32>
    %46 = arith.mulf %33, %45 : vector<8x128xf32>
    %47 = arith.addf %42, %46 : vector<8x128xf32>
    %48 = math.tanh %47 : vector<8x128xf32>
    %cst_23 = arith.constant 1.000000e+00 : f32
    %49 = vector.broadcast %cst_23 : f32 to vector<8x128xf32>
    %50 = arith.subf %49, %41 : vector<8x128xf32>
    %51 = arith.mulf %50, %48 : vector<8x128xf32>
    %52 = arith.mulf %41, %16 : vector<8x128xf32>
    %53 = arith.addf %51, %52 : vector<8x128xf32>
    %54 = arith.index_cast %22 : i32 to index
    %c0_24 = arith.constant 0 : index
    %55 = vector.load %arg7[%54, %c0_24] : memref<64x128xf32, #tpu.memory_space<vmem>>, vector<8x128xf32>
    tpu.vector_store %arg7[%54, %c0_24], %53 {strides = array<i32>} : memref<64x128xf32, #tpu.memory_space<vmem>>, vector<8x128xf32>,
    %c1_i32 = arith.constant 1 : i32
    %c2_i32_25 = arith.constant 2 : i32
    %56 = arith.muli %c2_i32_25, %c1_i32 : i32
    %c7_i32_26 = arith.constant 7 : i32
    %57 = arith.subi %c7_i32_26, %56 : i32
    %58 = arith.muli %arg0, %57 : i32
    %59 = arith.addi %c1_i32, %58 : i32
    %c8_i32_27 = arith.constant 8 : i32
    %60 = arith.muli %59, %c8_i32_27 : i32
    %61 = tpu.assume_multiple %60, 8 : i32
    %62 = arith.index_cast %61 : i32 to index
    %c0_28 = arith.constant 0 : index
    %63 = vector.load %arg8[%62, %c0_28] : memref<64x384xf32, #tpu.memory_space<vmem>>, vector<8x384xf32>
    %cst_29 = arith.constant dense<0.000000e+00> : vector<8x384xf32>
    %64 = tpu.matmul %53, %13, %cst_29 {dimension_numbers = #tpu.dot_dimension_numbers<[1], [0], [0], [1], [0, 0, 1, 1], [], []>} : vector<8x128xf32>, vector<128x384xf32>, vector<8x384xf32> -> vector<8x384xf32>
    %65 = vector.extract_strided_slice %63 {offsets = [0, 0], sizes = [8, 128], strides = [1, 1]} : vector<8x384xf32> to vector<8x128xf32>
    %66 = vector.extract_strided_slice %64 {offsets = [0, 0], sizes = [8, 128], strides = [1, 1]} : vector<8x384xf32> to vector<8x128xf32>
    %67 = arith.addf %65, %66 : vector<8x128xf32>
    %68 = arith.negf %67 : vector<8x128xf32>
    %69 = math.exp %68 : vector<8x128xf32>
    %cst_30 = arith.constant 1.000000e+00 : f32
    %70 = vector.broadcast %cst_30 : f32 to vector<8x128xf32>
    %71 = arith.addf %70, %69 : vector<8x128xf32>
    %72 = arith.divf %70, %71 : vector<8x128xf32>
    %73 = vector.extract_strided_slice %63 {offsets = [0, 128], sizes = [8, 128], strides = [1, 1]} : vector<8x384xf32> to vector<8x128xf32>
    %74 = vector.extract_strided_slice %64 {offsets = [0, 128], sizes = [8, 128], strides = [1, 1]} : vector<8x384xf32> to vector<8x128xf32>
    %75 = arith.addf %73, %74 : vector<8x128xf32>
    %76 = arith.negf %75 : vector<8x128xf32>
    %77 = math.exp %76 : vector<8x128xf32>
    %cst_31 = arith.constant 1.000000e+00 : f32
    %78 = vector.broadcast %cst_31 : f32 to vector<8x128xf32>
    %79 = arith.addf %78, %77 : vector<8x128xf32>
    %80 = arith.divf %78, %79 : vector<8x128xf32>
    %81 = vector.extract_strided_slice %63 {offsets = [0, 256], sizes = [8, 128], strides = [1, 1]} : vector<8x384xf32> to vector<8x128xf32>
    %82 = vector.extract_strided_slice %64 {offsets = [0, 256], sizes = [8, 128], strides = [1, 1]} : vector<8x384xf32> to vector<8x128xf32>
    %83 = vector.broadcast %15 : vector<1x128xf32> to vector<8x128xf32>
    %84 = arith.addf %82, %83 : vector<8x128xf32>
    %85 = arith.mulf %72, %84 : vector<8x128xf32>
    %86 = arith.addf %81, %85 : vector<8x128xf32>
    %87 = math.tanh %86 : vector<8x128xf32>
    %cst_32 = arith.constant 1.000000e+00 : f32
    %88 = vector.broadcast %cst_32 : f32 to vector<8x128xf32>
    %89 = arith.subf %88, %80 : vector<8x128xf32>
    %90 = arith.mulf %89, %87 : vector<8x128xf32>
    %91 = arith.mulf %80, %53 : vector<8x128xf32>
    %92 = arith.addf %90, %91 : vector<8x128xf32>
    %93 = arith.index_cast %61 : i32 to index
    %c0_33 = arith.constant 0 : index
    %94 = vector.load %arg7[%93, %c0_33] : memref<64x128xf32, #tpu.memory_space<vmem>>, vector<8x128xf32>
    tpu.vector_store %arg7[%93, %c0_33], %92 {strides = array<i32>} : memref<64x128xf32, #tpu.memory_space<vmem>>, vector<8x128xf32>,
    %c2_i32_34 = arith.constant 2 : i32
    %c2_i32_35 = arith.constant 2 : i32
    %95 = arith.muli %c2_i32_35, %c2_i32_34 : i32
    %c7_i32_36 = arith.constant 7 : i32
    %96 = arith.subi %c7_i32_36, %95 : i32
    %97 = arith.muli %arg0, %96 : i32
    %98 = arith.addi %c2_i32_34, %97 : i32
    %c8_i32_37 = arith.constant 8 : i32
    %99 = arith.muli %98, %c8_i32_37 : i32
    %100 = tpu.assume_multiple %99, 8 : i32
    %101 = arith.index_cast %100 : i32 to index
    %c0_38 = arith.constant 0 : index
    %102 = vector.load %arg8[%101, %c0_38] : memref<64x384xf32, #tpu.memory_space<vmem>>, vector<8x384xf32>
    %cst_39 = arith.constant dense<0.000000e+00> : vector<8x384xf32>
    %103 = tpu.matmul %92, %13, %cst_39 {dimension_numbers = #tpu.dot_dimension_numbers<[1], [0], [0], [1], [0, 0, 1, 1], [], []>} : vector<8x128xf32>, vector<128x384xf32>, vector<8x384xf32> -> vector<8x384xf32>
    %104 = vector.extract_strided_slice %102 {offsets = [0, 0], sizes = [8, 128], strides = [1, 1]} : vector<8x384xf32> to vector<8x128xf32>
    %105 = vector.extract_strided_slice %103 {offsets = [0, 0], sizes = [8, 128], strides = [1, 1]} : vector<8x384xf32> to vector<8x128xf32>
    %106 = arith.addf %104, %105 : vector<8x128xf32>
    %107 = arith.negf %106 : vector<8x128xf32>
    %108 = math.exp %107 : vector<8x128xf32>
    %cst_40 = arith.constant 1.000000e+00 : f32
    %109 = vector.broadcast %cst_40 : f32 to vector<8x128xf32>
    %110 = arith.addf %109, %108 : vector<8x128xf32>
    %111 = arith.divf %109, %110 : vector<8x128xf32>
    %112 = vector.extract_strided_slice %102 {offsets = [0, 128], sizes = [8, 128], strides = [1, 1]} : vector<8x384xf32> to vector<8x128xf32>
    %113 = vector.extract_strided_slice %103 {offsets = [0, 128], sizes = [8, 128], strides = [1, 1]} : vector<8x384xf32> to vector<8x128xf32>
    %114 = arith.addf %112, %113 : vector<8x128xf32>
    %115 = arith.negf %114 : vector<8x128xf32>
    %116 = math.exp %115 : vector<8x128xf32>
    %cst_41 = arith.constant 1.000000e+00 : f32
    %117 = vector.broadcast %cst_41 : f32 to vector<8x128xf32>
    %118 = arith.addf %117, %116 : vector<8x128xf32>
    %119 = arith.divf %117, %118 : vector<8x128xf32>
    %120 = vector.extract_strided_slice %102 {offsets = [0, 256], sizes = [8, 128], strides = [1, 1]} : vector<8x384xf32> to vector<8x128xf32>
    %121 = vector.extract_strided_slice %103 {offsets = [0, 256], sizes = [8, 128], strides = [1, 1]} : vector<8x384xf32> to vector<8x128xf32>
    %122 = vector.broadcast %15 : vector<1x128xf32> to vector<8x128xf32>
    %123 = arith.addf %121, %122 : vector<8x128xf32>
    %124 = arith.mulf %111, %123 : vector<8x128xf32>
    %125 = arith.addf %120, %124 : vector<8x128xf32>
    %126 = math.tanh %125 : vector<8x128xf32>
    %cst_42 = arith.constant 1.000000e+00 : f32
    %127 = vector.broadcast %cst_42 : f32 to vector<8x128xf32>
    %128 = arith.subf %127, %119 : vector<8x128xf32>
    %129 = arith.mulf %128, %126 : vector<8x128xf32>
    %130 = arith.mulf %119, %92 : vector<8x128xf32>
    %131 = arith.addf %129, %130 : vector<8x128xf32>
    %132 = arith.index_cast %100 : i32 to index
    %c0_43 = arith.constant 0 : index
    %133 = vector.load %arg7[%132, %c0_43] : memref<64x128xf32, #tpu.memory_space<vmem>>, vector<8x128xf32>
    tpu.vector_store %arg7[%132, %c0_43], %131 {strides = array<i32>} : memref<64x128xf32, #tpu.memory_space<vmem>>, vector<8x128xf32>,
    %c3_i32 = arith.constant 3 : i32
    %c2_i32_44 = arith.constant 2 : i32
    %134 = arith.muli %c2_i32_44, %c3_i32 : i32
    %c7_i32_45 = arith.constant 7 : i32
    %135 = arith.subi %c7_i32_45, %134 : i32
    %136 = arith.muli %arg0, %135 : i32
    %137 = arith.addi %c3_i32, %136 : i32
    %c8_i32_46 = arith.constant 8 : i32
    %138 = arith.muli %137, %c8_i32_46 : i32
    %139 = tpu.assume_multiple %138, 8 : i32
    %140 = arith.index_cast %139 : i32 to index
    %c0_47 = arith.constant 0 : index
    %141 = vector.load %arg8[%140, %c0_47] : memref<64x384xf32, #tpu.memory_space<vmem>>, vector<8x384xf32>
    %cst_48 = arith.constant dense<0.000000e+00> : vector<8x384xf32>
    %142 = tpu.matmul %131, %13, %cst_48 {dimension_numbers = #tpu.dot_dimension_numbers<[1], [0], [0], [1], [0, 0, 1, 1], [], []>} : vector<8x128xf32>, vector<128x384xf32>, vector<8x384xf32> -> vector<8x384xf32>
    %143 = vector.extract_strided_slice %141 {offsets = [0, 0], sizes = [8, 128], strides = [1, 1]} : vector<8x384xf32> to vector<8x128xf32>
    %144 = vector.extract_strided_slice %142 {offsets = [0, 0], sizes = [8, 128], strides = [1, 1]} : vector<8x384xf32> to vector<8x128xf32>
    %145 = arith.addf %143, %144 : vector<8x128xf32>
    %146 = arith.negf %145 : vector<8x128xf32>
    %147 = math.exp %146 : vector<8x128xf32>
    %cst_49 = arith.constant 1.000000e+00 : f32
    %148 = vector.broadcast %cst_49 : f32 to vector<8x128xf32>
    %149 = arith.addf %148, %147 : vector<8x128xf32>
    %150 = arith.divf %148, %149 : vector<8x128xf32>
    %151 = vector.extract_strided_slice %141 {offsets = [0, 128], sizes = [8, 128], strides = [1, 1]} : vector<8x384xf32> to vector<8x128xf32>
    %152 = vector.extract_strided_slice %142 {offsets = [0, 128], sizes = [8, 128], strides = [1, 1]} : vector<8x384xf32> to vector<8x128xf32>
    %153 = arith.addf %151, %152 : vector<8x128xf32>
    %154 = arith.negf %153 : vector<8x128xf32>
    %155 = math.exp %154 : vector<8x128xf32>
    %cst_50 = arith.constant 1.000000e+00 : f32
    %156 = vector.broadcast %cst_50 : f32 to vector<8x128xf32>
    %157 = arith.addf %156, %155 : vector<8x128xf32>
    %158 = arith.divf %156, %157 : vector<8x128xf32>
    %159 = vector.extract_strided_slice %141 {offsets = [0, 256], sizes = [8, 128], strides = [1, 1]} : vector<8x384xf32> to vector<8x128xf32>
    %160 = vector.extract_strided_slice %142 {offsets = [0, 256], sizes = [8, 128], strides = [1, 1]} : vector<8x384xf32> to vector<8x128xf32>
    %161 = vector.broadcast %15 : vector<1x128xf32> to vector<8x128xf32>
    %162 = arith.addf %160, %161 : vector<8x128xf32>
    %163 = arith.mulf %150, %162 : vector<8x128xf32>
    %164 = arith.addf %159, %163 : vector<8x128xf32>
    %165 = math.tanh %164 : vector<8x128xf32>
    %cst_51 = arith.constant 1.000000e+00 : f32
    %166 = vector.broadcast %cst_51 : f32 to vector<8x128xf32>
    %167 = arith.subf %166, %158 : vector<8x128xf32>
    %168 = arith.mulf %167, %165 : vector<8x128xf32>
    %169 = arith.mulf %158, %131 : vector<8x128xf32>
    %170 = arith.addf %168, %169 : vector<8x128xf32>
    %171 = arith.index_cast %139 : i32 to index
    %c0_52 = arith.constant 0 : index
    %172 = vector.load %arg7[%171, %c0_52] : memref<64x128xf32, #tpu.memory_space<vmem>>, vector<8x128xf32>
    tpu.vector_store %arg7[%171, %c0_52], %170 {strides = array<i32>} : memref<64x128xf32, #tpu.memory_space<vmem>>, vector<8x128xf32>,
    %c4_i32 = arith.constant 4 : i32
    %c2_i32_53 = arith.constant 2 : i32
    %173 = arith.muli %c2_i32_53, %c4_i32 : i32
    %c7_i32_54 = arith.constant 7 : i32
    %174 = arith.subi %c7_i32_54, %173 : i32
    %175 = arith.muli %arg0, %174 : i32
    %176 = arith.addi %c4_i32, %175 : i32
    %c8_i32_55 = arith.constant 8 : i32
    %177 = arith.muli %176, %c8_i32_55 : i32
    %178 = tpu.assume_multiple %177, 8 : i32
    %179 = arith.index_cast %178 : i32 to index
    %c0_56 = arith.constant 0 : index
    %180 = vector.load %arg8[%179, %c0_56] : memref<64x384xf32, #tpu.memory_space<vmem>>, vector<8x384xf32>
    %cst_57 = arith.constant dense<0.000000e+00> : vector<8x384xf32>
    %181 = tpu.matmul %170, %13, %cst_57 {dimension_numbers = #tpu.dot_dimension_numbers<[1], [0], [0], [1], [0, 0, 1, 1], [], []>} : vector<8x128xf32>, vector<128x384xf32>, vector<8x384xf32> -> vector<8x384xf32>
    %182 = vector.extract_strided_slice %180 {offsets = [0, 0], sizes = [8, 128], strides = [1, 1]} : vector<8x384xf32> to vector<8x128xf32>
    %183 = vector.extract_strided_slice %181 {offsets = [0, 0], sizes = [8, 128], strides = [1, 1]} : vector<8x384xf32> to vector<8x128xf32>
    %184 = arith.addf %182, %183 : vector<8x128xf32>
    %185 = arith.negf %184 : vector<8x128xf32>
    %186 = math.exp %185 : vector<8x128xf32>
    %cst_58 = arith.constant 1.000000e+00 : f32
    %187 = vector.broadcast %cst_58 : f32 to vector<8x128xf32>
    %188 = arith.addf %187, %186 : vector<8x128xf32>
    %189 = arith.divf %187, %188 : vector<8x128xf32>
    %190 = vector.extract_strided_slice %180 {offsets = [0, 128], sizes = [8, 128], strides = [1, 1]} : vector<8x384xf32> to vector<8x128xf32>
    %191 = vector.extract_strided_slice %181 {offsets = [0, 128], sizes = [8, 128], strides = [1, 1]} : vector<8x384xf32> to vector<8x128xf32>
    %192 = arith.addf %190, %191 : vector<8x128xf32>
    %193 = arith.negf %192 : vector<8x128xf32>
    %194 = math.exp %193 : vector<8x128xf32>
    %cst_59 = arith.constant 1.000000e+00 : f32
    %195 = vector.broadcast %cst_59 : f32 to vector<8x128xf32>
    %196 = arith.addf %195, %194 : vector<8x128xf32>
    %197 = arith.divf %195, %196 : vector<8x128xf32>
    %198 = vector.extract_strided_slice %180 {offsets = [0, 256], sizes = [8, 128], strides = [1, 1]} : vector<8x384xf32> to vector<8x128xf32>
    %199 = vector.extract_strided_slice %181 {offsets = [0, 256], sizes = [8, 128], strides = [1, 1]} : vector<8x384xf32> to vector<8x128xf32>
    %200 = vector.broadcast %15 : vector<1x128xf32> to vector<8x128xf32>
    %201 = arith.addf %199, %200 : vector<8x128xf32>
    %202 = arith.mulf %189, %201 : vector<8x128xf32>
    %203 = arith.addf %198, %202 : vector<8x128xf32>
    %204 = math.tanh %203 : vector<8x128xf32>
    %cst_60 = arith.constant 1.000000e+00 : f32
    %205 = vector.broadcast %cst_60 : f32 to vector<8x128xf32>
    %206 = arith.subf %205, %197 : vector<8x128xf32>
    %207 = arith.mulf %206, %204 : vector<8x128xf32>
    %208 = arith.mulf %197, %170 : vector<8x128xf32>
    %209 = arith.addf %207, %208 : vector<8x128xf32>
    %210 = arith.index_cast %178 : i32 to index
    %c0_61 = arith.constant 0 : index
    %211 = vector.load %arg7[%210, %c0_61] : memref<64x128xf32, #tpu.memory_space<vmem>>, vector<8x128xf32>
    tpu.vector_store %arg7[%210, %c0_61], %209 {strides = array<i32>} : memref<64x128xf32, #tpu.memory_space<vmem>>, vector<8x128xf32>,
    %c5_i32 = arith.constant 5 : i32
    %c2_i32_62 = arith.constant 2 : i32
    %212 = arith.muli %c2_i32_62, %c5_i32 : i32
    %c7_i32_63 = arith.constant 7 : i32
    %213 = arith.subi %c7_i32_63, %212 : i32
    %214 = arith.muli %arg0, %213 : i32
    %215 = arith.addi %c5_i32, %214 : i32
    %c8_i32_64 = arith.constant 8 : i32
    %216 = arith.muli %215, %c8_i32_64 : i32
    %217 = tpu.assume_multiple %216, 8 : i32
    %218 = arith.index_cast %217 : i32 to index
    %c0_65 = arith.constant 0 : index
    %219 = vector.load %arg8[%218, %c0_65] : memref<64x384xf32, #tpu.memory_space<vmem>>, vector<8x384xf32>
    %cst_66 = arith.constant dense<0.000000e+00> : vector<8x384xf32>
    %220 = tpu.matmul %209, %13, %cst_66 {dimension_numbers = #tpu.dot_dimension_numbers<[1], [0], [0], [1], [0, 0, 1, 1], [], []>} : vector<8x128xf32>, vector<128x384xf32>, vector<8x384xf32> -> vector<8x384xf32>
    %221 = vector.extract_strided_slice %219 {offsets = [0, 0], sizes = [8, 128], strides = [1, 1]} : vector<8x384xf32> to vector<8x128xf32>
    %222 = vector.extract_strided_slice %220 {offsets = [0, 0], sizes = [8, 128], strides = [1, 1]} : vector<8x384xf32> to vector<8x128xf32>
    %223 = arith.addf %221, %222 : vector<8x128xf32>
    %224 = arith.negf %223 : vector<8x128xf32>
    %225 = math.exp %224 : vector<8x128xf32>
    %cst_67 = arith.constant 1.000000e+00 : f32
    %226 = vector.broadcast %cst_67 : f32 to vector<8x128xf32>
    %227 = arith.addf %226, %225 : vector<8x128xf32>
    %228 = arith.divf %226, %227 : vector<8x128xf32>
    %229 = vector.extract_strided_slice %219 {offsets = [0, 128], sizes = [8, 128], strides = [1, 1]} : vector<8x384xf32> to vector<8x128xf32>
    %230 = vector.extract_strided_slice %220 {offsets = [0, 128], sizes = [8, 128], strides = [1, 1]} : vector<8x384xf32> to vector<8x128xf32>
    %231 = arith.addf %229, %230 : vector<8x128xf32>
    %232 = arith.negf %231 : vector<8x128xf32>
    %233 = math.exp %232 : vector<8x128xf32>
    %cst_68 = arith.constant 1.000000e+00 : f32
    %234 = vector.broadcast %cst_68 : f32 to vector<8x128xf32>
    %235 = arith.addf %234, %233 : vector<8x128xf32>
    %236 = arith.divf %234, %235 : vector<8x128xf32>
    %237 = vector.extract_strided_slice %219 {offsets = [0, 256], sizes = [8, 128], strides = [1, 1]} : vector<8x384xf32> to vector<8x128xf32>
    %238 = vector.extract_strided_slice %220 {offsets = [0, 256], sizes = [8, 128], strides = [1, 1]} : vector<8x384xf32> to vector<8x128xf32>
    %239 = vector.broadcast %15 : vector<1x128xf32> to vector<8x128xf32>
    %240 = arith.addf %238, %239 : vector<8x128xf32>
    %241 = arith.mulf %228, %240 : vector<8x128xf32>
    %242 = arith.addf %237, %241 : vector<8x128xf32>
    %243 = math.tanh %242 : vector<8x128xf32>
    %cst_69 = arith.constant 1.000000e+00 : f32
    %244 = vector.broadcast %cst_69 : f32 to vector<8x128xf32>
    %245 = arith.subf %244, %236 : vector<8x128xf32>
    %246 = arith.mulf %245, %243 : vector<8x128xf32>
    %247 = arith.mulf %236, %209 : vector<8x128xf32>
    %248 = arith.addf %246, %247 : vector<8x128xf32>
    %249 = arith.index_cast %217 : i32 to index
    %c0_70 = arith.constant 0 : index
    %250 = vector.load %arg7[%249, %c0_70] : memref<64x128xf32, #tpu.memory_space<vmem>>, vector<8x128xf32>
    tpu.vector_store %arg7[%249, %c0_70], %248 {strides = array<i32>} : memref<64x128xf32, #tpu.memory_space<vmem>>, vector<8x128xf32>,
    %c6_i32 = arith.constant 6 : i32
    %c2_i32_71 = arith.constant 2 : i32
    %251 = arith.muli %c2_i32_71, %c6_i32 : i32
    %c7_i32_72 = arith.constant 7 : i32
    %252 = arith.subi %c7_i32_72, %251 : i32
    %253 = arith.muli %arg0, %252 : i32
    %254 = arith.addi %c6_i32, %253 : i32
    %c8_i32_73 = arith.constant 8 : i32
    %255 = arith.muli %254, %c8_i32_73 : i32
    %256 = tpu.assume_multiple %255, 8 : i32
    %257 = arith.index_cast %256 : i32 to index
    %c0_74 = arith.constant 0 : index
    %258 = vector.load %arg8[%257, %c0_74] : memref<64x384xf32, #tpu.memory_space<vmem>>, vector<8x384xf32>
    %cst_75 = arith.constant dense<0.000000e+00> : vector<8x384xf32>
    %259 = tpu.matmul %248, %13, %cst_75 {dimension_numbers = #tpu.dot_dimension_numbers<[1], [0], [0], [1], [0, 0, 1, 1], [], []>} : vector<8x128xf32>, vector<128x384xf32>, vector<8x384xf32> -> vector<8x384xf32>
    %260 = vector.extract_strided_slice %258 {offsets = [0, 0], sizes = [8, 128], strides = [1, 1]} : vector<8x384xf32> to vector<8x128xf32>
    %261 = vector.extract_strided_slice %259 {offsets = [0, 0], sizes = [8, 128], strides = [1, 1]} : vector<8x384xf32> to vector<8x128xf32>
    %262 = arith.addf %260, %261 : vector<8x128xf32>
    %263 = arith.negf %262 : vector<8x128xf32>
    %264 = math.exp %263 : vector<8x128xf32>
    %cst_76 = arith.constant 1.000000e+00 : f32
    %265 = vector.broadcast %cst_76 : f32 to vector<8x128xf32>
    %266 = arith.addf %265, %264 : vector<8x128xf32>
    %267 = arith.divf %265, %266 : vector<8x128xf32>
    %268 = vector.extract_strided_slice %258 {offsets = [0, 128], sizes = [8, 128], strides = [1, 1]} : vector<8x384xf32> to vector<8x128xf32>
    %269 = vector.extract_strided_slice %259 {offsets = [0, 128], sizes = [8, 128], strides = [1, 1]} : vector<8x384xf32> to vector<8x128xf32>
    %270 = arith.addf %268, %269 : vector<8x128xf32>
    %271 = arith.negf %270 : vector<8x128xf32>
    %272 = math.exp %271 : vector<8x128xf32>
    %cst_77 = arith.constant 1.000000e+00 : f32
    %273 = vector.broadcast %cst_77 : f32 to vector<8x128xf32>
    %274 = arith.addf %273, %272 : vector<8x128xf32>
    %275 = arith.divf %273, %274 : vector<8x128xf32>
    %276 = vector.extract_strided_slice %258 {offsets = [0, 256], sizes = [8, 128], strides = [1, 1]} : vector<8x384xf32> to vector<8x128xf32>
    %277 = vector.extract_strided_slice %259 {offsets = [0, 256], sizes = [8, 128], strides = [1, 1]} : vector<8x384xf32> to vector<8x128xf32>
    %278 = vector.broadcast %15 : vector<1x128xf32> to vector<8x128xf32>
    %279 = arith.addf %277, %278 : vector<8x128xf32>
    %280 = arith.mulf %267, %279 : vector<8x128xf32>
    %281 = arith.addf %276, %280 : vector<8x128xf32>
    %282 = math.tanh %281 : vector<8x128xf32>
    %cst_78 = arith.constant 1.000000e+00 : f32
    %283 = vector.broadcast %cst_78 : f32 to vector<8x128xf32>
    %284 = arith.subf %283, %275 : vector<8x128xf32>
    %285 = arith.mulf %284, %282 : vector<8x128xf32>
    %286 = arith.mulf %275, %248 : vector<8x128xf32>
    %287 = arith.addf %285, %286 : vector<8x128xf32>
    %288 = arith.index_cast %256 : i32 to index
    %c0_79 = arith.constant 0 : index
    %289 = vector.load %arg7[%288, %c0_79] : memref<64x128xf32, #tpu.memory_space<vmem>>, vector<8x128xf32>
    tpu.vector_store %arg7[%288, %c0_79], %287 {strides = array<i32>} : memref<64x128xf32, #tpu.memory_space<vmem>>, vector<8x128xf32>,
    %c7_i32_80 = arith.constant 7 : i32
    %c2_i32_81 = arith.constant 2 : i32
    %290 = arith.muli %c2_i32_81, %c7_i32_80 : i32
    %c7_i32_82 = arith.constant 7 : i32
    %291 = arith.subi %c7_i32_82, %290 : i32
    %292 = arith.muli %arg0, %291 : i32
    %293 = arith.addi %c7_i32_80, %292 : i32
    %c8_i32_83 = arith.constant 8 : i32
    %294 = arith.muli %293, %c8_i32_83 : i32
    %295 = tpu.assume_multiple %294, 8 : i32
    %296 = arith.index_cast %295 : i32 to index
    %c0_84 = arith.constant 0 : index
    %297 = vector.load %arg8[%296, %c0_84] : memref<64x384xf32, #tpu.memory_space<vmem>>, vector<8x384xf32>
    %cst_85 = arith.constant dense<0.000000e+00> : vector<8x384xf32>
    %298 = tpu.matmul %287, %13, %cst_85 {dimension_numbers = #tpu.dot_dimension_numbers<[1], [0], [0], [1], [0, 0, 1, 1], [], []>} : vector<8x128xf32>, vector<128x384xf32>, vector<8x384xf32> -> vector<8x384xf32>
    %299 = vector.extract_strided_slice %297 {offsets = [0, 0], sizes = [8, 128], strides = [1, 1]} : vector<8x384xf32> to vector<8x128xf32>
    %300 = vector.extract_strided_slice %298 {offsets = [0, 0], sizes = [8, 128], strides = [1, 1]} : vector<8x384xf32> to vector<8x128xf32>
    %301 = arith.addf %299, %300 : vector<8x128xf32>
    %302 = arith.negf %301 : vector<8x128xf32>
    %303 = math.exp %302 : vector<8x128xf32>
    %cst_86 = arith.constant 1.000000e+00 : f32
    %304 = vector.broadcast %cst_86 : f32 to vector<8x128xf32>
    %305 = arith.addf %304, %303 : vector<8x128xf32>
    %306 = arith.divf %304, %305 : vector<8x128xf32>
    %307 = vector.extract_strided_slice %297 {offsets = [0, 128], sizes = [8, 128], strides = [1, 1]} : vector<8x384xf32> to vector<8x128xf32>
    %308 = vector.extract_strided_slice %298 {offsets = [0, 128], sizes = [8, 128], strides = [1, 1]} : vector<8x384xf32> to vector<8x128xf32>
    %309 = arith.addf %307, %308 : vector<8x128xf32>
    %310 = arith.negf %309 : vector<8x128xf32>
    %311 = math.exp %310 : vector<8x128xf32>
    %cst_87 = arith.constant 1.000000e+00 : f32
    %312 = vector.broadcast %cst_87 : f32 to vector<8x128xf32>
    %313 = arith.addf %312, %311 : vector<8x128xf32>
    %314 = arith.divf %312, %313 : vector<8x128xf32>
    %315 = vector.extract_strided_slice %297 {offsets = [0, 256], sizes = [8, 128], strides = [1, 1]} : vector<8x384xf32> to vector<8x128xf32>
    %316 = vector.extract_strided_slice %298 {offsets = [0, 256], sizes = [8, 128], strides = [1, 1]} : vector<8x384xf32> to vector<8x128xf32>
    %317 = vector.broadcast %15 : vector<1x128xf32> to vector<8x128xf32>
    %318 = arith.addf %316, %317 : vector<8x128xf32>
    %319 = arith.mulf %306, %318 : vector<8x128xf32>
    %320 = arith.addf %315, %319 : vector<8x128xf32>
    %321 = math.tanh %320 : vector<8x128xf32>
    %cst_88 = arith.constant 1.000000e+00 : f32
    %322 = vector.broadcast %cst_88 : f32 to vector<8x128xf32>
    %323 = arith.subf %322, %314 : vector<8x128xf32>
    %324 = arith.mulf %323, %321 : vector<8x128xf32>
    %325 = arith.mulf %314, %287 : vector<8x128xf32>
    %326 = arith.addf %324, %325 : vector<8x128xf32>
    %327 = arith.index_cast %295 : i32 to index
    %c0_89 = arith.constant 0 : index
    %328 = vector.load %arg7[%327, %c0_89] : memref<64x128xf32, #tpu.memory_space<vmem>>, vector<8x128xf32>
    tpu.vector_store %arg7[%327, %c0_89], %326 {strides = array<i32>} : memref<64x128xf32, #tpu.memory_space<vmem>>, vector<8x128xf32>,
    %c8_i32_90 = arith.constant 8 : i32
    %c0_91 = arith.constant 0 : index
    %c0_92 = arith.constant 0 : index
    %329 = vector.load %arg9[%c0_91, %c0_92] : memref<8x128xf32, #tpu.memory_space<vmem>>, vector<8x128xf32>
    tpu.vector_store %arg9[%c0_91, %c0_92], %326 {strides = array<i32>} : memref<8x128xf32, #tpu.memory_space<vmem>>, vector<8x128xf32>,
    return
  }
  func.func @transform_0(%arg0: i32, %arg1: i32) -> (i32, i32) {
    %c2_i32 = arith.constant 2 : i32
    %0 = arith.muli %c2_i32, %arg1 : i32
    %c0_i32 = arith.constant 0 : i32
    %1 = arith.subi %c0_i32, %0 : i32
    %2 = arith.muli %arg0, %1 : i32
    %3 = arith.addi %arg1, %2 : i32
    %c0_i32_0 = arith.constant 0 : i32
    %c0_i32_1 = arith.constant 0 : i32
    return %3, %c0_i32_0 : i32, i32
  }
  func.func @transform_1(%arg0: i32, %arg1: i32) -> (i32, i32, i32) {
    %c0_i32 = arith.constant 0 : i32
    %c0_i32_0 = arith.constant 0 : i32
    %c0_i32_1 = arith.constant 0 : i32
    return %arg0, %c0_i32, %c0_i32_0 : i32, i32, i32
  }
  func.func @transform_2(%arg0: i32, %arg1: i32) -> (i32, i32, i32) {
    %c0_i32 = arith.constant 0 : i32
    %c0_i32_0 = arith.constant 0 : i32
    %c0_i32_1 = arith.constant 0 : i32
    return %arg0, %c0_i32, %c0_i32_0 : i32, i32, i32
  }
  func.func @transform_3(%arg0: i32, %arg1: i32) -> (i32, i32, i32) {
    %c0_i32 = arith.constant 0 : i32
    %c0_i32_0 = arith.constant 0 : i32
    %c0_i32_1 = arith.constant 0 : i32
    return %arg0, %c0_i32, %c0_i32_0 : i32, i32, i32
  }
  func.func @transform_4(%arg0: i32, %arg1: i32) -> (i32, i32, i32) {
    %c0_i32 = arith.constant 0 : i32
    %c0_i32_0 = arith.constant 0 : i32
    %c0_i32_1 = arith.constant 0 : i32
    return %arg0, %c0_i32, %c0_i32_0 : i32, i32, i32
  }
  func.func @transform_5(%arg0: i32, %arg1: i32) -> (i32, i32) {
    %c2_i32 = arith.constant 2 : i32
    %0 = arith.muli %c2_i32, %arg1 : i32
    %c0_i32 = arith.constant 0 : i32
    %1 = arith.subi %c0_i32, %0 : i32
    %2 = arith.muli %arg0, %1 : i32
    %3 = arith.addi %arg1, %2 : i32
    %c0_i32_0 = arith.constant 0 : i32
    return %3, %arg0 : i32, i32
  }
}

</mosaic_0001>

<llo_original>
// kernel: a_call__.2
$region0: #{a_call__.2}
  #allocation0 [shape = 'u32[]', space=smem, size = 0x4, offset = 0x4, fixed_abs, tag = 'smem constant byte address 0x4 - core index']
  #allocation1 [shape = 'u32[72,128]{1,0:T(1,128)}', space=vmem, size = 0x9000, scoped, tag = 'internal scratch']
  #allocation2 [shape = 'f32[64,384]{1,0:T(8,128)}', space=vmem, size = 0x18000, scoped, tag = 'scratch operand']
  #allocation3 [shape = 'f32[8,128]{1,0:T(8,128)}', space=vmem, size = 0x1000, scoped, tag = 'scratch operand']
  %s0 = inlined_call_operand.vmem [shape: f32[64,16], index: 0, kind: input, shape index: {}]
  %s1 = inlined_call_operand.vmem [shape: f32[2,16,384], index: 1, kind: input, shape index: {}]
  %s2 = inlined_call_operand.hbm [shape: f32[2,128,384], index: 2, kind: input, shape index: {}]
  %s3 = inlined_call_operand.vmem [shape: f32[2,1,384], index: 3, kind: input, shape index: {}]
  %s4 = inlined_call_operand.vmem [shape: f32[2,1,128], index: 4, kind: input, shape index: {}]
  %s5 = inlined_call_operand.vmem [shape: f32[64,256], index: 5, kind: output, shape index: {}]
  %s6 = sld [smem:[#allocation0]]
  $region95: #{a_call__.2} parent=0
    _
  %s8 = ssub.s32 1, %s6
  %s9 = scalar_select 0, %s8, %s6
  $region1: #{a_call__.2} parent=0
    #allocation4 [shape = 'u8[393216]{0}', space=vmem, size = 0x60000, scoped, tag = 'input window, operand 2']
    #allocation5 [shape = 's32[2]{0}', space=sflag, size = 0x8, scoped, tag = 'scoped memory for a_call__.2']
    #allocation6 [shape = 'u8[65536]{0}', space=vmem, size = 0x10000, scoped, tag = 'output window, operand 0']
    %10 = vsyncpa [#allocation5], 0
    %s11 = scalar_lea.sflag [#allocation5], 1
    %12 = vsyncpa %s11, 0
    loop: start=0, step=1, limit=4
    $region2: #{a_call__.2} parent=1 // loop_pre_header
      _
    $region3: #{a_call__.2} parent=1 // loop_header
      %s14 = sphi 0, %s18
      %p15 = scmp.ge.s32.totalorder %s14, 4
      %s21 = sphi 0, %s33
      %s22 = sphi 0, %s29
      %s23 = sphi 0, %s21
      %s24 = sphi 0, %s22
      %s25 = sphi 0, %s23
      %s26 = sphi 0, %s24
      %s44 = sphi 0, %s46
      %s47 = sphi 0, %s44
      %s48 = sphi 0, %s47
      %s64 = sphi 0, %s48
      %s70 = sphi 0, %s72
      %s73 = sphi 0, %s70
      %s74 = sphi 0, %s73
      %s90 = sphi 0, %s74
      %s96 = sphi 0, %s98
      %s99 = sphi 0, %s96
      %s100 = sphi 0, %s99
      %s116 = sphi 0, %s100
      %s122 = sphi 0, %s124
      %s125 = sphi 0, %s122
      %s126 = sphi 0, %s125
      %s142 = sphi 0, %s126
      %s148 = sphi 0, %s150
      %s151 = sphi 0, %s148
      %s152 = sphi 0, %s151
      %s168 = sphi 0, %s152
      %s184 = sphi 0, %s186
      %s187 = sphi 0, %s184
      %s188 = sphi 0, %s187
      %s204 = sphi 0, %s188
    $region4: #{a_call__.2} parent=1 // loop_header_branch
      %17 = sbr.rel (%p15) target = $region8
    $region5: #{a_call__.2} parent=1 // loop_body
      %s19 = ssub.s32 %s14, 1
      %s20 = ssub.s32 %s14, 2
      %s27 = sadd.s32 1, %s22
      %p28 = scmp.ge.s32.totalorder %s27, 1
      %s29 = scalar_select %p28, 0, %s27
      %s30 = sadd.s32 1, %s21
      %s31 = scalar_select %p28, %s30, %s21
      %p32 = scmp.ge.s32.totalorder %s31, 2
      %s33 = scalar_select %p32, 0, %s31
      %s34 = smul.u32 %s22, 2
      %s35 = ssub.s32 0, %s34
      %s36 = smul.u32 %s21, %s35
      %s37 = sadd.s32 %s22, %s36
      %s38 = smul.u32 %s29, 2
      %s39 = ssub.s32 0, %s38
      %s40 = smul.u32 %s33, %s39
      %s41 = sadd.s32 %s29, %s40
      %s42 = ssub.s32 %s37, %s41
      %p43 = scmp.eq.s32.totalorder %s42, 0
      %s45 = sadd.s32 %s44, 1
      %s46 = scalar_select %p43, %s44, %s45
      %p49 = pneg %p43
      %p50 = scmp.eq.s32.totalorder %s14, 1
      %p51 = por %p49, %p50
      %p52 = scmp.ne.s32.totalorder %s44, %s47
      %p53 = scmp.eq.s32.totalorder %s14, 0
      %p54 = por %p52, %p53
      %p55 = scmp.ne.s32.totalorder %s44, %s47
      %p56 = scmp.eq.s32.totalorder %s19, 1
      %p57 = por %p55, %p56
      %p58 = scmp.ne.s32.totalorder %s47, %s48
      %p59 = scmp.eq.s32.totalorder %s19, 0
      %p60 = por %p58, %p59
      %p61 = scmp.ne.s32.totalorder %s47, %s48
      %p62 = scmp.eq.s32.totalorder %s20, 1
      %p63 = por %p61, %p62
      %p65 = scmp.ne.s32.totalorder %s48, %s64
      %p66 = scmp.eq.s32.totalorder %s20, 0
      %p67 = por %p65, %p66
      %s68 = ssub.s32 %s21, %s33
      %p69 = scmp.eq.s32.totalorder %s68, 0
      %s71 = sadd.s32 %s70, 1
      %s72 = scalar_select %p69, %s70, %s71
      %p75 = pneg %p69
      %p76 = scmp.eq.s32.totalorder %s14, 1
      %p77 = por %p75, %p76
      %p78 = scmp.ne.s32.totalorder %s70, %s73
      %p79 = scmp.eq.s32.totalorder %s14, 0
      %p80 = por %p78, %p79
      %p81 = scmp.ne.s32.totalorder %s70, %s73
      %p82 = scmp.eq.s32.totalorder %s19, 1
      %p83 = por %p81, %p82
      %p84 = scmp.ne.s32.totalorder %s73, %s74
      %p85 = scmp.eq.s32.totalorder %s19, 0
      %p86 = por %p84, %p85
      %p87 = scmp.ne.s32.totalorder %s73, %s74
      %p88 = scmp.eq.s32.totalorder %s20, 1
      %p89 = por %p87, %p88
      %p91 = scmp.ne.s32.totalorder %s74, %s90
      %p92 = scmp.eq.s32.totalorder %s20, 0
      %p93 = por %p91, %p92
      %s94 = ssub.s32 %s21, %s33
      %p95 = scmp.eq.s32.totalorder %s94, 0
      %s97 = sadd.s32 %s96, 1
      %s98 = scalar_select %p95, %s96, %s97
      %p101 = pneg %p95
      %p102 = scmp.eq.s32.totalorder %s14, 1
      %p103 = por %p101, %p102
      %p104 = scmp.ne.s32.totalorder %s96, %s99
      %p105 = scmp.eq.s32.totalorder %s14, 0
      %p106 = por %p104, %p105
      %p107 = scmp.ne.s32.totalorder %s96, %s99
      %p108 = scmp.eq.s32.totalorder %s19, 1
      %p109 = por %p107, %p108
      %p110 = scmp.ne.s32.totalorder %s99, %s100
      %p111 = scmp.eq.s32.totalorder %s19, 0
      %p112 = por %p110, %p111
      %p113 = scmp.ne.s32.totalorder %s99, %s100
      %p114 = scmp.eq.s32.totalorder %s20, 1
      %p115 = por %p113, %p114
      %p117 = scmp.ne.s32.totalorder %s100, %s116
      %p118 = scmp.eq.s32.totalorder %s20, 0
      %p119 = por %p117, %p118
      %s120 = ssub.s32 %s21, %s33
      %p121 = scmp.eq.s32.totalorder %s120, 0
      %s123 = sadd.s32 %s122, 1
      %s124 = scalar_select %p121, %s122, %s123
      %p127 = pneg %p121
      %p128 = scmp.eq.s32.totalorder %s14, 1
      %p129 = por %p127, %p128
      %p130 = scmp.ne.s32.totalorder %s122, %s125
      %p131 = scmp.eq.s32.totalorder %s14, 0
      %p132 = por %p130, %p131
      %p133 = scmp.ne.s32.totalorder %s122, %s125
      %p134 = scmp.eq.s32.totalorder %s19, 1
      %p135 = por %p133, %p134
      %p136 = scmp.ne.s32.totalorder %s125, %s126
      %p137 = scmp.eq.s32.totalorder %s19, 0
      %p138 = por %p136, %p137
      %p139 = scmp.ne.s32.totalorder %s125, %s126
      %p140 = scmp.eq.s32.totalorder %s20, 1
      %p141 = por %p139, %p140
      %p143 = scmp.ne.s32.totalorder %s126, %s142
      %p144 = scmp.eq.s32.totalorder %s20, 0
      %p145 = por %p143, %p144
      %s146 = ssub.s32 %s21, %s33
      %p147 = scmp.eq.s32.totalorder %s146, 0
      %s149 = sadd.s32 %s148, 1
      %s150 = scalar_select %p147, %s148, %s149
      %p153 = pneg %p147
      %p154 = scmp.eq.s32.totalorder %s14, 1
      %p155 = por %p153, %p154
      %p156 = scmp.ne.s32.totalorder %s148, %s151
      %p157 = scmp.eq.s32.totalorder %s14, 0
      %p158 = por %p156, %p157
      %p159 = scmp.ne.s32.totalorder %s148, %s151
      %p160 = scmp.eq.s32.totalorder %s19, 1
      %p161 = por %p159, %p160
      %p162 = scmp.ne.s32.totalorder %s151, %s152
      %p163 = scmp.eq.s32.totalorder %s19, 0
      %p164 = por %p162, %p163
      %p165 = scmp.ne.s32.totalorder %s151, %s152
      %p166 = scmp.eq.s32.totalorder %s20, 1
      %p167 = por %p165, %p166
      %p169 = scmp.ne.s32.totalorder %s152, %s168
      %p170 = scmp.eq.s32.totalorder %s20, 0
      %p171 = por %p169, %p170
      %s172 = smul.u32 %s22, 2
      %s173 = ssub.s32 0, %s172
      %s174 = smul.u32 %s21, %s173
      %s175 = sadd.s32 %s22, %s174
      %s176 = smul.u32 %s29, 2
      %s177 = ssub.s32 0, %s176
      %s178 = smul.u32 %s33, %s177
      %s179 = sadd.s32 %s29, %s178
      %s180 = ssub.s32 %s175, %s179
      %s181 = ssub.s32 %s21, %s33
      %s182 = sor.u32 %s180, %s181
      %p183 = scmp.eq.s32.totalorder %s182, 0
      %s185 = sadd.s32 %s184, 1
      %s186 = scalar_select %p183, %s184, %s185
      %p189 = pneg %p183
      %p190 = scmp.eq.s32.totalorder %s14, 1
      %p191 = por %p189, %p190
      %p192 = scmp.ne.s32.totalorder %s184, %s187
      %p193 = scmp.eq.s32.totalorder %s14, 0
      %p194 = por %p192, %p193
      %p195 = scmp.ne.s32.totalorder %s184, %s187
      %p196 = scmp.eq.s32.totalorder %s19, 1
      %p197 = por %p195, %p196
      %p198 = scmp.ne.s32.totalorder %s187, %s188
      %p199 = scmp.eq.s32.totalorder %s19, 0
      %p200 = por %p198, %p199
      %p201 = scmp.ne.s32.totalorder %s187, %s188
      %p202 = scmp.eq.s32.totalorder %s20, 1
      %p203 = por %p201, %p202
      %p205 = scmp.ne.s32.totalorder %s188, %s204
      %p206 = scmp.eq.s32.totalorder %s20, 0
      %p207 = por %p205, %p206
      %p208 = scmp.le.s32.totalorder 1, %s14
      %p209 = scmp.lt.s32.totalorder %s14, 3
      %p210 = pnand %p208, %p209
      %p211 = pneg %p210
      // Predicated region
      $region9: #{a_call__.2} parent=5 // pred_check
        _
      $region10: #{a_call__.2} parent=5 // pred_check_branch
        %213 = sbr.rel (%p210) target = $region12
      $region11: #{a_call__.2} parent=5 // pred_region
        %s214 = ssub.s32 %s14, 1
      $region12: #{a_call__.2} parent=5 // pred_fallthru
        _
      %p215 = scmp.lt.s32.totalorder %s14, 2
      // Predicated region
      $region13: #{a_call__.2} parent=5 // pred_check
        %p216 = pneg %p215
      $region14: #{a_call__.2} parent=5 // pred_check_branch
        %218 = sbr.rel (%p216) target = $region16
      $region15: #{a_call__.2} parent=5 // pred_region
        // Predicated region
        $region17: #{a_call__.2} parent=15 // pred_check
          %p219 = pneg %p54
        $region18: #{a_call__.2} parent=15 // pred_check_branch
          %221 = sbr.rel (%p219) target = $region20
        $region19: #{a_call__.2} parent=15 // pred_region
          %s222 = smul.u32 %s22, 2
          %s223 = ssub.s32 0, %s222
          %s224 = smul.u32 %s21, %s223
          %s225 = sadd.s32 %s22, %s224
          %s226 = smul.u32 8, %s225
          %p227 = scmp.lt.s32.totalorder %s226, 7
          %s228 = scalar_select %p227, %s226, 7
          %s229 = smul.addr %s228, 8
          %s230 = scalar_lea.vmem %s0, %s229
          %s231 = smul.u32 %s22, 2
          %s232 = ssub.s32 0, %s231
          %s233 = smul.u32 %s21, %s232
          %s234 = sadd.s32 %s22, %s233
          %s235 = smul.u32 8, %s234
        $region20: #{a_call__.2} parent=15 // pred_fallthru
          _
        // Predicated region
        $region21: #{a_call__.2} parent=15 // pred_check
          %p236 = pneg %p80
        $region22: #{a_call__.2} parent=15 // pred_check_branch
          %238 = sbr.rel (%p236) target = $region24
        $region23: #{a_call__.2} parent=15 // pred_region
          %p239 = scmp.lt.s32.totalorder %s21, 1
          %s240 = scalar_select %p239, %s21, 1
          %s241 = smul.addr %s240, 6
          %s242 = smul.addr %s241, 8
          %s243 = scalar_lea.vmem %s1, %s242
        $region24: #{a_call__.2} parent=15 // pred_fallthru
          _
        // Predicated region
        $region25: #{a_call__.2} parent=15 // pred_check
          %p244 = pneg %p106
        $region26: #{a_call__.2} parent=15 // pred_check_branch
          %246 = sbr.rel (%p244) target = $region28
        $region27: #{a_call__.2} parent=15 // pred_region
          %s247 = sand.u32 %s96, 1
          %s248 = scalar_lea.sflag [#allocation5], %s247
          %s249 = sand.u32 %s96, 1
          %s250 = smul.addr %s249, 384
          %s251 = scalar_lea.vmem [#allocation4], %s250
          %253 = vsyncadd %s248, 0
          %s254 = smul.addr %s21, 48
          %s255 = smul.addr %s254, 8
          %s256 = scalar_lea.hbm %s2, %s255
          %s257 = sshll.u32 %s256, 4
          %s258 = int_to_ptr.hbm [resolvable:$true] %s257
          %s259 = sshll.u32 %s251, 4
          %s260 = int_to_ptr.vmem [resolvable:$true] %s259
          %265 = dma.hbm_to_vmem [thread:$0]  %s258, 6144, %s260, %s248, 384, 384, 24
        $region28: #{a_call__.2} parent=15 // pred_fallthru
          _
        // Predicated region
        $region29: #{a_call__.2} parent=15 // pred_check
          %p266 = pneg %p132
        $region30: #{a_call__.2} parent=15 // pred_check_branch
          %268 = sbr.rel (%p266) target = $region32
        $region31: #{a_call__.2} parent=15 // pred_region
          %p269 = scmp.lt.s32.totalorder %s21, 1
          %s270 = scalar_select %p269, %s21, 1
          %s271 = smul.addr %s270, 3
          %s272 = scalar_lea.vmem %s3, %s271
        $region32: #{a_call__.2} parent=15 // pred_fallthru
          _
        // Predicated region
        $region33: #{a_call__.2} parent=15 // pred_check
          %p273 = pneg %p158
        $region34: #{a_call__.2} parent=15 // pred_check_branch
          %275 = sbr.rel (%p273) target = $region36
        $region35: #{a_call__.2} parent=15 // pred_region
          %p276 = scmp.lt.s32.totalorder %s21, 1
          %s277 = scalar_select %p276, %s21, 1
          %s278 = scalar_lea.vmem %s4, %s277
        $region36: #{a_call__.2} parent=15 // pred_fallthru
          _
      $region16: #{a_call__.2} parent=5 // pred_fallthru
        _
      %p279 = scmp.le.s32.totalorder 1, %s14
      %p280 = scmp.lt.s32.totalorder %s14, 3
      %p281 = pnand %p279, %p280
      %p282 = pneg %p281
      // Predicated region
      $region37: #{a_call__.2} parent=5 // pred_check
        _
      $region38: #{a_call__.2} parent=5 // pred_check_branch
        %284 = sbr.rel (%p281) target = $region40
      $region39: #{a_call__.2} parent=5 // pred_region
        %s285 = ssub.s32 %s14, 1
        %s286 = sand.u32 %s99, 1
        %s287 = scalar_lea.sflag [#allocation5], %s286
        %s288 = sand.u32 %s99, 1
        %s289 = smul.addr %s288, 384
        %s290 = scalar_lea.vmem [#allocation4], %s289
        // Predicated region
        $region41: #{a_call__.2} parent=39 // pred_check
          %p291 = pneg %p112
        $region42: #{a_call__.2} parent=39 // pred_check_branch
          %293 = sbr.rel (%p291) target = $region44
        $region43: #{a_call__.2} parent=39 // pred_region
          %295 = dma.done %s287, 6144
        $region44: #{a_call__.2} parent=39 // pred_fallthru
          _
        %s296 = smul.u32 %s24, 2
        %s297 = ssub.s32 0, %s296
        %s298 = smul.u32 %s23, %s297
        %s299 = sadd.s32 %s24, %s298
        %s300 = smul.u32 8, %s299
        %p301 = scmp.lt.s32.totalorder %s300, 7
        %s302 = scalar_select %p301, %s300, 7
        %s303 = smul.addr %s302, 8
        %s304 = scalar_lea.vmem %s0, %s303
        %p305 = pneg %p60
        %p306 = pneg %p57
        %p307 = scmp.lt.s32.totalorder %s23, 1
        %s308 = scalar_select %p307, %s23, 1
        %s309 = smul.addr %s308, 6
        %s310 = smul.addr %s309, 8
        %s311 = scalar_lea.vmem %s1, %s310
        %p312 = pneg %p86
        %p313 = pneg %p83
        %s314 = sand.u32 %s99, 1
        %s315 = scalar_lea.sflag [#allocation5], %s314
        %s316 = sand.u32 %s99, 1
        %s317 = smul.addr %s316, 384
        %s318 = scalar_lea.vmem [#allocation4], %s317
        %p319 = pneg %p112
        %p320 = pneg %p109
        %p321 = scmp.lt.s32.totalorder %s23, 1
        %s322 = scalar_select %p321, %s23, 1
        %s323 = smul.addr %s322, 3
        %s324 = scalar_lea.vmem %s3, %s323
        %p325 = pneg %p138
        %p326 = pneg %p135
        %p327 = scmp.lt.s32.totalorder %s23, 1
        %s328 = scalar_select %p327, %s23, 1
        %s329 = scalar_lea.vmem %s4, %s328
        %p330 = pneg %p164
        %p331 = pneg %p161
        %p332 = pneg %p200
        %p333 = pneg %p197
        %s334 = sand.u32 %s187, 1
        %s335 = sand.u32 %s187, 1
        %s336 = smul.addr %s335, 64
        %s337 = scalar_lea.vmem [#allocation6], %s336
        %s338 = smul.u32 %s24, 2
        %s339 = ssub.s32 0, %s338
        %s340 = smul.u32 %s23, %s339
        %s341 = sadd.s32 %s24, %s340
        %s342 = smul.u32 8, %s341
        %p343 = scmp.lt.s32.totalorder %s342, 7
        %s344 = scalar_select %p343, %s342, 7
        %s345 = smul.addr %s344, 8
        %s346 = scalar_lea.vmem %s0, %s345
        %s347 = smul.u32 %s24, 2
        %s348 = ssub.s32 0, %s347
        %s349 = smul.u32 %s23, %s348
        %s350 = sadd.s32 %s24, %s349
        %s351 = smul.u32 8, %s350
        %p352 = scmp.lt.s32.totalorder %s23, 1
        %s353 = scalar_select %p352, %s23, 1
        %s354 = smul.addr %s353, 6
        %s355 = smul.addr %s354, 8
        %s356 = scalar_lea.vmem %s1, %s355
        %p357 = scmp.lt.s32.totalorder %s23, 1
        %s358 = scalar_select %p357, %s23, 1
        %s359 = smul.addr %s358, 3
        %s360 = scalar_lea.vmem %s3, %s359
        %p361 = scmp.lt.s32.totalorder %s23, 1
        %s362 = scalar_select %p361, %s23, 1
        %s363 = scalar_lea.vmem %s4, %s362
        %s364 = smul.u32 %s24, 2
        %s365 = ssub.s32 0, %s364
        %s366 = smul.u32 %s23, %s365
        %s367 = sadd.s32 %s24, %s366
        %s368 = smul.u32 8, %s367
        %p369 = scmp.eq.s32.totalorder %s24, 0
        // Predicated region
        $region45: #{a_call__.2} parent=39 // pred_check
          %p370 = pneg %p369
        $region46: #{a_call__.2} parent=39 // pred_check_branch
          %372 = sbr.rel (%p370) target = $region48
        $region47: #{a_call__.2} parent=39 // pred_region
          %373 = vst [vmem:[#allocation3] sm:$0xff] 0.0
        $region48: #{a_call__.2} parent=39 // pred_fallthru
          _
        %v374 = vld [vmem:[%s346] sm:$0xff]
        %v375 = vld [vmem:[%s346 + $0x8] sm:$0xff]
        %v376 = vld [vmem:[%s346 + $0x10] sm:$0xff]
        %v377 = vld [vmem:[%s346 + $0x18] sm:$0xff]
        %v378 = vld [vmem:[%s346 + $0x20] sm:$0xff]
        %v379 = vld [vmem:[%s346 + $0x28] sm:$0xff]
        %v380 = vld [vmem:[%s346 + $0x30] sm:$0xff]
        %v381 = vld [vmem:[%s346 + $0x38] sm:$0xff]
        %v382 = vld [vmem:[%s356] sm:$0xff]
        %v383 = vld [vmem:[%s356 + $0x8] sm:$0xff]
        %v384 = vld [vmem:[%s356 + $0x10] sm:$0xff]
        %v385 = vld [vmem:[%s356 + $0x18] sm:$0xff]
        %v386 = vld [vmem:[%s356 + $0x20] sm:$0xff]
        %v387 = vld [vmem:[%s356 + $0x28] sm:$0xff]
        %v388 = vld [vmem:[%s360] sm:$0x7]
        %v390 = vperm.slane %v388, 0
        %v391 = vperm.slane %v388, 1
        %v392 = vperm.slane %v388, 2
        %vm396 = vcmask 130048
        %v398 = vsel %vm396, %v374, 0
        %v401 = vsel %vm396, %v375, 0
        %v404 = vsel %vm396, %v376, 0
        %v407 = vsel %vm396, %v377, 0
        %v410 = vsel %vm396, %v378, 0
        %v413 = vsel %vm396, %v379, 0
        %v416 = vsel %vm396, %v380, 0
        %v419 = vsel %vm396, %v381, 0
        %421 = vmatpush.msra.mxu0 0.0
        %422 = vmatpush.msra.mxu0 0.0
        %423 = vmatpush.msra.mxu0 0.0
        %424 = vmatpush.msra.mxu0 0.0
        %425 = vmatpush.msra.mxu0 0.0
        %426 = vmatpush.msra.mxu0 0.0
        %427 = vmatpush.msra.mxu0 0.0
        %428 = vmatpush.msra.mxu0 0.0
        %429 = vmatpush.msra.mxu0 0.0
        %430 = vmatpush.msra.mxu0 0.0
        %431 = vmatpush.msra.mxu0 0.0
        %432 = vmatpush.msra.mxu0 0.0
        %433 = vmatpush.msra.mxu0 0.0
        %434 = vmatpush.msra.mxu0 0.0
        %435 = vmatpush.msra.mxu0 %v385
        %436 = vmatpush.msra.mxu0 %v382
        %437 = vmatmul.f32.gmra.mxu0 %v398
        %v438 = vpop.f32.mrf.mxu0
        %v439 = vadd.f32 %v390, %v438
        %440 = vmatmul.f32.gmra.mxu0 %v401
        %v441 = vpop.f32.mrf.mxu0
        %v442 = vadd.f32 %v390, %v441
        %443 = vmatmul.f32.gmra.mxu0 %v404
        %v444 = vpop.f32.mrf.mxu0
        %v445 = vadd.f32 %v390, %v444
        %446 = vmatmul.f32.gmra.mxu0 %v407
        %v447 = vpop.f32.mrf.mxu0
        %v448 = vadd.f32 %v390, %v447
        %449 = vmatmul.f32.gmra.mxu0 %v410
        %v450 = vpop.f32.mrf.mxu0
        %v451 = vadd.f32 %v390, %v450
        %452 = vmatmul.f32.gmra.mxu0 %v413
        %v453 = vpop.f32.mrf.mxu0
        %v454 = vadd.f32 %v390, %v453
        %455 = vmatmul.f32.gmra.mxu0 %v416
        %v456 = vpop.f32.mrf.mxu0
        %v457 = vadd.f32 %v390, %v456
        %458 = vmatmul.f32.gmra.mxu0 %v419
        %v459 = vpop.f32.mrf.mxu0
        %v460 = vadd.f32 %v390, %v459
        %461 = vdwg.mxu0
        %462 = vmatpush.msra.mxu0 0.0
        %463 = vmatpush.msra.mxu0 0.0
        %464 = vmatpush.msra.mxu0 0.0
        %465 = vmatpush.msra.mxu0 0.0
        %466 = vmatpush.msra.mxu0 0.0
        %467 = vmatpush.msra.mxu0 0.0
        %468 = vmatpush.msra.mxu0 0.0
        %469 = vmatpush.msra.mxu0 0.0
        %470 = vmatpush.msra.mxu0 0.0
        %471 = vmatpush.msra.mxu0 0.0
        %472 = vmatpush.msra.mxu0 0.0
        %473 = vmatpush.msra.mxu0 0.0
        %474 = vmatpush.msra.mxu0 0.0
        %475 = vmatpush.msra.mxu0 0.0
        %476 = vmatpush.msra.mxu0 %v386
        %477 = vmatpush.msra.mxu0 %v383
        %478 = vmatmul.f32.gmra.mxu0 %v398
        %v479 = vpop.f32.mrf.mxu0
        %v480 = vadd.f32 %v391, %v479
        %481 = vmatmul.f32.gmra.mxu0 %v401
        %v482 = vpop.f32.mrf.mxu0
        %v483 = vadd.f32 %v391, %v482
        %484 = vmatmul.f32.gmra.mxu0 %v404
        %v485 = vpop.f32.mrf.mxu0
        %v486 = vadd.f32 %v391, %v485
        %487 = vmatmul.f32.gmra.mxu0 %v407
        %v488 = vpop.f32.mrf.mxu0
        %v489 = vadd.f32 %v391, %v488
        %490 = vmatmul.f32.gmra.mxu0 %v410
        %v491 = vpop.f32.mrf.mxu0
        %v492 = vadd.f32 %v391, %v491
        %493 = vmatmul.f32.gmra.mxu0 %v413
        %v494 = vpop.f32.mrf.mxu0
        %v495 = vadd.f32 %v391, %v494
        %496 = vmatmul.f32.gmra.mxu0 %v416
        %v497 = vpop.f32.mrf.mxu0
        %v498 = vadd.f32 %v391, %v497
        %499 = vmatmul.f32.gmra.mxu0 %v419
        %v500 = vpop.f32.mrf.mxu0
        %v501 = vadd.f32 %v391, %v500
        %502 = vdwg.mxu0
        %503 = vmatpush.msra.mxu0 0.0
        %504 = vmatpush.msra.mxu0 0.0
        %505 = vmatpush.msra.mxu0 0.0
        %506 = vmatpush.msra.mxu0 0.0
        %507 = vmatpush.msra.mxu0 0.0
        %508 = vmatpush.msra.mxu0 0.0
        %509 = vmatpush.msra.mxu0 0.0
        %510 = vmatpush.msra.mxu0 0.0
        %511 = vmatpush.msra.mxu0 0.0
        %512 = vmatpush.msra.mxu0 0.0
        %513 = vmatpush.msra.mxu0 0.0
        %514 = vmatpush.msra.mxu0 0.0
        %515 = vmatpush.msra.mxu0 0.0
        %516 = vmatpush.msra.mxu0 0.0
        %517 = vmatpush.msra.mxu0 %v387
        %518 = vmatpush.msra.mxu0 %v384
        %519 = vmatmul.f32.gmra.mxu0 %v398
        %v520 = vpop.f32.mrf.mxu0
        %v521 = vadd.f32 %v392, %v520
        %522 = vmatmul.f32.gmra.mxu0 %v401
        %v523 = vpop.f32.mrf.mxu0
        %v524 = vadd.f32 %v392, %v523
        %525 = vmatmul.f32.gmra.mxu0 %v404
        %v526 = vpop.f32.mrf.mxu0
        %v527 = vadd.f32 %v392, %v526
        %528 = vmatmul.f32.gmra.mxu0 %v407
        %v529 = vpop.f32.mrf.mxu0
        %v530 = vadd.f32 %v392, %v529
        %531 = vmatmul.f32.gmra.mxu0 %v410
        %v532 = vpop.f32.mrf.mxu0
        %v533 = vadd.f32 %v392, %v532
        %534 = vmatmul.f32.gmra.mxu0 %v413
        %v535 = vpop.f32.mrf.mxu0
        %v536 = vadd.f32 %v392, %v535
        %537 = vmatmul.f32.gmra.mxu0 %v416
        %v538 = vpop.f32.mrf.mxu0
        %v539 = vadd.f32 %v392, %v538
        %540 = vmatmul.f32.gmra.mxu0 %v419
        %v541 = vpop.f32.mrf.mxu0
        %v542 = vadd.f32 %v392, %v541
        %543 = vdwg.mxu0
        %544 = vst [vmem:[#allocation2] sm:$0xff] %v439
        %545 = vst [vmem:[#allocation2 + $0x8] sm:$0xff] %v480
        %546 = vst [vmem:[#allocation2 + $0x10] sm:$0xff] %v521
        %547 = vst [vmem:[#allocation2 + $0x18] sm:$0xff] %v442
        %548 = vst [vmem:[#allocation2 + $0x20] sm:$0xff] %v483
        %549 = vst [vmem:[#allocation2 + $0x28] sm:$0xff] %v524
        %550 = vst [vmem:[#allocation2 + $0x30] sm:$0xff] %v445
        %551 = vst [vmem:[#allocation2 + $0x38] sm:$0xff] %v486
        %552 = vst [vmem:[#allocation2 + $0x40] sm:$0xff] %v527
        %553 = vst [vmem:[#allocation2 + $0x48] sm:$0xff] %v448
        %554 = vst [vmem:[#allocation2 + $0x50] sm:$0xff] %v489
        %555 = vst [vmem:[#allocation2 + $0x58] sm:$0xff] %v530
        %556 = vst [vmem:[#allocation2 + $0x60] sm:$0xff] %v451
        %557 = vst [vmem:[#allocation2 + $0x68] sm:$0xff] %v492
        %558 = vst [vmem:[#allocation2 + $0x70] sm:$0xff] %v533
        %559 = vst [vmem:[#allocation2 + $0x78] sm:$0xff] %v454
        %560 = vst [vmem:[#allocation2 + $0x80] sm:$0xff] %v495
        %561 = vst [vmem:[#allocation2 + $0x88] sm:$0xff] %v536
        %562 = vst [vmem:[#allocation2 + $0x90] sm:$0xff] %v457
        %563 = vst [vmem:[#allocation2 + $0x98] sm:$0xff] %v498
        %564 = vst [vmem:[#allocation2 + $0xa0] sm:$0xff] %v539
        %565 = vst [vmem:[#allocation2 + $0xa8] sm:$0xff] %v460
        %566 = vst [vmem:[#allocation2 + $0xb0] sm:$0xff] %v501
        %567 = vst [vmem:[#allocation2 + $0xb8] sm:$0xff] %v542
        %v568 = vld [vmem:[%s290] sm:$0xff]
        %v569 = vld [vmem:[%s290 + $0x8] sm:$0xff]
        %v570 = vld [vmem:[%s290 + $0x10] sm:$0xff]
        %v571 = vld [vmem:[%s290 + $0x18] sm:$0xff]
        %v572 = vld [vmem:[%s290 + $0x20] sm:$0xff]
        %v573 = vld [vmem:[%s290 + $0x28] sm:$0xff]
        %v574 = vld [vmem:[%s290 + $0x30] sm:$0xff]
        %v575 = vld [vmem:[%s290 + $0x38] sm:$0xff]
        %v576 = vld [vmem:[%s290 + $0x40] sm:$0xff]
        %v577 = vld [vmem:[%s290 + $0x48] sm:$0xff]
        %v578 = vld [vmem:[%s290 + $0x50] sm:$0xff]
        %v579 = vld [vmem:[%s290 + $0x58] sm:$0xff]
        %v580 = vld [vmem:[%s290 + $0x60] sm:$0xff]
        %v581 = vld [vmem:[%s290 + $0x68] sm:$0xff]
        %v582 = vld [vmem:[%s290 + $0x70] sm:$0xff]
        %v583 = vld [vmem:[%s290 + $0x78] sm:$0xff]
        %v584 = vld [vmem:[%s290 + $0x80] sm:$0xff]
        %v585 = vld [vmem:[%s290 + $0x88] sm:$0xff]
        %v586 = vld [vmem:[%s290 + $0x90] sm:$0xff]
        %v587 = vld [vmem:[%s290 + $0x98] sm:$0xff]
        %v588 = vld [vmem:[%s290 + $0xa0] sm:$0xff]
        %v589 = vld [vmem:[%s290 + $0xa8] sm:$0xff]
        %v590 = vld [vmem:[%s290 + $0xb0] sm:$0xff]
        %v591 = vld [vmem:[%s290 + $0xb8] sm:$0xff]
        %v592 = vld [vmem:[%s290 + $0xc0] sm:$0xff]
        %v593 = vld [vmem:[%s290 + $0xc8] sm:$0xff]
        %v594 = vld [vmem:[%s290 + $0xd0] sm:$0xff]
        %v595 = vld [vmem:[%s290 + $0xd8] sm:$0xff]
        %v596 = vld [vmem:[%s290 + $0xe0] sm:$0xff]
        %v597 = vld [vmem:[%s290 + $0xe8] sm:$0xff]
        %v598 = vld [vmem:[%s290 + $0xf0] sm:$0xff]
        %v599 = vld [vmem:[%s290 + $0xf8] sm:$0xff]
        %v600 = vld [vmem:[%s290 + $0x100] sm:$0xff]
        %v601 = vld [vmem:[%s290 + $0x108] sm:$0xff]
        %v602 = vld [vmem:[%s290 + $0x110] sm:$0xff]
        %v603 = vld [vmem:[%s290 + $0x118] sm:$0xff]
        %v604 = vld [vmem:[%s290 + $0x120] sm:$0xff]
        %v605 = vld [vmem:[%s290 + $0x128] sm:$0xff]
        %v606 = vld [vmem:[%s290 + $0x130] sm:$0xff]
        %v607 = vld [vmem:[%s290 + $0x138] sm:$0xff]
        %v608 = vld [vmem:[%s290 + $0x140] sm:$0xff]
        %v609 = vld [vmem:[%s290 + $0x148] sm:$0xff]
        %v610 = vld [vmem:[%s290 + $0x150] sm:$0xff]
        %v611 = vld [vmem:[%s290 + $0x158] sm:$0xff]
        %v612 = vld [vmem:[%s290 + $0x160] sm:$0xff]
        %v613 = vld [vmem:[%s290 + $0x168] sm:$0xff]
        %v614 = vld [vmem:[%s290 + $0x170] sm:$0xff]
        %v615 = vld [vmem:[%s290 + $0x178] sm:$0xff]
        %v616 = vld [vmem:[%s363] sm:$0x1]
        %v617 = vld [vmem:[#allocation3] sm:$0xff]
        %s618 = smul.u32 %s23, 56
        %s619 = sshra.s32 %s618, 3
        %s620 = sand.u32 %s618, 7
        %s621 = smul.u32 %s619, 3
        %s622 = smul.addr %s621, 8
        %s623 = scalar_lea.vmem [#allocation2], %s622
        %v624 = vld [vmem:[%s623] sm:$0xff]
        %v625 = vld [vmem:[%s623 + $0x8] sm:$0xff]
        %v626 = vld [vmem:[%s623 + $0x10] sm:$0xff]
        %627 = vmatpush.msra.mxu0 %v613
        %628 = vmatpush.msra.mxu0 %v610
        %629 = vmatpush.msra.mxu0 %v607
        %630 = vmatpush.msra.mxu0 %v604
        %631 = vmatpush.msra.mxu0 %v601
        %632 = vmatpush.msra.mxu0 %v598
        %633 = vmatpush.msra.mxu0 %v595
        %634 = vmatpush.msra.mxu0 %v592
        %635 = vmatpush.msra.mxu0 %v589
        %636 = vmatpush.msra.mxu0 %v586
        %637 = vmatpush.msra.mxu0 %v583
        %638 = vmatpush.msra.mxu0 %v580
        %639 = vmatpush.msra.mxu0 %v577
        %640 = vmatpush.msra.mxu0 %v574
        %641 = vmatpush.msra.mxu0 %v571
        %642 = vmatpush.msra.mxu0 %v568
        %643 = vmatmul.f32.gmra.mxu0 %v617
        %v644 = vpop.f32.mrf.mxu0
        %v645 = vadd.f32 0.0, %v644
        %646 = vdwg.mxu0
        %647 = vmatpush.msra.mxu0 %v614
        %648 = vmatpush.msra.mxu0 %v611
        %649 = vmatpush.msra.mxu0 %v608
        %650 = vmatpush.msra.mxu0 %v605
        %651 = vmatpush.msra.mxu0 %v602
        %652 = vmatpush.msra.mxu0 %v599
        %653 = vmatpush.msra.mxu0 %v596
        %654 = vmatpush.msra.mxu0 %v593
        %655 = vmatpush.msra.mxu0 %v590
        %656 = vmatpush.msra.mxu0 %v587
        %657 = vmatpush.msra.mxu0 %v584
        %658 = vmatpush.msra.mxu0 %v581
        %659 = vmatpush.msra.mxu0 %v578
        %660 = vmatpush.msra.mxu0 %v575
        %661 = vmatpush.msra.mxu0 %v572
        %662 = vmatpush.msra.mxu0 %v569
        %663 = vmatmul.f32.gmra.mxu0 %v617
        %v664 = vpop.f32.mrf.mxu0
        %v665 = vadd.f32 0.0, %v664
        %666 = vdwg.mxu0
        %667 = vmatpush.msra.mxu0 %v615
        %668 = vmatpush.msra.mxu0 %v612
        %669 = vmatpush.msra.mxu0 %v609
        %670 = vmatpush.msra.mxu0 %v606
        %671 = vmatpush.msra.mxu0 %v603
        %672 = vmatpush.msra.mxu0 %v600
        %673 = vmatpush.msra.mxu0 %v597
        %674 = vmatpush.msra.mxu0 %v594
        %675 = vmatpush.msra.mxu0 %v591
        %676 = vmatpush.msra.mxu0 %v588
        %677 = vmatpush.msra.mxu0 %v585
        %678 = vmatpush.msra.mxu0 %v582
        %679 = vmatpush.msra.mxu0 %v579
        %680 = vmatpush.msra.mxu0 %v576
        %681 = vmatpush.msra.mxu0 %v573
        %682 = vmatpush.msra.mxu0 %v570
        %683 = vmatmul.f32.gmra.mxu0 %v617
        %v684 = vpop.f32.mrf.mxu0
        %v685 = vadd.f32 0.0, %v684
        %686 = vdwg.mxu0
        %v687 = vadd.f32 %v624, %v645
        %v688 = vxor.u32 %v687, 2147483648
        %v689 = vmul.f32 %v688, 1.442695
        %v690 = vpow.pop %v689
        %v691 = vadd.f32 %v690, 1.0
        %v692 = vrcp.pop %v691
        %v693 = vmul.f32 %v691, %v692
        %v694 = vsub.f32 1.0, %v693
        %v695 = vmul.f32 %v692, %v694
        %v696 = vadd.f32 %v692, %v695
        %vm697 = vweird.f32 %v691
        %vm698 = vweird.f32 %v692
        %vm699 = vmor %vm697, %vm698
        %v700 = vsel %vm699, %v692, %v696
        %v701 = vand.u32 2147483647, %v691
        %vm702 = vcmp.eq.f32.partialorder %v701, 8.507059e+37
        %v703 = vand.u32 %v691, 2147483648
        %v704 = vor.u32 1.1754944e-38, %v703
        %v705 = vsel %vm702, %v704, %v700
        %v706 = vmul.f32 1.0, %v705
        %v707 = vadd.f32 %v625, %v665
        %v708 = vxor.u32 %v707, 2147483648
        %v709 = vmul.f32 %v708, 1.442695
        %v710 = vpow.pop %v709
        %v711 = vadd.f32 %v710, 1.0
        %v712 = vrcp.pop %v711
        %v713 = vmul.f32 %v711, %v712
        %v714 = vsub.f32 1.0, %v713
        %v715 = vmul.f32 %v712, %v714
        %v716 = vadd.f32 %v712, %v715
        %vm717 = vweird.f32 %v711
        %vm718 = vweird.f32 %v712
        %vm719 = vmor %vm717, %vm718
        %v720 = vsel %vm719, %v712, %v716
        %v721 = vand.u32 2147483647, %v711
        %vm722 = vcmp.eq.f32.partialorder %v721, 8.507059e+37
        %v723 = vand.u32 %v711, 2147483648
        %v724 = vor.u32 1.1754944e-38, %v723
        %v725 = vsel %vm722, %v724, %v720
        %v726 = vmul.f32 1.0, %v725
        %v728 = vperm.slane %v616, 0
        %v730 = vadd.f32 %v685, %v728
        %v731 = vmul.f32 %v706, %v730
        %v732 = vadd.f32 %v626, %v731
        %v733 = vtanh.pop %v732
        %v734 = vsub.f32 1.0, %v726
        %v735 = vmul.f32 %v734, %v733
        %v736 = vmul.f32 %v726, %v617
        %v737 = vadd.f32 %v735, %v736
        %s738 = scalar_lea.vmem %s337, %s618 [#allocation6]
        %739 = vst [vmem:[%s738] sm:$0xff] %v737
        %s740 = smul.u32 %s23, 5
        %s741 = sadd.s32 %s740, 1
        %s742 = smul.u32 %s741, 8
        %s743 = sshra.s32 %s742, 3
        %s744 = sand.u32 %s742, 7
        %s745 = smul.u32 %s743, 3
        %s746 = smul.addr %s745, 8
        %s747 = scalar_lea.vmem [#allocation2], %s746
        %v748 = vld [vmem:[%s747] sm:$0xff]
        %v749 = vld [vmem:[%s747 + $0x8] sm:$0xff]
        %v750 = vld [vmem:[%s747 + $0x10] sm:$0xff]
        %751 = vmatpush.msra.mxu0 %v613
        %752 = vmatpush.msra.mxu0 %v610
        %753 = vmatpush.msra.mxu0 %v607
        %754 = vmatpush.msra.mxu0 %v604
        %755 = vmatpush.msra.mxu0 %v601
        %756 = vmatpush.msra.mxu0 %v598
        %757 = vmatpush.msra.mxu0 %v595
        %758 = vmatpush.msra.mxu0 %v592
        %759 = vmatpush.msra.mxu0 %v589
        %760 = vmatpush.msra.mxu0 %v586
        %761 = vmatpush.msra.mxu0 %v583
        %762 = vmatpush.msra.mxu0 %v580
        %763 = vmatpush.msra.mxu0 %v577
        %764 = vmatpush.msra.mxu0 %v574
        %765 = vmatpush.msra.mxu0 %v571
        %766 = vmatpush.msra.mxu0 %v568
        %767 = vmatmul.f32.gmra.mxu0 %v737
        %v768 = vpop.f32.mrf.mxu0
        %v769 = vadd.f32 0.0, %v768
        %770 = vdwg.mxu0
        %771 = vmatpush.msra.mxu0 %v614
        %772 = vmatpush.msra.mxu0 %v611
        %773 = vmatpush.msra.mxu0 %v608
        %774 = vmatpush.msra.mxu0 %v605
        %775 = vmatpush.msra.mxu0 %v602
        %776 = vmatpush.msra.mxu0 %v599
        %777 = vmatpush.msra.mxu0 %v596
        %778 = vmatpush.msra.mxu0 %v593
        %779 = vmatpush.msra.mxu0 %v590
        %780 = vmatpush.msra.mxu0 %v587
        %781 = vmatpush.msra.mxu0 %v584
        %782 = vmatpush.msra.mxu0 %v581
        %783 = vmatpush.msra.mxu0 %v578
        %784 = vmatpush.msra.mxu0 %v575
        %785 = vmatpush.msra.mxu0 %v572
        %786 = vmatpush.msra.mxu0 %v569
        %787 = vmatmul.f32.gmra.mxu0 %v737
        %v788 = vpop.f32.mrf.mxu0
        %v789 = vadd.f32 0.0, %v788
        %790 = vdwg.mxu0
        %791 = vmatpush.msra.mxu0 %v615
        %792 = vmatpush.msra.mxu0 %v612
        %793 = vmatpush.msra.mxu0 %v609
        %794 = vmatpush.msra.mxu0 %v606
        %795 = vmatpush.msra.mxu0 %v603
        %796 = vmatpush.msra.mxu0 %v600
        %797 = vmatpush.msra.mxu0 %v597
        %798 = vmatpush.msra.mxu0 %v594
        %799 = vmatpush.msra.mxu0 %v591
        %800 = vmatpush.msra.mxu0 %v588
        %801 = vmatpush.msra.mxu0 %v585
        %802 = vmatpush.msra.mxu0 %v582
        %803 = vmatpush.msra.mxu0 %v579
        %804 = vmatpush.msra.mxu0 %v576
        %805 = vmatpush.msra.mxu0 %v573
        %806 = vmatpush.msra.mxu0 %v570
        %807 = vmatmul.f32.gmra.mxu0 %v737
        %v808 = vpop.f32.mrf.mxu0
        %v809 = vadd.f32 0.0, %v808
        %810 = vdwg.mxu0
        %v811 = vadd.f32 %v748, %v769
        %v812 = vxor.u32 %v811, 2147483648
        %v813 = vmul.f32 %v812, 1.442695
        %v814 = vpow.pop %v813
        %v815 = vadd.f32 %v814, 1.0
        %v816 = vrcp.pop %v815
        %v817 = vmul.f32 %v815, %v816
        %v818 = vsub.f32 1.0, %v817
        %v819 = vmul.f32 %v816, %v818
        %v820 = vadd.f32 %v816, %v819
        %vm821 = vweird.f32 %v815
        %vm822 = vweird.f32 %v816
        %vm823 = vmor %vm821, %vm822
        %v824 = vsel %vm823, %v816, %v820
        %v825 = vand.u32 2147483647, %v815
        %vm826 = vcmp.eq.f32.partialorder %v825, 8.507059e+37
        %v827 = vand.u32 %v815, 2147483648
        %v828 = vor.u32 1.1754944e-38, %v827
        %v829 = vsel %vm826, %v828, %v824
        %v830 = vmul.f32 1.0, %v829
        %v831 = vadd.f32 %v749, %v789
        %v832 = vxor.u32 %v831, 2147483648
        %v833 = vmul.f32 %v832, 1.442695
        %v834 = vpow.pop %v833
        %v835 = vadd.f32 %v834, 1.0
        %v836 = vrcp.pop %v835
        %v837 = vmul.f32 %v835, %v836
        %v838 = vsub.f32 1.0, %v837
        %v839 = vmul.f32 %v836, %v838
        %v840 = vadd.f32 %v836, %v839
        %vm841 = vweird.f32 %v835
        %vm842 = vweird.f32 %v836
        %vm843 = vmor %vm841, %vm842
        %v844 = vsel %vm843, %v836, %v840
        %v845 = vand.u32 2147483647, %v835
        %vm846 = vcmp.eq.f32.partialorder %v845, 8.507059e+37
        %v847 = vand.u32 %v835, 2147483648
        %v848 = vor.u32 1.1754944e-38, %v847
        %v849 = vsel %vm846, %v848, %v844
        %v850 = vmul.f32 1.0, %v849
        %v851 = vadd.f32 %v809, %v728
        %v852 = vmul.f32 %v830, %v851
        %v853 = vadd.f32 %v750, %v852
        %v854 = vtanh.pop %v853
        %v855 = vsub.f32 1.0, %v850
        %v856 = vmul.f32 %v855, %v854
        %v857 = vmul.f32 %v850, %v737
        %v858 = vadd.f32 %v856, %v857
        %s859 = scalar_lea.vmem %s337, %s742 [#allocation6]
        %860 = vst [vmem:[%s859] sm:$0xff] %v858
        %s861 = smul.u32 %s23, 3
        %s862 = sadd.s32 %s861, 2
        %s863 = smul.u32 %s862, 8
        %s864 = sshra.s32 %s863, 3
        %s865 = sand.u32 %s863, 7
        %s866 = smul.u32 %s864, 3
        %s867 = smul.addr %s866, 8
        %s868 = scalar_lea.vmem [#allocation2], %s867
        %v869 = vld [vmem:[%s868] sm:$0xff]
        %v870 = vld [vmem:[%s868 + $0x8] sm:$0xff]
        %v871 = vld [vmem:[%s868 + $0x10] sm:$0xff]
        %872 = vmatpush.msra.mxu0 %v613
        %873 = vmatpush.msra.mxu0 %v610
        %874 = vmatpush.msra.mxu0 %v607
        %875 = vmatpush.msra.mxu0 %v604
        %876 = vmatpush.msra.mxu0 %v601
        %877 = vmatpush.msra.mxu0 %v598
        %878 = vmatpush.msra.mxu0 %v595
        %879 = vmatpush.msra.mxu0 %v592
        %880 = vmatpush.msra.mxu0 %v589
        %881 = vmatpush.msra.mxu0 %v586
        %882 = vmatpush.msra.mxu0 %v583
        %883 = vmatpush.msra.mxu0 %v580
        %884 = vmatpush.msra.mxu0 %v577
        %885 = vmatpush.msra.mxu0 %v574
        %886 = vmatpush.msra.mxu0 %v571
        %887 = vmatpush.msra.mxu0 %v568
        %888 = vmatmul.f32.gmra.mxu0 %v858
        %v889 = vpop.f32.mrf.mxu0
        %v890 = vadd.f32 0.0, %v889
        %891 = vdwg.mxu0
        %892 = vmatpush.msra.mxu0 %v614
        %893 = vmatpush.msra.mxu0 %v611
        %894 = vmatpush.msra.mxu0 %v608
        %895 = vmatpush.msra.mxu0 %v605
        %896 = vmatpush.msra.mxu0 %v602
        %897 = vmatpush.msra.mxu0 %v599
        %898 = vmatpush.msra.mxu0 %v596
        %899 = vmatpush.msra.mxu0 %v593
        %900 = vmatpush.msra.mxu0 %v590
        %901 = vmatpush.msra.mxu0 %v587
        %902 = vmatpush.msra.mxu0 %v584
        %903 = vmatpush.msra.mxu0 %v581
        %904 = vmatpush.msra.mxu0 %v578
        %905 = vmatpush.msra.mxu0 %v575
        %906 = vmatpush.msra.mxu0 %v572
        %907 = vmatpush.msra.mxu0 %v569
        %908 = vmatmul.f32.gmra.mxu0 %v858
        %v909 = vpop.f32.mrf.mxu0
        %v910 = vadd.f32 0.0, %v909
        %911 = vdwg.mxu0
        %912 = vmatpush.msra.mxu0 %v615
        %913 = vmatpush.msra.mxu0 %v612
        %914 = vmatpush.msra.mxu0 %v609
        %915 = vmatpush.msra.mxu0 %v606
        %916 = vmatpush.msra.mxu0 %v603
        %917 = vmatpush.msra.mxu0 %v600
        %918 = vmatpush.msra.mxu0 %v597
        %919 = vmatpush.msra.mxu0 %v594
        %920 = vmatpush.msra.mxu0 %v591
        %921 = vmatpush.msra.mxu0 %v588
        %922 = vmatpush.msra.mxu0 %v585
        %923 = vmatpush.msra.mxu0 %v582
        %924 = vmatpush.msra.mxu0 %v579
        %925 = vmatpush.msra.mxu0 %v576
        %926 = vmatpush.msra.mxu0 %v573
        %927 = vmatpush.msra.mxu0 %v570
        %928 = vmatmul.f32.gmra.mxu0 %v858
        %v929 = vpop.f32.mrf.mxu0
        %v930 = vadd.f32 0.0, %v929
        %931 = vdwg.mxu0
        %v932 = vadd.f32 %v869, %v890
        %v933 = vxor.u32 %v932, 2147483648
        %v934 = vmul.f32 %v933, 1.442695
        %v935 = vpow.pop %v934
        %v936 = vadd.f32 %v935, 1.0
        %v937 = vrcp.pop %v936
        %v938 = vmul.f32 %v936, %v937
        %v939 = vsub.f32 1.0, %v938
        %v940 = vmul.f32 %v937, %v939
        %v941 = vadd.f32 %v937, %v940
        %vm942 = vweird.f32 %v936
        %vm943 = vweird.f32 %v937
        %vm944 = vmor %vm942, %vm943
        %v945 = vsel %vm944, %v937, %v941
        %v946 = vand.u32 2147483647, %v936
        %vm947 = vcmp.eq.f32.partialorder %v946, 8.507059e+37
        %v948 = vand.u32 %v936, 2147483648
        %v949 = vor.u32 1.1754944e-38, %v948
        %v950 = vsel %vm947, %v949, %v945
        %v951 = vmul.f32 1.0, %v950
        %v952 = vadd.f32 %v870, %v910
        %v953 = vxor.u32 %v952, 2147483648
        %v954 = vmul.f32 %v953, 1.442695
        %v955 = vpow.pop %v954
        %v956 = vadd.f32 %v955, 1.0
        %v957 = vrcp.pop %v956
        %v958 = vmul.f32 %v956, %v957
        %v959 = vsub.f32 1.0, %v958
        %v960 = vmul.f32 %v957, %v959
        %v961 = vadd.f32 %v957, %v960
        %vm962 = vweird.f32 %v956
        %vm963 = vweird.f32 %v957
        %vm964 = vmor %vm962, %vm963
        %v965 = vsel %vm964, %v957, %v961
        %v966 = vand.u32 2147483647, %v956
        %vm967 = vcmp.eq.f32.partialorder %v966, 8.507059e+37
        %v968 = vand.u32 %v956, 2147483648
        %v969 = vor.u32 1.1754944e-38, %v968
        %v970 = vsel %vm967, %v969, %v965
        %v971 = vmul.f32 1.0, %v970
        %v972 = vadd.f32 %v930, %v728
        %v973 = vmul.f32 %v951, %v972
        %v974 = vadd.f32 %v871, %v973
        %v975 = vtanh.pop %v974
        %v976 = vsub.f32 1.0, %v971
        %v977 = vmul.f32 %v976, %v975
        %v978 = vmul.f32 %v971, %v858
        %v979 = vadd.f32 %v977, %v978
        %s980 = scalar_lea.vmem %s337, %s863 [#allocation6]
        %981 = vst [vmem:[%s980] sm:$0xff] %v979
        %s982 = sadd.s32 %s23, 3
        %s983 = smul.u32 %s982, 8
        %s984 = sshra.s32 %s983, 3
        %s985 = sand.u32 %s983, 7
        %s986 = smul.u32 %s984, 3
        %s987 = smul.addr %s986, 8
        %s988 = scalar_lea.vmem [#allocation2], %s987
        %v989 = vld [vmem:[%s988] sm:$0xff]
        %v990 = vld [vmem:[%s988 + $0x8] sm:$0xff]
        %v991 = vld [vmem:[%s988 + $0x10] sm:$0xff]
        %992 = vmatpush.msra.mxu0 %v613
        %993 = vmatpush.msra.mxu0 %v610
        %994 = vmatpush.msra.mxu0 %v607
        %995 = vmatpush.msra.mxu0 %v604
        %996 = vmatpush.msra.mxu0 %v601
        %997 = vmatpush.msra.mxu0 %v598
        %998 = vmatpush.msra.mxu0 %v595
        %999 = vmatpush.msra.mxu0 %v592
        %1000 = vmatpush.msra.mxu0 %v589
        %1001 = vmatpush.msra.mxu0 %v586
        %1002 = vmatpush.msra.mxu0 %v583
        %1003 = vmatpush.msra.mxu0 %v580
        %1004 = vmatpush.msra.mxu0 %v577
        %1005 = vmatpush.msra.mxu0 %v574
        %1006 = vmatpush.msra.mxu0 %v571
        %1007 = vmatpush.msra.mxu0 %v568
        %1008 = vmatmul.f32.gmra.mxu0 %v979
        %v1009 = vpop.f32.mrf.mxu0
        %v1010 = vadd.f32 0.0, %v1009
        %1011 = vdwg.mxu0
        %1012 = vmatpush.msra.mxu0 %v614
        %1013 = vmatpush.msra.mxu0 %v611
        %1014 = vmatpush.msra.mxu0 %v608
        %1015 = vmatpush.msra.mxu0 %v605
        %1016 = vmatpush.msra.mxu0 %v602
        %1017 = vmatpush.msra.mxu0 %v599
        %1018 = vmatpush.msra.mxu0 %v596
        %1019 = vmatpush.msra.mxu0 %v593
        %1020 = vmatpush.msra.mxu0 %v590
        %1021 = vmatpush.msra.mxu0 %v587
        %1022 = vmatpush.msra.mxu0 %v584
        %1023 = vmatpush.msra.mxu0 %v581
        %1024 = vmatpush.msra.mxu0 %v578
        %1025 = vmatpush.msra.mxu0 %v575
        %1026 = vmatpush.msra.mxu0 %v572
        %1027 = vmatpush.msra.mxu0 %v569
        %1028 = vmatmul.f32.gmra.mxu0 %v979
        %v1029 = vpop.f32.mrf.mxu0
        %v1030 = vadd.f32 0.0, %v1029
        %1031 = vdwg.mxu0
        %1032 = vmatpush.msra.mxu0 %v615
        %1033 = vmatpush.msra.mxu0 %v612
        %1034 = vmatpush.msra.mxu0 %v609
        %1035 = vmatpush.msra.mxu0 %v606
        %1036 = vmatpush.msra.mxu0 %v603
        %1037 = vmatpush.msra.mxu0 %v600
        %1038 = vmatpush.msra.mxu0 %v597
        %1039 = vmatpush.msra.mxu0 %v594
        %1040 = vmatpush.msra.mxu0 %v591
        %1041 = vmatpush.msra.mxu0 %v588
        %1042 = vmatpush.msra.mxu0 %v585
        %1043 = vmatpush.msra.mxu0 %v582
        %1044 = vmatpush.msra.mxu0 %v579
        %1045 = vmatpush.msra.mxu0 %v576
        %1046 = vmatpush.msra.mxu0 %v573
        %1047 = vmatpush.msra.mxu0 %v570
        %1048 = vmatmul.f32.gmra.mxu0 %v979
        %v1049 = vpop.f32.mrf.mxu0
        %v1050 = vadd.f32 0.0, %v1049
        %1051 = vdwg.mxu0
        %v1052 = vadd.f32 %v989, %v1010
        %v1053 = vxor.u32 %v1052, 2147483648
        %v1054 = vmul.f32 %v1053, 1.442695
        %v1055 = vpow.pop %v1054
        %v1056 = vadd.f32 %v1055, 1.0
        %v1057 = vrcp.pop %v1056
        %v1058 = vmul.f32 %v1056, %v1057
        %v1059 = vsub.f32 1.0, %v1058
        %v1060 = vmul.f32 %v1057, %v1059
        %v1061 = vadd.f32 %v1057, %v1060
        %vm1062 = vweird.f32 %v1056
        %vm1063 = vweird.f32 %v1057
        %vm1064 = vmor %vm1062, %vm1063
        %v1065 = vsel %vm1064, %v1057, %v1061
        %v1066 = vand.u32 2147483647, %v1056
        %vm1067 = vcmp.eq.f32.partialorder %v1066, 8.507059e+37
        %v1068 = vand.u32 %v1056, 2147483648
        %v1069 = vor.u32 1.1754944e-38, %v1068
        %v1070 = vsel %vm1067, %v1069, %v1065
        %v1071 = vmul.f32 1.0, %v1070
        %v1072 = vadd.f32 %v990, %v1030
        %v1073 = vxor.u32 %v1072, 2147483648
        %v1074 = vmul.f32 %v1073, 1.442695
        %v1075 = vpow.pop %v1074
        %v1076 = vadd.f32 %v1075, 1.0
        %v1077 = vrcp.pop %v1076
        %v1078 = vmul.f32 %v1076, %v1077
        %v1079 = vsub.f32 1.0, %v1078
        %v1080 = vmul.f32 %v1077, %v1079
        %v1081 = vadd.f32 %v1077, %v1080
        %vm1082 = vweird.f32 %v1076
        %vm1083 = vweird.f32 %v1077
        %vm1084 = vmor %vm1082, %vm1083
        %v1085 = vsel %vm1084, %v1077, %v1081
        %v1086 = vand.u32 2147483647, %v1076
        %vm1087 = vcmp.eq.f32.partialorder %v1086, 8.507059e+37
        %v1088 = vand.u32 %v1076, 2147483648
        %v1089 = vor.u32 1.1754944e-38, %v1088
        %v1090 = vsel %vm1087, %v1089, %v1085
        %v1091 = vmul.f32 1.0, %v1090
        %v1092 = vadd.f32 %v1050, %v728
        %v1093 = vmul.f32 %v1071, %v1092
        %v1094 = vadd.f32 %v991, %v1093
        %v1095 = vtanh.pop %v1094
        %v1096 = vsub.f32 1.0, %v1091
        %v1097 = vmul.f32 %v1096, %v1095
        %v1098 = vmul.f32 %v1091, %v979
        %v1099 = vadd.f32 %v1097, %v1098
        %s1100 = scalar_lea.vmem %s337, %s983 [#allocation6]
        %1101 = vst [vmem:[%s1100] sm:$0xff] %v1099
        %s1102 = ssub.s32 4, %s23
        %s1103 = smul.u32 %s1102, 8
        %s1104 = sshra.s32 %s1103, 3
        %s1105 = sand.u32 %s1103, 7
        %s1106 = smul.u32 %s1104, 3
        %s1107 = smul.addr %s1106, 8
        %s1108 = scalar_lea.vmem [#allocation2], %s1107
        %v1109 = vld [vmem:[%s1108] sm:$0xff]
        %v1110 = vld [vmem:[%s1108 + $0x8] sm:$0xff]
        %v1111 = vld [vmem:[%s1108 + $0x10] sm:$0xff]
        %1112 = vmatpush.msra.mxu0 %v613
        %1113 = vmatpush.msra.mxu0 %v610
        %1114 = vmatpush.msra.mxu0 %v607
        %1115 = vmatpush.msra.mxu0 %v604
        %1116 = vmatpush.msra.mxu0 %v601
        %1117 = vmatpush.msra.mxu0 %v598
        %1118 = vmatpush.msra.mxu0 %v595
        %1119 = vmatpush.msra.mxu0 %v592
        %1120 = vmatpush.msra.mxu0 %v589
        %1121 = vmatpush.msra.mxu0 %v586
        %1122 = vmatpush.msra.mxu0 %v583
        %1123 = vmatpush.msra.mxu0 %v580
        %1124 = vmatpush.msra.mxu0 %v577
        %1125 = vmatpush.msra.mxu0 %v574
        %1126 = vmatpush.msra.mxu0 %v571
        %1127 = vmatpush.msra.mxu0 %v568
        %1128 = vmatmul.f32.gmra.mxu0 %v1099
        %v1129 = vpop.f32.mrf.mxu0
        %v1130 = vadd.f32 0.0, %v1129
        %1131 = vdwg.mxu0
        %1132 = vmatpush.msra.mxu0 %v614
        %1133 = vmatpush.msra.mxu0 %v611
        %1134 = vmatpush.msra.mxu0 %v608
        %1135 = vmatpush.msra.mxu0 %v605
        %1136 = vmatpush.msra.mxu0 %v602
        %1137 = vmatpush.msra.mxu0 %v599
        %1138 = vmatpush.msra.mxu0 %v596
        %1139 = vmatpush.msra.mxu0 %v593
        %1140 = vmatpush.msra.mxu0 %v590
        %1141 = vmatpush.msra.mxu0 %v587
        %1142 = vmatpush.msra.mxu0 %v584
        %1143 = vmatpush.msra.mxu0 %v581
        %1144 = vmatpush.msra.mxu0 %v578
        %1145 = vmatpush.msra.mxu0 %v575
        %1146 = vmatpush.msra.mxu0 %v572
        %1147 = vmatpush.msra.mxu0 %v569
        %1148 = vmatmul.f32.gmra.mxu0 %v1099
        %v1149 = vpop.f32.mrf.mxu0
        %v1150 = vadd.f32 0.0, %v1149
        %1151 = vdwg.mxu0
        %1152 = vmatpush.msra.mxu0 %v615
        %1153 = vmatpush.msra.mxu0 %v612
        %1154 = vmatpush.msra.mxu0 %v609
        %1155 = vmatpush.msra.mxu0 %v606
        %1156 = vmatpush.msra.mxu0 %v603
        %1157 = vmatpush.msra.mxu0 %v600
        %1158 = vmatpush.msra.mxu0 %v597
        %1159 = vmatpush.msra.mxu0 %v594
        %1160 = vmatpush.msra.mxu0 %v591
        %1161 = vmatpush.msra.mxu0 %v588
        %1162 = vmatpush.msra.mxu0 %v585
        %1163 = vmatpush.msra.mxu0 %v582
        %1164 = vmatpush.msra.mxu0 %v579
        %1165 = vmatpush.msra.mxu0 %v576
        %1166 = vmatpush.msra.mxu0 %v573
        %1167 = vmatpush.msra.mxu0 %v570
        %1168 = vmatmul.f32.gmra.mxu0 %v1099
        %v1169 = vpop.f32.mrf.mxu0
        %v1170 = vadd.f32 0.0, %v1169
        %1171 = vdwg.mxu0
        %v1172 = vadd.f32 %v1109, %v1130
        %v1173 = vxor.u32 %v1172, 2147483648
        %v1174 = vmul.f32 %v1173, 1.442695
        %v1175 = vpow.pop %v1174
        %v1176 = vadd.f32 %v1175, 1.0
        %v1177 = vrcp.pop %v1176
        %v1178 = vmul.f32 %v1176, %v1177
        %v1179 = vsub.f32 1.0, %v1178
        %v1180 = vmul.f32 %v1177, %v1179
        %v1181 = vadd.f32 %v1177, %v1180
        %vm1182 = vweird.f32 %v1176
        %vm1183 = vweird.f32 %v1177
        %vm1184 = vmor %vm1182, %vm1183
        %v1185 = vsel %vm1184, %v1177, %v1181
        %v1186 = vand.u32 2147483647, %v1176
        %vm1187 = vcmp.eq.f32.partialorder %v1186, 8.507059e+37
        %v1188 = vand.u32 %v1176, 2147483648
        %v1189 = vor.u32 1.1754944e-38, %v1188
        %v1190 = vsel %vm1187, %v1189, %v1185
        %v1191 = vmul.f32 1.0, %v1190
        %v1192 = vadd.f32 %v1110, %v1150
        %v1193 = vxor.u32 %v1192, 2147483648
        %v1194 = vmul.f32 %v1193, 1.442695
        %v1195 = vpow.pop %v1194
        %v1196 = vadd.f32 %v1195, 1.0
        %v1197 = vrcp.pop %v1196
        %v1198 = vmul.f32 %v1196, %v1197
        %v1199 = vsub.f32 1.0, %v1198
        %v1200 = vmul.f32 %v1197, %v1199
        %v1201 = vadd.f32 %v1197, %v1200
        %vm1202 = vweird.f32 %v1196
        %vm1203 = vweird.f32 %v1197
        %vm1204 = vmor %vm1202, %vm1203
        %v1205 = vsel %vm1204, %v1197, %v1201
        %v1206 = vand.u32 2147483647, %v1196
        %vm1207 = vcmp.eq.f32.partialorder %v1206, 8.507059e+37
        %v1208 = vand.u32 %v1196, 2147483648
        %v1209 = vor.u32 1.1754944e-38, %v1208
        %v1210 = vsel %vm1207, %v1209, %v1205
        %v1211 = vmul.f32 1.0, %v1210
        %v1212 = vadd.f32 %v1170, %v728
        %v1213 = vmul.f32 %v1191, %v1212
        %v1214 = vadd.f32 %v1111, %v1213
        %v1215 = vtanh.pop %v1214
        %v1216 = vsub.f32 1.0, %v1211
        %v1217 = vmul.f32 %v1216, %v1215
        %v1218 = vmul.f32 %v1211, %v1099
        %v1219 = vadd.f32 %v1217, %v1218
        %s1220 = scalar_lea.vmem %s337, %s1103 [#allocation6]
        %1221 = vst [vmem:[%s1220] sm:$0xff] %v1219
        %s1222 = smul.u32 %s23, 4294967293
        %s1223 = sadd.s32 %s1222, 5
        %s1224 = smul.u32 %s1223, 8
        %s1225 = sshra.s32 %s1224, 3
        %s1226 = sand.u32 %s1224, 7
        %s1227 = smul.u32 %s1225, 3
        %s1228 = smul.addr %s1227, 8
        %s1229 = scalar_lea.vmem [#allocation2], %s1228
        %v1230 = vld [vmem:[%s1229] sm:$0xff]
        %v1231 = vld [vmem:[%s1229 + $0x8] sm:$0xff]
        %v1232 = vld [vmem:[%s1229 + $0x10] sm:$0xff]
        %1233 = vmatpush.msra.mxu0 %v613
        %1234 = vmatpush.msra.mxu0 %v610
        %1235 = vmatpush.msra.mxu0 %v607
        %1236 = vmatpush.msra.mxu0 %v604
        %1237 = vmatpush.msra.mxu0 %v601
        %1238 = vmatpush.msra.mxu0 %v598
        %1239 = vmatpush.msra.mxu0 %v595
        %1240 = vmatpush.msra.mxu0 %v592
        %1241 = vmatpush.msra.mxu0 %v589
        %1242 = vmatpush.msra.mxu0 %v586
        %1243 = vmatpush.msra.mxu0 %v583
        %1244 = vmatpush.msra.mxu0 %v580
        %1245 = vmatpush.msra.mxu0 %v577
        %1246 = vmatpush.msra.mxu0 %v574
        %1247 = vmatpush.msra.mxu0 %v571
        %1248 = vmatpush.msra.mxu0 %v568
        %1249 = vmatmul.f32.gmra.mxu0 %v1219
        %v1250 = vpop.f32.mrf.mxu0
        %v1251 = vadd.f32 0.0, %v1250
        %1252 = vdwg.mxu0
        %1253 = vmatpush.msra.mxu0 %v614
        %1254 = vmatpush.msra.mxu0 %v611
        %1255 = vmatpush.msra.mxu0 %v608
        %1256 = vmatpush.msra.mxu0 %v605
        %1257 = vmatpush.msra.mxu0 %v602
        %1258 = vmatpush.msra.mxu0 %v599
        %1259 = vmatpush.msra.mxu0 %v596
        %1260 = vmatpush.msra.mxu0 %v593
        %1261 = vmatpush.msra.mxu0 %v590
        %1262 = vmatpush.msra.mxu0 %v587
        %1263 = vmatpush.msra.mxu0 %v584
        %1264 = vmatpush.msra.mxu0 %v581
        %1265 = vmatpush.msra.mxu0 %v578
        %1266 = vmatpush.msra.mxu0 %v575
        %1267 = vmatpush.msra.mxu0 %v572
        %1268 = vmatpush.msra.mxu0 %v569
        %1269 = vmatmul.f32.gmra.mxu0 %v1219
        %v1270 = vpop.f32.mrf.mxu0
        %v1271 = vadd.f32 0.0, %v1270
        %1272 = vdwg.mxu0
        %1273 = vmatpush.msra.mxu0 %v615
        %1274 = vmatpush.msra.mxu0 %v612
        %1275 = vmatpush.msra.mxu0 %v609
        %1276 = vmatpush.msra.mxu0 %v606
        %1277 = vmatpush.msra.mxu0 %v603
        %1278 = vmatpush.msra.mxu0 %v600
        %1279 = vmatpush.msra.mxu0 %v597
        %1280 = vmatpush.msra.mxu0 %v594
        %1281 = vmatpush.msra.mxu0 %v591
        %1282 = vmatpush.msra.mxu0 %v588
        %1283 = vmatpush.msra.mxu0 %v585
        %1284 = vmatpush.msra.mxu0 %v582
        %1285 = vmatpush.msra.mxu0 %v579
        %1286 = vmatpush.msra.mxu0 %v576
        %1287 = vmatpush.msra.mxu0 %v573
        %1288 = vmatpush.msra.mxu0 %v570
        %1289 = vmatmul.f32.gmra.mxu0 %v1219
        %v1290 = vpop.f32.mrf.mxu0
        %v1291 = vadd.f32 0.0, %v1290
        %1292 = vdwg.mxu0
        %v1293 = vadd.f32 %v1230, %v1251
        %v1294 = vxor.u32 %v1293, 2147483648
        %v1295 = vmul.f32 %v1294, 1.442695
        %v1296 = vpow.pop %v1295
        %v1297 = vadd.f32 %v1296, 1.0
        %v1298 = vrcp.pop %v1297
        %v1299 = vmul.f32 %v1297, %v1298
        %v1300 = vsub.f32 1.0, %v1299
        %v1301 = vmul.f32 %v1298, %v1300
        %v1302 = vadd.f32 %v1298, %v1301
        %vm1303 = vweird.f32 %v1297
        %vm1304 = vweird.f32 %v1298
        %vm1305 = vmor %vm1303, %vm1304
        %v1306 = vsel %vm1305, %v1298, %v1302
        %v1307 = vand.u32 2147483647, %v1297
        %vm1308 = vcmp.eq.f32.partialorder %v1307, 8.507059e+37
        %v1309 = vand.u32 %v1297, 2147483648
        %v1310 = vor.u32 1.1754944e-38, %v1309
        %v1311 = vsel %vm1308, %v1310, %v1306
        %v1312 = vmul.f32 1.0, %v1311
        %v1313 = vadd.f32 %v1231, %v1271
        %v1314 = vxor.u32 %v1313, 2147483648
        %v1315 = vmul.f32 %v1314, 1.442695
        %v1316 = vpow.pop %v1315
        %v1317 = vadd.f32 %v1316, 1.0
        %v1318 = vrcp.pop %v1317
        %v1319 = vmul.f32 %v1317, %v1318
        %v1320 = vsub.f32 1.0, %v1319
        %v1321 = vmul.f32 %v1318, %v1320
        %v1322 = vadd.f32 %v1318, %v1321
        %vm1323 = vweird.f32 %v1317
        %vm1324 = vweird.f32 %v1318
        %vm1325 = vmor %vm1323, %vm1324
        %v1326 = vsel %vm1325, %v1318, %v1322
        %v1327 = vand.u32 2147483647, %v1317
        %vm1328 = vcmp.eq.f32.partialorder %v1327, 8.507059e+37
        %v1329 = vand.u32 %v1317, 2147483648
        %v1330 = vor.u32 1.1754944e-38, %v1329
        %v1331 = vsel %vm1328, %v1330, %v1326
        %v1332 = vmul.f32 1.0, %v1331
        %v1333 = vadd.f32 %v1291, %v728
        %v1334 = vmul.f32 %v1312, %v1333
        %v1335 = vadd.f32 %v1232, %v1334
        %v1336 = vtanh.pop %v1335
        %v1337 = vsub.f32 1.0, %v1332
        %v1338 = vmul.f32 %v1337, %v1336
        %v1339 = vmul.f32 %v1332, %v1219
        %v1340 = vadd.f32 %v1338, %v1339
        %s1341 = scalar_lea.vmem %s337, %s1224 [#allocation6]
        %1342 = vst [vmem:[%s1341] sm:$0xff] %v1340
        %s1343 = smul.u32 %s23, 4294967291
        %s1344 = sadd.s32 %s1343, 6
        %s1345 = smul.u32 %s1344, 8
        %s1346 = sshra.s32 %s1345, 3
        %s1347 = sand.u32 %s1345, 7
        %s1348 = smul.u32 %s1346, 3
        %s1349 = smul.addr %s1348, 8
        %s1350 = scalar_lea.vmem [#allocation2], %s1349
        %v1351 = vld [vmem:[%s1350] sm:$0xff]
        %v1352 = vld [vmem:[%s1350 + $0x8] sm:$0xff]
        %v1353 = vld [vmem:[%s1350 + $0x10] sm:$0xff]
        %1354 = vmatpush.msra.mxu0 %v613
        %1355 = vmatpush.msra.mxu0 %v610
        %1356 = vmatpush.msra.mxu0 %v607
        %1357 = vmatpush.msra.mxu0 %v604
        %1358 = vmatpush.msra.mxu0 %v601
        %1359 = vmatpush.msra.mxu0 %v598
        %1360 = vmatpush.msra.mxu0 %v595
        %1361 = vmatpush.msra.mxu0 %v592
        %1362 = vmatpush.msra.mxu0 %v589
        %1363 = vmatpush.msra.mxu0 %v586
        %1364 = vmatpush.msra.mxu0 %v583
        %1365 = vmatpush.msra.mxu0 %v580
        %1366 = vmatpush.msra.mxu0 %v577
        %1367 = vmatpush.msra.mxu0 %v574
        %1368 = vmatpush.msra.mxu0 %v571
        %1369 = vmatpush.msra.mxu0 %v568
        %1370 = vmatmul.f32.gmra.mxu0 %v1340
        %v1371 = vpop.f32.mrf.mxu0
        %v1372 = vadd.f32 0.0, %v1371
        %1373 = vdwg.mxu0
        %1374 = vmatpush.msra.mxu0 %v614
        %1375 = vmatpush.msra.mxu0 %v611
        %1376 = vmatpush.msra.mxu0 %v608
        %1377 = vmatpush.msra.mxu0 %v605
        %1378 = vmatpush.msra.mxu0 %v602
        %1379 = vmatpush.msra.mxu0 %v599
        %1380 = vmatpush.msra.mxu0 %v596
        %1381 = vmatpush.msra.mxu0 %v593
        %1382 = vmatpush.msra.mxu0 %v590
        %1383 = vmatpush.msra.mxu0 %v587
        %1384 = vmatpush.msra.mxu0 %v584
        %1385 = vmatpush.msra.mxu0 %v581
        %1386 = vmatpush.msra.mxu0 %v578
        %1387 = vmatpush.msra.mxu0 %v575
        %1388 = vmatpush.msra.mxu0 %v572
        %1389 = vmatpush.msra.mxu0 %v569
        %1390 = vmatmul.f32.gmra.mxu0 %v1340
        %v1391 = vpop.f32.mrf.mxu0
        %v1392 = vadd.f32 0.0, %v1391
        %1393 = vdwg.mxu0
        %1394 = vmatpush.msra.mxu0 %v615
        %1395 = vmatpush.msra.mxu0 %v612
        %1396 = vmatpush.msra.mxu0 %v609
        %1397 = vmatpush.msra.mxu0 %v606
        %1398 = vmatpush.msra.mxu0 %v603
        %1399 = vmatpush.msra.mxu0 %v600
        %1400 = vmatpush.msra.mxu0 %v597
        %1401 = vmatpush.msra.mxu0 %v594
        %1402 = vmatpush.msra.mxu0 %v591
        %1403 = vmatpush.msra.mxu0 %v588
        %1404 = vmatpush.msra.mxu0 %v585
        %1405 = vmatpush.msra.mxu0 %v582
        %1406 = vmatpush.msra.mxu0 %v579
        %1407 = vmatpush.msra.mxu0 %v576
        %1408 = vmatpush.msra.mxu0 %v573
        %1409 = vmatpush.msra.mxu0 %v570
        %1410 = vmatmul.f32.gmra.mxu0 %v1340
        %v1411 = vpop.f32.mrf.mxu0
        %v1412 = vadd.f32 0.0, %v1411
        %1413 = vdwg.mxu0
        %v1414 = vadd.f32 %v1351, %v1372
        %v1415 = vxor.u32 %v1414, 2147483648
        %v1416 = vmul.f32 %v1415, 1.442695
        %v1417 = vpow.pop %v1416
        %v1418 = vadd.f32 %v1417, 1.0
        %v1419 = vrcp.pop %v1418
        %v1420 = vmul.f32 %v1418, %v1419
        %v1421 = vsub.f32 1.0, %v1420
        %v1422 = vmul.f32 %v1419, %v1421
        %v1423 = vadd.f32 %v1419, %v1422
        %vm1424 = vweird.f32 %v1418
        %vm1425 = vweird.f32 %v1419
        %vm1426 = vmor %vm1424, %vm1425
        %v1427 = vsel %vm1426, %v1419, %v1423
        %v1428 = vand.u32 2147483647, %v1418
        %vm1429 = vcmp.eq.f32.partialorder %v1428, 8.507059e+37
        %v1430 = vand.u32 %v1418, 2147483648
        %v1431 = vor.u32 1.1754944e-38, %v1430
        %v1432 = vsel %vm1429, %v1431, %v1427
        %v1433 = vmul.f32 1.0, %v1432
        %v1434 = vadd.f32 %v1352, %v1392
        %v1435 = vxor.u32 %v1434, 2147483648
        %v1436 = vmul.f32 %v1435, 1.442695
        %v1437 = vpow.pop %v1436
        %v1438 = vadd.f32 %v1437, 1.0
        %v1439 = vrcp.pop %v1438
        %v1440 = vmul.f32 %v1438, %v1439
        %v1441 = vsub.f32 1.0, %v1440
        %v1442 = vmul.f32 %v1439, %v1441
        %v1443 = vadd.f32 %v1439, %v1442
        %vm1444 = vweird.f32 %v1438
        %vm1445 = vweird.f32 %v1439
        %vm1446 = vmor %vm1444, %vm1445
        %v1447 = vsel %vm1446, %v1439, %v1443
        %v1448 = vand.u32 2147483647, %v1438
        %vm1449 = vcmp.eq.f32.partialorder %v1448, 8.507059e+37
        %v1450 = vand.u32 %v1438, 2147483648
        %v1451 = vor.u32 1.1754944e-38, %v1450
        %v1452 = vsel %vm1449, %v1451, %v1447
        %v1453 = vmul.f32 1.0, %v1452
        %v1454 = vadd.f32 %v1412, %v728
        %v1455 = vmul.f32 %v1433, %v1454
        %v1456 = vadd.f32 %v1353, %v1455
        %v1457 = vtanh.pop %v1456
        %v1458 = vsub.f32 1.0, %v1453
        %v1459 = vmul.f32 %v1458, %v1457
        %v1460 = vmul.f32 %v1453, %v1340
        %v1461 = vadd.f32 %v1459, %v1460
        %s1462 = scalar_lea.vmem %s337, %s1345 [#allocation6]
        %1463 = vst [vmem:[%s1462] sm:$0xff] %v1461
        %s1464 = smul.u32 %s23, 4294967289
        %s1465 = sadd.s32 %s1464, 7
        %s1466 = smul.u32 %s1465, 8
        %s1467 = sshra.s32 %s1466, 3
        %s1468 = sand.u32 %s1466, 7
        %s1469 = smul.u32 %s1467, 3
        %s1470 = smul.addr %s1469, 8
        %s1471 = scalar_lea.vmem [#allocation2], %s1470
        %v1472 = vld [vmem:[%s1471] sm:$0xff]
        %v1473 = vld [vmem:[%s1471 + $0x8] sm:$0xff]
        %v1474 = vld [vmem:[%s1471 + $0x10] sm:$0xff]
        %1475 = vmatpush.msra.mxu0 %v613
        %1476 = vmatpush.msra.mxu0 %v610
        %1477 = vmatpush.msra.mxu0 %v607
        %1478 = vmatpush.msra.mxu0 %v604
        %1479 = vmatpush.msra.mxu0 %v601
        %1480 = vmatpush.msra.mxu0 %v598
        %1481 = vmatpush.msra.mxu0 %v595
        %1482 = vmatpush.msra.mxu0 %v592
        %1483 = vmatpush.msra.mxu0 %v589
        %1484 = vmatpush.msra.mxu0 %v586
        %1485 = vmatpush.msra.mxu0 %v583
        %1486 = vmatpush.msra.mxu0 %v580
        %1487 = vmatpush.msra.mxu0 %v577
        %1488 = vmatpush.msra.mxu0 %v574
        %1489 = vmatpush.msra.mxu0 %v571
        %1490 = vmatpush.msra.mxu0 %v568
        %1491 = vmatmul.f32.gmra.mxu0 %v1461
        %v1492 = vpop.f32.mrf.mxu0
        %v1493 = vadd.f32 0.0, %v1492
        %1494 = vdwg.mxu0
        %1495 = vmatpush.msra.mxu0 %v614
        %1496 = vmatpush.msra.mxu0 %v611
        %1497 = vmatpush.msra.mxu0 %v608
        %1498 = vmatpush.msra.mxu0 %v605
        %1499 = vmatpush.msra.mxu0 %v602
        %1500 = vmatpush.msra.mxu0 %v599
        %1501 = vmatpush.msra.mxu0 %v596
        %1502 = vmatpush.msra.mxu0 %v593
        %1503 = vmatpush.msra.mxu0 %v590
        %1504 = vmatpush.msra.mxu0 %v587
        %1505 = vmatpush.msra.mxu0 %v584
        %1506 = vmatpush.msra.mxu0 %v581
        %1507 = vmatpush.msra.mxu0 %v578
        %1508 = vmatpush.msra.mxu0 %v575
        %1509 = vmatpush.msra.mxu0 %v572
        %1510 = vmatpush.msra.mxu0 %v569
        %1511 = vmatmul.f32.gmra.mxu0 %v1461
        %v1512 = vpop.f32.mrf.mxu0
        %v1513 = vadd.f32 0.0, %v1512
        %1514 = vdwg.mxu0
        %1515 = vmatpush.msra.mxu0 %v615
        %1516 = vmatpush.msra.mxu0 %v612
        %1517 = vmatpush.msra.mxu0 %v609
        %1518 = vmatpush.msra.mxu0 %v606
        %1519 = vmatpush.msra.mxu0 %v603
        %1520 = vmatpush.msra.mxu0 %v600
        %1521 = vmatpush.msra.mxu0 %v597
        %1522 = vmatpush.msra.mxu0 %v594
        %1523 = vmatpush.msra.mxu0 %v591
        %1524 = vmatpush.msra.mxu0 %v588
        %1525 = vmatpush.msra.mxu0 %v585
        %1526 = vmatpush.msra.mxu0 %v582
        %1527 = vmatpush.msra.mxu0 %v579
        %1528 = vmatpush.msra.mxu0 %v576
        %1529 = vmatpush.msra.mxu0 %v573
        %1530 = vmatpush.msra.mxu0 %v570
        %1531 = vmatmul.f32.gmra.mxu0 %v1461
        %v1532 = vpop.f32.mrf.mxu0
        %v1533 = vadd.f32 0.0, %v1532
        %1534 = vdwg.mxu0
        %v1535 = vadd.f32 %v1472, %v1493
        %v1536 = vxor.u32 %v1535, 2147483648
        %v1537 = vmul.f32 %v1536, 1.442695
        %v1538 = vpow.pop %v1537
        %v1539 = vadd.f32 %v1538, 1.0
        %v1540 = vrcp.pop %v1539
        %v1541 = vmul.f32 %v1539, %v1540
        %v1542 = vsub.f32 1.0, %v1541
        %v1543 = vmul.f32 %v1540, %v1542
        %v1544 = vadd.f32 %v1540, %v1543
        %vm1545 = vweird.f32 %v1539
        %vm1546 = vweird.f32 %v1540
        %vm1547 = vmor %vm1545, %vm1546
        %v1548 = vsel %vm1547, %v1540, %v1544
        %v1549 = vand.u32 2147483647, %v1539
        %vm1550 = vcmp.eq.f32.partialorder %v1549, 8.507059e+37
        %v1551 = vand.u32 %v1539, 2147483648
        %v1552 = vor.u32 1.1754944e-38, %v1551
        %v1553 = vsel %vm1550, %v1552, %v1548
        %v1554 = vmul.f32 1.0, %v1553
        %v1555 = vadd.f32 %v1473, %v1513
        %v1556 = vxor.u32 %v1555, 2147483648
        %v1557 = vmul.f32 %v1556, 1.442695
        %v1558 = vpow.pop %v1557
        %v1559 = vadd.f32 %v1558, 1.0
        %v1560 = vrcp.pop %v1559
        %v1561 = vmul.f32 %v1559, %v1560
        %v1562 = vsub.f32 1.0, %v1561
        %v1563 = vmul.f32 %v1560, %v1562
        %v1564 = vadd.f32 %v1560, %v1563
        %vm1565 = vweird.f32 %v1559
        %vm1566 = vweird.f32 %v1560
        %vm1567 = vmor %vm1565, %vm1566
        %v1568 = vsel %vm1567, %v1560, %v1564
        %v1569 = vand.u32 2147483647, %v1559
        %vm1570 = vcmp.eq.f32.partialorder %v1569, 8.507059e+37
        %v1571 = vand.u32 %v1559, 2147483648
        %v1572 = vor.u32 1.1754944e-38, %v1571
        %v1573 = vsel %vm1570, %v1572, %v1568
        %v1574 = vmul.f32 1.0, %v1573
        %v1575 = vadd.f32 %v1533, %v728
        %v1576 = vmul.f32 %v1554, %v1575
        %v1577 = vadd.f32 %v1474, %v1576
        %v1578 = vtanh.pop %v1577
        %v1579 = vsub.f32 1.0, %v1574
        %v1580 = vmul.f32 %v1579, %v1578
        %v1581 = vmul.f32 %v1574, %v1461
        %v1582 = vadd.f32 %v1580, %v1581
        %s1583 = scalar_lea.vmem %s337, %s1466 [#allocation6]
        %1584 = vst [vmem:[%s1583] sm:$0xff] %v1582
        %1585 = vst [vmem:[#allocation3] sm:$0xff] %v1582
        %s1586 = sand.u32 %s187, 1
        %s1587 = sand.u32 %s187, 1
        %s1588 = smul.addr %s1587, 64
        %s1589 = scalar_lea.vmem [#allocation6], %s1588
        // Predicated region
        $region49: #{a_call__.2} parent=39 // pred_check
          %p1590 = pneg %p197
        $region50: #{a_call__.2} parent=39 // pred_check_branch
          %1592 = sbr.rel (%p1590) target = $region52
        $region51: #{a_call__.2} parent=39 // pred_region
          %s1593 = smul.u32 %s24, 2
          %s1594 = ssub.s32 0, %s1593
          %s1595 = smul.u32 %s23, %s1594
          %s1596 = sadd.s32 %s24, %s1595
          %s1597 = smul.u32 8, %s1596
          %s1598 = smul.addr %s1597, 2
          %s1599 = sadd.s32 %s23, %s1598
          %s1600 = smul.addr %s1599, 8
          %s1601 = scalar_lea.vmem %s5, %s1600
          // Predicated region
          $region53: #{a_call__.2} parent=51 // pred_check
            _
          $region54: #{a_call__.2} parent=51 // pred_check_branch
            %1603 = sbr.rel (0) target = $region56
          $region55: #{a_call__.2} parent=51 // pred_region
            // Predicated region
            $region57: #{a_call__.2} parent=55 // pred_check
              _
            $region58: #{a_call__.2} parent=55 // pred_check_branch
              %1605 = sbr.rel (0) target = $region60
            $region59: #{a_call__.2} parent=55 // pred_region
              // Predicated region
              $region72: #{a_call__.2} parent=59 // pred_check
                _
              $region73: #{a_call__.2} parent=59 // pred_check_branch
                %1635 = sbr.rel (0) target = $region75
              $region74: #{a_call__.2} parent=59 // pred_region
                loop: start=0, step=1, limit=1
                $region76: #{a_call__.2} parent=74 // loop_pre_header
                  _
                $region77: #{a_call__.2} parent=74 // loop_header
                  %s1637 = sphi 0, %s1641
                  %p1638 = scmp.ge.s32.totalorder %s1637, 1
                  %s1642 = sphi %s1589, %s1589
                  %s1643 = sphi %s1601, %s1601
                $region78: #{a_call__.2} parent=74 // loop_header_branch
                  %1640 = sbr.rel (%p1638) target = $region82
                $region79: #{a_call__.2} parent=74 // loop_body
                  %v1644 = vld [vmem:[%s1642] sm:$0xff]
                  %1645 = vst [vmem:[%s1643] sm:$0xff] %v1644
                  %v1646 = vld [vmem:[%s1642 + $0x8] sm:$0xff]
                  %1647 = vst [vmem:[%s1643 + $0x10] sm:$0xff] %v1646
                  %v1648 = vld [vmem:[%s1642 + $0x10] sm:$0xff]
                  %1649 = vst [vmem:[%s1643 + $0x20] sm:$0xff] %v1648
                  %v1650 = vld [vmem:[%s1642 + $0x18] sm:$0xff]
                  %1651 = vst [vmem:[%s1643 + $0x30] sm:$0xff] %v1650
                  %v1652 = vld [vmem:[%s1642 + $0x20] sm:$0xff]
                  %1653 = vst [vmem:[%s1643 + $0x40] sm:$0xff] %v1652
                  %v1654 = vld [vmem:[%s1642 + $0x28] sm:$0xff]
                  %1655 = vst [vmem:[%s1643 + $0x50] sm:$0xff] %v1654
                  %v1656 = vld [vmem:[%s1642 + $0x30] sm:$0xff]
                  %1657 = vst [vmem:[%s1643 + $0x60] sm:$0xff] %v1656
                  %v1658 = vld [vmem:[%s1642 + $0x38] sm:$0xff]
                  %1659 = vst [vmem:[%s1643 + $0x70] sm:$0xff] %v1658
                $region80: #{a_call__.2} parent=74 // loop_footer
                  %s1641 = sadd.s32 1, %s1637
                $region81: #{a_call__.2} parent=74 // loop_footer_branch
                  %1636 = sbr.rel target = $region77
                $region82: #{a_call__.2} parent=74 // loop_exit
                  _
              $region75: #{a_call__.2} parent=59 // pred_fallthru
                _
              // Predicated region
              $region83: #{a_call__.2} parent=59 // pred_check
                _
              $region84: #{a_call__.2} parent=59 // pred_check_branch
                %1661 = sbr.rel target = $region86
              $region85: #{a_call__.2} parent=59 // pred_region
                _
              $region86: #{a_call__.2} parent=59 // pred_fallthru
                _
            $region60: #{a_call__.2} parent=55 // pred_fallthru
              _
            // Predicated region
            $region61: #{a_call__.2} parent=55 // pred_check
              _
            $region62: #{a_call__.2} parent=55 // pred_check_branch
              %1607 = sbr.rel target = $region64
            $region63: #{a_call__.2} parent=55 // pred_region
              %s1609 = ssub.s32 256, 1
              loop: start=0, step=1, limit=1
              $region65: #{a_call__.2} parent=63 // loop_pre_header
                _
              $region66: #{a_call__.2} parent=63 // loop_header
                %s1611 = sphi 0, %s1615
                %p1612 = scmp.ge.s32.totalorder %s1611, 1
                %s1616 = sphi %s1589, %s1589
                %s1617 = sphi %s1601, %s1601
              $region67: #{a_call__.2} parent=63 // loop_header_branch
                %1614 = sbr.rel (%p1612) target = $region71
              $region68: #{a_call__.2} parent=63 // loop_body
                %v1618 = vld [vmem:[%s1616] sm:%s1609]
                %1619 = vst [vmem:[%s1617] sm:%s1609] %v1618
                %v1620 = vld [vmem:[%s1616 + $0x8] sm:%s1609]
                %1621 = vst [vmem:[%s1617 + $0x10] sm:%s1609] %v1620
                %v1622 = vld [vmem:[%s1616 + $0x10] sm:%s1609]
                %1623 = vst [vmem:[%s1617 + $0x20] sm:%s1609] %v1622
                %v1624 = vld [vmem:[%s1616 + $0x18] sm:%s1609]
                %1625 = vst [vmem:[%s1617 + $0x30] sm:%s1609] %v1624
                %v1626 = vld [vmem:[%s1616 + $0x20] sm:%s1609]
                %1627 = vst [vmem:[%s1617 + $0x40] sm:%s1609] %v1626
                %v1628 = vld [vmem:[%s1616 + $0x28] sm:%s1609]
                %1629 = vst [vmem:[%s1617 + $0x50] sm:%s1609] %v1628
                %v1630 = vld [vmem:[%s1616 + $0x30] sm:%s1609]
                %1631 = vst [vmem:[%s1617 + $0x60] sm:%s1609] %v1630
                %v1632 = vld [vmem:[%s1616 + $0x38] sm:%s1609]
                %1633 = vst [vmem:[%s1617 + $0x70] sm:%s1609] %v1632
              $region69: #{a_call__.2} parent=63 // loop_footer
                %s1615 = sadd.s32 1, %s1611
              $region70: #{a_call__.2} parent=63 // loop_footer_branch
                %1610 = sbr.rel target = $region66
              $region71: #{a_call__.2} parent=63 // loop_exit
                _
            $region64: #{a_call__.2} parent=55 // pred_fallthru
              _
          $region56: #{a_call__.2} parent=51 // pred_fallthru
            _
          %1662 = vnop
        $region52: #{a_call__.2} parent=39 // pred_fallthru
          _
      $region40: #{a_call__.2} parent=5 // pred_fallthru
        _
      %p1663 = scmp.le.s32.totalorder 2, %s14
      // Predicated region
      $region87: #{a_call__.2} parent=5 // pred_check
        %p1664 = pneg %p1663
      $region88: #{a_call__.2} parent=5 // pred_check_branch
        %1666 = sbr.rel (%p1664) target = $region90
      $region89: #{a_call__.2} parent=5 // pred_region
        %s1667 = ssub.s32 %s14, 2
        // Predicated region
        $region91: #{a_call__.2} parent=89 // pred_check
          %p1668 = pneg %p203
        $region92: #{a_call__.2} parent=89 // pred_check_branch
          %1670 = sbr.rel (%p1668) target = $region94
        $region93: #{a_call__.2} parent=89 // pred_region
          %s1671 = sand.u32 %s188, 1
          %s1672 = sand.u32 %s188, 1
          %s1673 = smul.addr %s1672, 64
          %s1674 = scalar_lea.vmem [#allocation6], %s1673
        $region94: #{a_call__.2} parent=89 // pred_fallthru
          _
      $region90: #{a_call__.2} parent=5 // pred_fallthru
        _
    $region6: #{a_call__.2} parent=1 // loop_footer
      %s18 = sadd.s32 1, %s14
    $region7: #{a_call__.2} parent=1 // loop_footer_branch
      %13 = sbr.rel target = $region3
    $region8: #{a_call__.2} parent=1 // loop_exit
      _
    %1675 = vsyncpa [#allocation5], 1
    %s1676 = scalar_lea.sflag [#allocation5], 1
    %1677 = vsyncpa %s1676, 1

// kernel: a_call__.3
$region0: #{a_call__.3}
  #allocation0 [shape = 'u32[]', space=smem, size = 0x4, offset = 0x4, fixed_abs, tag = 'smem constant byte address 0x4 - core index']
  #allocation1 [shape = 'u32[72,128]{1,0:T(1,128)}', space=vmem, size = 0x9000, scoped, tag = 'internal scratch']
  #allocation2 [shape = 'f32[64,384]{1,0:T(8,128)}', space=vmem, size = 0x18000, scoped, tag = 'scratch operand']
  #allocation3 [shape = 'f32[8,128]{1,0:T(8,128)}', space=vmem, size = 0x1000, scoped, tag = 'scratch operand']
  %s0 = inlined_call_operand.vmem [shape: f32[64,256], index: 0, kind: input, shape index: {}]
  %s1 = inlined_call_operand.hbm [shape: f32[2,256,384], index: 1, kind: input, shape index: {}]
  %s2 = inlined_call_operand.hbm [shape: f32[2,128,384], index: 2, kind: input, shape index: {}]
  %s3 = inlined_call_operand.vmem [shape: f32[2,1,384], index: 3, kind: input, shape index: {}]
  %s4 = inlined_call_operand.vmem [shape: f32[2,1,128], index: 4, kind: input, shape index: {}]
  %s5 = inlined_call_operand.vmem [shape: f32[64,256], index: 5, kind: output, shape index: {}]
  %s6 = sld [smem:[#allocation0]]
  $region99: #{a_call__.3} parent=0
    _
  %s8 = ssub.s32 1, %s6
  %s9 = scalar_select 0, %s8, %s6
  $region1: #{a_call__.3} parent=0
    #allocation4 [shape = 'u8[786432]{0}', space=vmem, size = 0xc0000, scoped, tag = 'input window, operand 1']
    #allocation5 [shape = 's32[2]{0}', space=sflag, size = 0x8, scoped, tag = 'scoped memory for a_call__.3']
    #allocation6 [shape = 'u8[393216]{0}', space=vmem, size = 0x60000, scoped, tag = 'input window, operand 2']
    #allocation7 [shape = 's32[2]{0}', space=sflag, size = 0x8, scoped, tag = 'scoped memory for a_call__.3']
    #allocation8 [shape = 'u8[65536]{0}', space=vmem, size = 0x10000, scoped, tag = 'output window, operand 0']
    %10 = vsyncpa [#allocation5], 0
    %s11 = scalar_lea.sflag [#allocation5], 1
    %12 = vsyncpa %s11, 0
    %13 = vsyncpa [#allocation7], 0
    %s14 = scalar_lea.sflag [#allocation7], 1
    %15 = vsyncpa %s14, 0
    loop: start=0, step=1, limit=4
    $region2: #{a_call__.3} parent=1 // loop_pre_header
      _
    $region3: #{a_call__.3} parent=1 // loop_header
      %s17 = sphi 0, %s21
      %p18 = scmp.ge.s32.totalorder %s17, 4
      %s24 = sphi 0, %s36
      %s25 = sphi 0, %s32
      %s26 = sphi 0, %s24
      %s27 = sphi 0, %s25
      %s28 = sphi 0, %s26
      %s29 = sphi 0, %s27
      %s47 = sphi 0, %s49
      %s50 = sphi 0, %s47
      %s51 = sphi 0, %s50
      %s67 = sphi 0, %s51
      %s73 = sphi 0, %s75
      %s76 = sphi 0, %s73
      %s77 = sphi 0, %s76
      %s93 = sphi 0, %s77
      %s99 = sphi 0, %s101
      %s102 = sphi 0, %s99
      %s103 = sphi 0, %s102
      %s119 = sphi 0, %s103
      %s125 = sphi 0, %s127
      %s128 = sphi 0, %s125
      %s129 = sphi 0, %s128
      %s145 = sphi 0, %s129
      %s151 = sphi 0, %s153
      %s154 = sphi 0, %s151
      %s155 = sphi 0, %s154
      %s171 = sphi 0, %s155
      %s187 = sphi 0, %s189
      %s190 = sphi 0, %s187
      %s191 = sphi 0, %s190
      %s207 = sphi 0, %s191
    $region4: #{a_call__.3} parent=1 // loop_header_branch
      %20 = sbr.rel (%p18) target = $region8
    $region5: #{a_call__.3} parent=1 // loop_body
      %s22 = ssub.s32 %s17, 1
      %s23 = ssub.s32 %s17, 2
      %s30 = sadd.s32 1, %s25
      %p31 = scmp.ge.s32.totalorder %s30, 1
      %s32 = scalar_select %p31, 0, %s30
      %s33 = sadd.s32 1, %s24
      %s34 = scalar_select %p31, %s33, %s24
      %p35 = scmp.ge.s32.totalorder %s34, 2
      %s36 = scalar_select %p35, 0, %s34
      %s37 = smul.u32 %s25, 2
      %s38 = ssub.s32 0, %s37
      %s39 = smul.u32 %s24, %s38
      %s40 = sadd.s32 %s25, %s39
      %s41 = smul.u32 %s32, 2
      %s42 = ssub.s32 0, %s41
      %s43 = smul.u32 %s36, %s42
      %s44 = sadd.s32 %s32, %s43
      %s45 = ssub.s32 %s40, %s44
      %p46 = scmp.eq.s32.totalorder %s45, 0
      %s48 = sadd.s32 %s47, 1
      %s49 = scalar_select %p46, %s47, %s48
      %p52 = pneg %p46
      %p53 = scmp.eq.s32.totalorder %s17, 1
      %p54 = por %p52, %p53
      %p55 = scmp.ne.s32.totalorder %s47, %s50
      %p56 = scmp.eq.s32.totalorder %s17, 0
      %p57 = por %p55, %p56
      %p58 = scmp.ne.s32.totalorder %s47, %s50
      %p59 = scmp.eq.s32.totalorder %s22, 1
      %p60 = por %p58, %p59
      %p61 = scmp.ne.s32.totalorder %s50, %s51
      %p62 = scmp.eq.s32.totalorder %s22, 0
      %p63 = por %p61, %p62
      %p64 = scmp.ne.s32.totalorder %s50, %s51
      %p65 = scmp.eq.s32.totalorder %s23, 1
      %p66 = por %p64, %p65
      %p68 = scmp.ne.s32.totalorder %s51, %s67
      %p69 = scmp.eq.s32.totalorder %s23, 0
      %p70 = por %p68, %p69
      %s71 = ssub.s32 %s24, %s36
      %p72 = scmp.eq.s32.totalorder %s71, 0
      %s74 = sadd.s32 %s73, 1
      %s75 = scalar_select %p72, %s73, %s74
      %p78 = pneg %p72
      %p79 = scmp.eq.s32.totalorder %s17, 1
      %p80 = por %p78, %p79
      %p81 = scmp.ne.s32.totalorder %s73, %s76
      %p82 = scmp.eq.s32.totalorder %s17, 0
      %p83 = por %p81, %p82
      %p84 = scmp.ne.s32.totalorder %s73, %s76
      %p85 = scmp.eq.s32.totalorder %s22, 1
      %p86 = por %p84, %p85
      %p87 = scmp.ne.s32.totalorder %s76, %s77
      %p88 = scmp.eq.s32.totalorder %s22, 0
      %p89 = por %p87, %p88
      %p90 = scmp.ne.s32.totalorder %s76, %s77
      %p91 = scmp.eq.s32.totalorder %s23, 1
      %p92 = por %p90, %p91
      %p94 = scmp.ne.s32.totalorder %s77, %s93
      %p95 = scmp.eq.s32.totalorder %s23, 0
      %p96 = por %p94, %p95
      %s97 = ssub.s32 %s24, %s36
      %p98 = scmp.eq.s32.totalorder %s97, 0
      %s100 = sadd.s32 %s99, 1
      %s101 = scalar_select %p98, %s99, %s100
      %p104 = pneg %p98
      %p105 = scmp.eq.s32.totalorder %s17, 1
      %p106 = por %p104, %p105
      %p107 = scmp.ne.s32.totalorder %s99, %s102
      %p108 = scmp.eq.s32.totalorder %s17, 0
      %p109 = por %p107, %p108
      %p110 = scmp.ne.s32.totalorder %s99, %s102
      %p111 = scmp.eq.s32.totalorder %s22, 1
      %p112 = por %p110, %p111
      %p113 = scmp.ne.s32.totalorder %s102, %s103
      %p114 = scmp.eq.s32.totalorder %s22, 0
      %p115 = por %p113, %p114
      %p116 = scmp.ne.s32.totalorder %s102, %s103
      %p117 = scmp.eq.s32.totalorder %s23, 1
      %p118 = por %p116, %p117
      %p120 = scmp.ne.s32.totalorder %s103, %s119
      %p121 = scmp.eq.s32.totalorder %s23, 0
      %p122 = por %p120, %p121
      %s123 = ssub.s32 %s24, %s36
      %p124 = scmp.eq.s32.totalorder %s123, 0
      %s126 = sadd.s32 %s125, 1
      %s127 = scalar_select %p124, %s125, %s126
      %p130 = pneg %p124
      %p131 = scmp.eq.s32.totalorder %s17, 1
      %p132 = por %p130, %p131
      %p133 = scmp.ne.s32.totalorder %s125, %s128
      %p134 = scmp.eq.s32.totalorder %s17, 0
      %p135 = por %p133, %p134
      %p136 = scmp.ne.s32.totalorder %s125, %s128
      %p137 = scmp.eq.s32.totalorder %s22, 1
      %p138 = por %p136, %p137
      %p139 = scmp.ne.s32.totalorder %s128, %s129
      %p140 = scmp.eq.s32.totalorder %s22, 0
      %p141 = por %p139, %p140
      %p142 = scmp.ne.s32.totalorder %s128, %s129
      %p143 = scmp.eq.s32.totalorder %s23, 1
      %p144 = por %p142, %p143
      %p146 = scmp.ne.s32.totalorder %s129, %s145
      %p147 = scmp.eq.s32.totalorder %s23, 0
      %p148 = por %p146, %p147
      %s149 = ssub.s32 %s24, %s36
      %p150 = scmp.eq.s32.totalorder %s149, 0
      %s152 = sadd.s32 %s151, 1
      %s153 = scalar_select %p150, %s151, %s152
      %p156 = pneg %p150
      %p157 = scmp.eq.s32.totalorder %s17, 1
      %p158 = por %p156, %p157
      %p159 = scmp.ne.s32.totalorder %s151, %s154
      %p160 = scmp.eq.s32.totalorder %s17, 0
      %p161 = por %p159, %p160
      %p162 = scmp.ne.s32.totalorder %s151, %s154
      %p163 = scmp.eq.s32.totalorder %s22, 1
      %p164 = por %p162, %p163
      %p165 = scmp.ne.s32.totalorder %s154, %s155
      %p166 = scmp.eq.s32.totalorder %s22, 0
      %p167 = por %p165, %p166
      %p168 = scmp.ne.s32.totalorder %s154, %s155
      %p169 = scmp.eq.s32.totalorder %s23, 1
      %p170 = por %p168, %p169
      %p172 = scmp.ne.s32.totalorder %s155, %s171
      %p173 = scmp.eq.s32.totalorder %s23, 0
      %p174 = por %p172, %p173
      %s175 = smul.u32 %s25, 2
      %s176 = ssub.s32 0, %s175
      %s177 = smul.u32 %s24, %s176
      %s178 = sadd.s32 %s25, %s177
      %s179 = smul.u32 %s32, 2
      %s180 = ssub.s32 0, %s179
      %s181 = smul.u32 %s36, %s180
      %s182 = sadd.s32 %s32, %s181
      %s183 = ssub.s32 %s178, %s182
      %s184 = ssub.s32 %s24, %s36
      %s185 = sor.u32 %s183, %s184
      %p186 = scmp.eq.s32.totalorder %s185, 0
      %s188 = sadd.s32 %s187, 1
      %s189 = scalar_select %p186, %s187, %s188
      %p192 = pneg %p186
      %p193 = scmp.eq.s32.totalorder %s17, 1
      %p194 = por %p192, %p193
      %p195 = scmp.ne.s32.totalorder %s187, %s190
      %p196 = scmp.eq.s32.totalorder %s17, 0
      %p197 = por %p195, %p196
      %p198 = scmp.ne.s32.totalorder %s187, %s190
      %p199 = scmp.eq.s32.totalorder %s22, 1
      %p200 = por %p198, %p199
      %p201 = scmp.ne.s32.totalorder %s190, %s191
      %p202 = scmp.eq.s32.totalorder %s22, 0
      %p203 = por %p201, %p202
      %p204 = scmp.ne.s32.totalorder %s190, %s191
      %p205 = scmp.eq.s32.totalorder %s23, 1
      %p206 = por %p204, %p205
      %p208 = scmp.ne.s32.totalorder %s191, %s207
      %p209 = scmp.eq.s32.totalorder %s23, 0
      %p210 = por %p208, %p209
      %p211 = scmp.le.s32.totalorder 1, %s17
      %p212 = scmp.lt.s32.totalorder %s17, 3
      %p213 = pnand %p211, %p212
      %p214 = pneg %p213
      // Predicated region
      $region9: #{a_call__.3} parent=5 // pred_check
        _
      $region10: #{a_call__.3} parent=5 // pred_check_branch
        %216 = sbr.rel (%p213) target = $region12
      $region11: #{a_call__.3} parent=5 // pred_region
        %s217 = ssub.s32 %s17, 1
      $region12: #{a_call__.3} parent=5 // pred_fallthru
        _
      %p218 = scmp.lt.s32.totalorder %s17, 2
      // Predicated region
      $region13: #{a_call__.3} parent=5 // pred_check
        %p219 = pneg %p218
      $region14: #{a_call__.3} parent=5 // pred_check_branch
        %221 = sbr.rel (%p219) target = $region16
      $region15: #{a_call__.3} parent=5 // pred_region
        // Predicated region
        $region17: #{a_call__.3} parent=15 // pred_check
          %p222 = pneg %p57
        $region18: #{a_call__.3} parent=15 // pred_check_branch
          %224 = sbr.rel (%p222) target = $region20
        $region19: #{a_call__.3} parent=15 // pred_region
          %s225 = smul.u32 %s25, 2
          %s226 = ssub.s32 0, %s225
          %s227 = smul.u32 %s24, %s226
          %s228 = sadd.s32 %s25, %s227
          %s229 = smul.u32 8, %s228
          %p230 = scmp.lt.s32.totalorder %s229, 7
          %s231 = scalar_select %p230, %s229, 7
          %s232 = smul.addr %s231, 2
          %s233 = smul.addr %s232, 8
          %s234 = scalar_lea.vmem %s0, %s233
          %s235 = smul.u32 %s25, 2
          %s236 = ssub.s32 0, %s235
          %s237 = smul.u32 %s24, %s236
          %s238 = sadd.s32 %s25, %s237
          %s239 = smul.u32 8, %s238
        $region20: #{a_call__.3} parent=15 // pred_fallthru
          _
        // Predicated region
        $region21: #{a_call__.3} parent=15 // pred_check
          %p240 = pneg %p83
        $region22: #{a_call__.3} parent=15 // pred_check_branch
          %242 = sbr.rel (%p240) target = $region24
        $region23: #{a_call__.3} parent=15 // pred_region
          %s243 = sand.u32 %s73, 1
          %s244 = scalar_lea.sflag [#allocation5], %s243
          %s245 = sand.u32 %s73, 1
          %s246 = smul.addr %s245, 768
          %s247 = scalar_lea.vmem [#allocation4], %s246
          %249 = vsyncadd %s244, 0
          %s250 = smul.addr %s24, 96
          %s251 = smul.addr %s250, 8
          %s252 = scalar_lea.hbm %s1, %s251
          %s253 = sshll.u32 %s252, 4
          %s254 = int_to_ptr.hbm [resolvable:$true] %s253
          %s255 = sshll.u32 %s247, 4
          %s256 = int_to_ptr.vmem [resolvable:$true] %s255
          %261 = dma.hbm_to_vmem [thread:$0]  %s254, 12288, %s256, %s244, 384, 384, 24
        $region24: #{a_call__.3} parent=15 // pred_fallthru
          _
        // Predicated region
        $region25: #{a_call__.3} parent=15 // pred_check
          %p262 = pneg %p109
        $region26: #{a_call__.3} parent=15 // pred_check_branch
          %264 = sbr.rel (%p262) target = $region28
        $region27: #{a_call__.3} parent=15 // pred_region
          %s265 = sand.u32 %s99, 1
          %s266 = scalar_lea.sflag [#allocation7], %s265
          %s267 = sand.u32 %s99, 1
          %s268 = smul.addr %s267, 384
          %s269 = scalar_lea.vmem [#allocation6], %s268
          %271 = vsyncadd %s266, 0
          %s272 = smul.addr %s24, 48
          %s273 = smul.addr %s272, 8
          %s274 = scalar_lea.hbm %s2, %s273
          %s275 = sshll.u32 %s274, 4
          %s276 = int_to_ptr.hbm [resolvable:$true] %s275
          %s277 = sshll.u32 %s269, 4
          %s278 = int_to_ptr.vmem [resolvable:$true] %s277
          %283 = dma.hbm_to_vmem [thread:$0]  %s276, 6144, %s278, %s266, 384, 384, 24
        $region28: #{a_call__.3} parent=15 // pred_fallthru
          _
        // Predicated region
        $region29: #{a_call__.3} parent=15 // pred_check
          %p284 = pneg %p135
        $region30: #{a_call__.3} parent=15 // pred_check_branch
          %286 = sbr.rel (%p284) target = $region32
        $region31: #{a_call__.3} parent=15 // pred_region
          %p287 = scmp.lt.s32.totalorder %s24, 1
          %s288 = scalar_select %p287, %s24, 1
          %s289 = smul.addr %s288, 3
          %s290 = scalar_lea.vmem %s3, %s289
        $region32: #{a_call__.3} parent=15 // pred_fallthru
          _
        // Predicated region
        $region33: #{a_call__.3} parent=15 // pred_check
          %p291 = pneg %p161
        $region34: #{a_call__.3} parent=15 // pred_check_branch
          %293 = sbr.rel (%p291) target = $region36
        $region35: #{a_call__.3} parent=15 // pred_region
          %p294 = scmp.lt.s32.totalorder %s24, 1
          %s295 = scalar_select %p294, %s24, 1
          %s296 = scalar_lea.vmem %s4, %s295
        $region36: #{a_call__.3} parent=15 // pred_fallthru
          _
      $region16: #{a_call__.3} parent=5 // pred_fallthru
        _
      %p297 = scmp.le.s32.totalorder 1, %s17
      %p298 = scmp.lt.s32.totalorder %s17, 3
      %p299 = pnand %p297, %p298
      %p300 = pneg %p299
      // Predicated region
      $region37: #{a_call__.3} parent=5 // pred_check
        _
      $region38: #{a_call__.3} parent=5 // pred_check_branch
        %302 = sbr.rel (%p299) target = $region40
      $region39: #{a_call__.3} parent=5 // pred_region
        %s303 = ssub.s32 %s17, 1
        %s304 = sand.u32 %s76, 1
        %s305 = scalar_lea.sflag [#allocation5], %s304
        %s306 = sand.u32 %s76, 1
        %s307 = smul.addr %s306, 768
        %s308 = scalar_lea.vmem [#allocation4], %s307
        // Predicated region
        $region41: #{a_call__.3} parent=39 // pred_check
          %p309 = pneg %p89
        $region42: #{a_call__.3} parent=39 // pred_check_branch
          %311 = sbr.rel (%p309) target = $region44
        $region43: #{a_call__.3} parent=39 // pred_region
          %313 = dma.done %s305, 12288
        $region44: #{a_call__.3} parent=39 // pred_fallthru
          _
        %s314 = sand.u32 %s102, 1
        %s315 = scalar_lea.sflag [#allocation7], %s314
        %s316 = sand.u32 %s102, 1
        %s317 = smul.addr %s316, 384
        %s318 = scalar_lea.vmem [#allocation6], %s317
        // Predicated region
        $region45: #{a_call__.3} parent=39 // pred_check
          %p319 = pneg %p115
        $region46: #{a_call__.3} parent=39 // pred_check_branch
          %321 = sbr.rel (%p319) target = $region48
        $region47: #{a_call__.3} parent=39 // pred_region
          %323 = dma.done %s315, 6144
        $region48: #{a_call__.3} parent=39 // pred_fallthru
          _
        %s324 = smul.u32 %s27, 2
        %s325 = ssub.s32 0, %s324
        %s326 = smul.u32 %s26, %s325
        %s327 = sadd.s32 %s27, %s326
        %s328 = smul.u32 8, %s327
        %p329 = scmp.lt.s32.totalorder %s328, 7
        %s330 = scalar_select %p329, %s328, 7
        %s331 = smul.addr %s330, 2
        %s332 = smul.addr %s331, 8
        %s333 = scalar_lea.vmem %s0, %s332
        %p334 = pneg %p63
        %p335 = pneg %p60
        %s336 = sand.u32 %s76, 1
        %s337 = scalar_lea.sflag [#allocation5], %s336
        %s338 = sand.u32 %s76, 1
        %s339 = smul.addr %s338, 768
        %s340 = scalar_lea.vmem [#allocation4], %s339
        %p341 = pneg %p89
        %p342 = pneg %p86
        %s343 = sand.u32 %s102, 1
        %s344 = scalar_lea.sflag [#allocation7], %s343
        %s345 = sand.u32 %s102, 1
        %s346 = smul.addr %s345, 384
        %s347 = scalar_lea.vmem [#allocation6], %s346
        %p348 = pneg %p115
        %p349 = pneg %p112
        %p350 = scmp.lt.s32.totalorder %s26, 1
        %s351 = scalar_select %p350, %s26, 1
        %s352 = smul.addr %s351, 3
        %s353 = scalar_lea.vmem %s3, %s352
        %p354 = pneg %p141
        %p355 = pneg %p138
        %p356 = scmp.lt.s32.totalorder %s26, 1
        %s357 = scalar_select %p356, %s26, 1
        %s358 = scalar_lea.vmem %s4, %s357
        %p359 = pneg %p167
        %p360 = pneg %p164
        %p361 = pneg %p203
        %p362 = pneg %p200
        %s363 = sand.u32 %s190, 1
        %s364 = sand.u32 %s190, 1
        %s365 = smul.addr %s364, 64
        %s366 = scalar_lea.vmem [#allocation8], %s365
        %s367 = smul.u32 %s27, 2
        %s368 = ssub.s32 0, %s367
        %s369 = smul.u32 %s26, %s368
        %s370 = sadd.s32 %s27, %s369
        %s371 = smul.u32 8, %s370
        %p372 = scmp.lt.s32.totalorder %s371, 7
        %s373 = scalar_select %p372, %s371, 7
        %s374 = smul.addr %s373, 2
        %s375 = smul.addr %s374, 8
        %s376 = scalar_lea.vmem %s0, %s375
        %s377 = smul.u32 %s27, 2
        %s378 = ssub.s32 0, %s377
        %s379 = smul.u32 %s26, %s378
        %s380 = sadd.s32 %s27, %s379
        %s381 = smul.u32 8, %s380
        %p382 = scmp.lt.s32.totalorder %s26, 1
        %s383 = scalar_select %p382, %s26, 1
        %s384 = smul.addr %s383, 3
        %s385 = scalar_lea.vmem %s3, %s384
        %p386 = scmp.lt.s32.totalorder %s26, 1
        %s387 = scalar_select %p386, %s26, 1
        %s388 = scalar_lea.vmem %s4, %s387
        %s389 = smul.u32 %s27, 2
        %s390 = ssub.s32 0, %s389
        %s391 = smul.u32 %s26, %s390
        %s392 = sadd.s32 %s27, %s391
        %s393 = smul.u32 8, %s392
        %p394 = scmp.eq.s32.totalorder %s27, 0
        // Predicated region
        $region49: #{a_call__.3} parent=39 // pred_check
          %p395 = pneg %p394
        $region50: #{a_call__.3} parent=39 // pred_check_branch
          %397 = sbr.rel (%p395) target = $region52
        $region51: #{a_call__.3} parent=39 // pred_region
          %398 = vst [vmem:[#allocation3] sm:$0xff] 0.0
        $region52: #{a_call__.3} parent=39 // pred_fallthru
          _
        %v399 = vld [vmem:[%s376] sm:$0xff]
        %v400 = vld [vmem:[%s376 + $0x8] sm:$0xff]
        %v401 = vld [vmem:[%s376 + $0x10] sm:$0xff]
        %v402 = vld [vmem:[%s376 + $0x18] sm:$0xff]
        %v403 = vld [vmem:[%s376 + $0x20] sm:$0xff]
        %v404 = vld [vmem:[%s376 + $0x28] sm:$0xff]
        %v405 = vld [vmem:[%s376 + $0x30] sm:$0xff]
        %v406 = vld [vmem:[%s376 + $0x38] sm:$0xff]
        %v407 = vld [vmem:[%s376 + $0x40] sm:$0xff]
        %v408 = vld [vmem:[%s376 + $0x48] sm:$0xff]
        %v409 = vld [vmem:[%s376 + $0x50] sm:$0xff]
        %v410 = vld [vmem:[%s376 + $0x58] sm:$0xff]
        %v411 = vld [vmem:[%s376 + $0x60] sm:$0xff]
        %v412 = vld [vmem:[%s376 + $0x68] sm:$0xff]
        %v413 = vld [vmem:[%s376 + $0x70] sm:$0xff]
        %v414 = vld [vmem:[%s376 + $0x78] sm:$0xff]
        %v415 = vld [vmem:[%s308] sm:$0xff]
        %v416 = vld [vmem:[%s308 + $0x8] sm:$0xff]
        %v417 = vld [vmem:[%s308 + $0x10] sm:$0xff]
        %v418 = vld [vmem:[%s308 + $0x18] sm:$0xff]
        %v419 = vld [vmem:[%s308 + $0x20] sm:$0xff]
        %v420 = vld [vmem:[%s308 + $0x28] sm:$0xff]
        %v421 = vld [vmem:[%s308 + $0x30] sm:$0xff]
        %v422 = vld [vmem:[%s308 + $0x38] sm:$0xff]
        %v423 = vld [vmem:[%s308 + $0x40] sm:$0xff]
        %v424 = vld [vmem:[%s308 + $0x48] sm:$0xff]
        %v425 = vld [vmem:[%s308 + $0x50] sm:$0xff]
        %v426 = vld [vmem:[%s308 + $0x58] sm:$0xff]
        %v427 = vld [vmem:[%s308 + $0x60] sm:$0xff]
        %v428 = vld [vmem:[%s308 + $0x68] sm:$0xff]
        %v429 = vld [vmem:[%s308 + $0x70] sm:$0xff]
        %v430 = vld [vmem:[%s308 + $0x78] sm:$0xff]
        %v431 = vld [vmem:[%s308 + $0x80] sm:$0xff]
        %v432 = vld [vmem:[%s308 + $0x88] sm:$0xff]
        %v433 = vld [vmem:[%s308 + $0x90] sm:$0xff]
        %v434 = vld [vmem:[%s308 + $0x98] sm:$0xff]
        %v435 = vld [vmem:[%s308 + $0xa0] sm:$0xff]
        %v436 = vld [vmem:[%s308 + $0xa8] sm:$0xff]
        %v437 = vld [vmem:[%s308 + $0xb0] sm:$0xff]
        %v438 = vld [vmem:[%s308 + $0xb8] sm:$0xff]
        %v439 = vld [vmem:[%s308 + $0xc0] sm:$0xff]
        %v440 = vld [vmem:[%s308 + $0xc8] sm:$0xff]
        %v441 = vld [vmem:[%s308 + $0xd0] sm:$0xff]
        %v442 = vld [vmem:[%s308 + $0xd8] sm:$0xff]
        %v443 = vld [vmem:[%s308 + $0xe0] sm:$0xff]
        %v444 = vld [vmem:[%s308 + $0xe8] sm:$0xff]
        %v445 = vld [vmem:[%s308 + $0xf0] sm:$0xff]
        %v446 = vld [vmem:[%s308 + $0xf8] sm:$0xff]
        %v447 = vld [vmem:[%s308 + $0x100] sm:$0xff]
        %v448 = vld [vmem:[%s308 + $0x108] sm:$0xff]
        %v449 = vld [vmem:[%s308 + $0x110] sm:$0xff]
        %v450 = vld [vmem:[%s308 + $0x118] sm:$0xff]
        %v451 = vld [vmem:[%s308 + $0x120] sm:$0xff]
        %v452 = vld [vmem:[%s308 + $0x128] sm:$0xff]
        %v453 = vld [vmem:[%s308 + $0x130] sm:$0xff]
        %v454 = vld [vmem:[%s308 + $0x138] sm:$0xff]
        %v455 = vld [vmem:[%s308 + $0x140] sm:$0xff]
        %v456 = vld [vmem:[%s308 + $0x148] sm:$0xff]
        %v457 = vld [vmem:[%s308 + $0x150] sm:$0xff]
        %v458 = vld [vmem:[%s308 + $0x158] sm:$0xff]
        %v459 = vld [vmem:[%s308 + $0x160] sm:$0xff]
        %v460 = vld [vmem:[%s308 + $0x168] sm:$0xff]
        %v461 = vld [vmem:[%s308 + $0x170] sm:$0xff]
        %v462 = vld [vmem:[%s308 + $0x178] sm:$0xff]
        %v463 = vld [vmem:[%s308 + $0x180] sm:$0xff]
        %v464 = vld [vmem:[%s308 + $0x188] sm:$0xff]
        %v465 = vld [vmem:[%s308 + $0x190] sm:$0xff]
        %v466 = vld [vmem:[%s308 + $0x198] sm:$0xff]
        %v467 = vld [vmem:[%s308 + $0x1a0] sm:$0xff]
        %v468 = vld [vmem:[%s308 + $0x1a8] sm:$0xff]
        %v469 = vld [vmem:[%s308 + $0x1b0] sm:$0xff]
        %v470 = vld [vmem:[%s308 + $0x1b8] sm:$0xff]
        %v471 = vld [vmem:[%s308 + $0x1c0] sm:$0xff]
        %v472 = vld [vmem:[%s308 + $0x1c8] sm:$0xff]
        %v473 = vld [vmem:[%s308 + $0x1d0] sm:$0xff]
        %v474 = vld [vmem:[%s308 + $0x1d8] sm:$0xff]
        %v475 = vld [vmem:[%s308 + $0x1e0] sm:$0xff]
        %v476 = vld [vmem:[%s308 + $0x1e8] sm:$0xff]
        %v477 = vld [vmem:[%s308 + $0x1f0] sm:$0xff]
        %v478 = vld [vmem:[%s308 + $0x1f8] sm:$0xff]
        %v479 = vld [vmem:[%s308 + $0x200] sm:$0xff]
        %v480 = vld [vmem:[%s308 + $0x208] sm:$0xff]
        %v481 = vld [vmem:[%s308 + $0x210] sm:$0xff]
        %v482 = vld [vmem:[%s308 + $0x218] sm:$0xff]
        %v483 = vld [vmem:[%s308 + $0x220] sm:$0xff]
        %v484 = vld [vmem:[%s308 + $0x228] sm:$0xff]
        %v485 = vld [vmem:[%s308 + $0x230] sm:$0xff]
        %v486 = vld [vmem:[%s308 + $0x238] sm:$0xff]
        %v487 = vld [vmem:[%s308 + $0x240] sm:$0xff]
        %v488 = vld [vmem:[%s308 + $0x248] sm:$0xff]
        %v489 = vld [vmem:[%s308 + $0x250] sm:$0xff]
        %v490 = vld [vmem:[%s308 + $0x258] sm:$0xff]
        %v491 = vld [vmem:[%s308 + $0x260] sm:$0xff]
        %v492 = vld [vmem:[%s308 + $0x268] sm:$0xff]
        %v493 = vld [vmem:[%s308 + $0x270] sm:$0xff]
        %v494 = vld [vmem:[%s308 + $0x278] sm:$0xff]
        %v495 = vld [vmem:[%s308 + $0x280] sm:$0xff]
        %v496 = vld [vmem:[%s308 + $0x288] sm:$0xff]
        %v497 = vld [vmem:[%s308 + $0x290] sm:$0xff]
        %v498 = vld [vmem:[%s308 + $0x298] sm:$0xff]
        %v499 = vld [vmem:[%s308 + $0x2a0] sm:$0xff]
        %v500 = vld [vmem:[%s308 + $0x2a8] sm:$0xff]
        %v501 = vld [vmem:[%s308 + $0x2b0] sm:$0xff]
        %v502 = vld [vmem:[%s308 + $0x2b8] sm:$0xff]
        %v503 = vld [vmem:[%s308 + $0x2c0] sm:$0xff]
        %v504 = vld [vmem:[%s308 + $0x2c8] sm:$0xff]
        %v505 = vld [vmem:[%s308 + $0x2d0] sm:$0xff]
        %v506 = vld [vmem:[%s308 + $0x2d8] sm:$0xff]
        %v507 = vld [vmem:[%s308 + $0x2e0] sm:$0xff]
        %v508 = vld [vmem:[%s308 + $0x2e8] sm:$0xff]
        %v509 = vld [vmem:[%s308 + $0x2f0] sm:$0xff]
        %v510 = vld [vmem:[%s308 + $0x2f8] sm:$0xff]
        %v511 = vld [vmem:[%s385] sm:$0x7]
        %v513 = vperm.slane %v511, 0
        %v514 = vperm.slane %v511, 1
        %v515 = vperm.slane %v511, 2
        %519 = vmatpush.msra.mxu0 %v460
        %520 = vmatpush.msra.mxu0 %v457
        %521 = vmatpush.msra.mxu0 %v454
        %522 = vmatpush.msra.mxu0 %v451
        %523 = vmatpush.msra.mxu0 %v448
        %524 = vmatpush.msra.mxu0 %v445
        %525 = vmatpush.msra.mxu0 %v442
        %526 = vmatpush.msra.mxu0 %v439
        %527 = vmatpush.msra.mxu0 %v436
        %528 = vmatpush.msra.mxu0 %v433
        %529 = vmatpush.msra.mxu0 %v430
        %530 = vmatpush.msra.mxu0 %v427
        %531 = vmatpush.msra.mxu0 %v424
        %532 = vmatpush.msra.mxu0 %v421
        %533 = vmatpush.msra.mxu0 %v418
        %534 = vmatpush.msra.mxu0 %v415
        %535 = vmatmul.f32.gmra.mxu0 %v399
        %v536 = vpop.f32.mrf.mxu0
        %v537 = vadd.f32 %v513, %v536
        %538 = vmatmul.f32.gmra.mxu0 %v401
        %v539 = vpop.f32.mrf.mxu0
        %v540 = vadd.f32 %v513, %v539
        %541 = vmatmul.f32.gmra.mxu0 %v403
        %v542 = vpop.f32.mrf.mxu0
        %v543 = vadd.f32 %v513, %v542
        %544 = vmatmul.f32.gmra.mxu0 %v405
        %v545 = vpop.f32.mrf.mxu0
        %v546 = vadd.f32 %v513, %v545
        %547 = vmatmul.f32.gmra.mxu0 %v407
        %v548 = vpop.f32.mrf.mxu0
        %v549 = vadd.f32 %v513, %v548
        %550 = vmatmul.f32.gmra.mxu0 %v409
        %v551 = vpop.f32.mrf.mxu0
        %v552 = vadd.f32 %v513, %v551
        %553 = vmatmul.f32.gmra.mxu0 %v411
        %v554 = vpop.f32.mrf.mxu0
        %v555 = vadd.f32 %v513, %v554
        %556 = vmatmul.f32.gmra.mxu0 %v413
        %v557 = vpop.f32.mrf.mxu0
        %v558 = vadd.f32 %v513, %v557
        %559 = vdwg.mxu0
        %560 = vmatpush.msra.mxu0 %v508
        %561 = vmatpush.msra.mxu0 %v505
        %562 = vmatpush.msra.mxu0 %v502
        %563 = vmatpush.msra.mxu0 %v499
        %564 = vmatpush.msra.mxu0 %v496
        %565 = vmatpush.msra.mxu0 %v493
        %566 = vmatpush.msra.mxu0 %v490
        %567 = vmatpush.msra.mxu0 %v487
        %568 = vmatpush.msra.mxu0 %v484
        %569 = vmatpush.msra.mxu0 %v481
        %570 = vmatpush.msra.mxu0 %v478
        %571 = vmatpush.msra.mxu0 %v475
        %572 = vmatpush.msra.mxu0 %v472
        %573 = vmatpush.msra.mxu0 %v469
        %574 = vmatpush.msra.mxu0 %v466
        %575 = vmatpush.msra.mxu0 %v463
        %576 = vmatmul.f32.gmra.mxu0 %v400
        %v577 = vpop.f32.mrf.mxu0
        %v578 = vadd.f32 %v537, %v577
        %579 = vmatmul.f32.gmra.mxu0 %v402
        %v580 = vpop.f32.mrf.mxu0
        %v581 = vadd.f32 %v540, %v580
        %582 = vmatmul.f32.gmra.mxu0 %v404
        %v583 = vpop.f32.mrf.mxu0
        %v584 = vadd.f32 %v543, %v583
        %585 = vmatmul.f32.gmra.mxu0 %v406
        %v586 = vpop.f32.mrf.mxu0
        %v587 = vadd.f32 %v546, %v586
        %588 = vmatmul.f32.gmra.mxu0 %v408
        %v589 = vpop.f32.mrf.mxu0
        %v590 = vadd.f32 %v549, %v589
        %591 = vmatmul.f32.gmra.mxu0 %v410
        %v592 = vpop.f32.mrf.mxu0
        %v593 = vadd.f32 %v552, %v592
        %594 = vmatmul.f32.gmra.mxu0 %v412
        %v595 = vpop.f32.mrf.mxu0
        %v596 = vadd.f32 %v555, %v595
        %597 = vmatmul.f32.gmra.mxu0 %v414
        %v598 = vpop.f32.mrf.mxu0
        %v599 = vadd.f32 %v558, %v598
        %600 = vdwg.mxu0
        %601 = vmatpush.msra.mxu0 %v461
        %602 = vmatpush.msra.mxu0 %v458
        %603 = vmatpush.msra.mxu0 %v455
        %604 = vmatpush.msra.mxu0 %v452
        %605 = vmatpush.msra.mxu0 %v449
        %606 = vmatpush.msra.mxu0 %v446
        %607 = vmatpush.msra.mxu0 %v443
        %608 = vmatpush.msra.mxu0 %v440
        %609 = vmatpush.msra.mxu0 %v437
        %610 = vmatpush.msra.mxu0 %v434
        %611 = vmatpush.msra.mxu0 %v431
        %612 = vmatpush.msra.mxu0 %v428
        %613 = vmatpush.msra.mxu0 %v425
        %614 = vmatpush.msra.mxu0 %v422
        %615 = vmatpush.msra.mxu0 %v419
        %616 = vmatpush.msra.mxu0 %v416
        %617 = vmatmul.f32.gmra.mxu0 %v399
        %v618 = vpop.f32.mrf.mxu0
        %v619 = vadd.f32 %v514, %v618
        %620 = vmatmul.f32.gmra.mxu0 %v401
        %v621 = vpop.f32.mrf.mxu0
        %v622 = vadd.f32 %v514, %v621
        %623 = vmatmul.f32.gmra.mxu0 %v403
        %v624 = vpop.f32.mrf.mxu0
        %v625 = vadd.f32 %v514, %v624
        %626 = vmatmul.f32.gmra.mxu0 %v405
        %v627 = vpop.f32.mrf.mxu0
        %v628 = vadd.f32 %v514, %v627
        %629 = vmatmul.f32.gmra.mxu0 %v407
        %v630 = vpop.f32.mrf.mxu0
        %v631 = vadd.f32 %v514, %v630
        %632 = vmatmul.f32.gmra.mxu0 %v409
        %v633 = vpop.f32.mrf.mxu0
        %v634 = vadd.f32 %v514, %v633
        %635 = vmatmul.f32.gmra.mxu0 %v411
        %v636 = vpop.f32.mrf.mxu0
        %v637 = vadd.f32 %v514, %v636
        %638 = vmatmul.f32.gmra.mxu0 %v413
        %v639 = vpop.f32.mrf.mxu0
        %v640 = vadd.f32 %v514, %v639
        %641 = vdwg.mxu0
        %642 = vmatpush.msra.mxu0 %v509
        %643 = vmatpush.msra.mxu0 %v506
        %644 = vmatpush.msra.mxu0 %v503
        %645 = vmatpush.msra.mxu0 %v500
        %646 = vmatpush.msra.mxu0 %v497
        %647 = vmatpush.msra.mxu0 %v494
        %648 = vmatpush.msra.mxu0 %v491
        %649 = vmatpush.msra.mxu0 %v488
        %650 = vmatpush.msra.mxu0 %v485
        %651 = vmatpush.msra.mxu0 %v482
        %652 = vmatpush.msra.mxu0 %v479
        %653 = vmatpush.msra.mxu0 %v476
        %654 = vmatpush.msra.mxu0 %v473
        %655 = vmatpush.msra.mxu0 %v470
        %656 = vmatpush.msra.mxu0 %v467
        %657 = vmatpush.msra.mxu0 %v464
        %658 = vmatmul.f32.gmra.mxu0 %v400
        %v659 = vpop.f32.mrf.mxu0
        %v660 = vadd.f32 %v619, %v659
        %661 = vmatmul.f32.gmra.mxu0 %v402
        %v662 = vpop.f32.mrf.mxu0
        %v663 = vadd.f32 %v622, %v662
        %664 = vmatmul.f32.gmra.mxu0 %v404
        %v665 = vpop.f32.mrf.mxu0
        %v666 = vadd.f32 %v625, %v665
        %667 = vmatmul.f32.gmra.mxu0 %v406
        %v668 = vpop.f32.mrf.mxu0
        %v669 = vadd.f32 %v628, %v668
        %670 = vmatmul.f32.gmra.mxu0 %v408
        %v671 = vpop.f32.mrf.mxu0
        %v672 = vadd.f32 %v631, %v671
        %673 = vmatmul.f32.gmra.mxu0 %v410
        %v674 = vpop.f32.mrf.mxu0
        %v675 = vadd.f32 %v634, %v674
        %676 = vmatmul.f32.gmra.mxu0 %v412
        %v677 = vpop.f32.mrf.mxu0
        %v678 = vadd.f32 %v637, %v677
        %679 = vmatmul.f32.gmra.mxu0 %v414
        %v680 = vpop.f32.mrf.mxu0
        %v681 = vadd.f32 %v640, %v680
        %682 = vdwg.mxu0
        %683 = vmatpush.msra.mxu0 %v462
        %684 = vmatpush.msra.mxu0 %v459
        %685 = vmatpush.msra.mxu0 %v456
        %686 = vmatpush.msra.mxu0 %v453
        %687 = vmatpush.msra.mxu0 %v450
        %688 = vmatpush.msra.mxu0 %v447
        %689 = vmatpush.msra.mxu0 %v444
        %690 = vmatpush.msra.mxu0 %v441
        %691 = vmatpush.msra.mxu0 %v438
        %692 = vmatpush.msra.mxu0 %v435
        %693 = vmatpush.msra.mxu0 %v432
        %694 = vmatpush.msra.mxu0 %v429
        %695 = vmatpush.msra.mxu0 %v426
        %696 = vmatpush.msra.mxu0 %v423
        %697 = vmatpush.msra.mxu0 %v420
        %698 = vmatpush.msra.mxu0 %v417
        %699 = vmatmul.f32.gmra.mxu0 %v399
        %v700 = vpop.f32.mrf.mxu0
        %v701 = vadd.f32 %v515, %v700
        %702 = vmatmul.f32.gmra.mxu0 %v401
        %v703 = vpop.f32.mrf.mxu0
        %v704 = vadd.f32 %v515, %v703
        %705 = vmatmul.f32.gmra.mxu0 %v403
        %v706 = vpop.f32.mrf.mxu0
        %v707 = vadd.f32 %v515, %v706
        %708 = vmatmul.f32.gmra.mxu0 %v405
        %v709 = vpop.f32.mrf.mxu0
        %v710 = vadd.f32 %v515, %v709
        %711 = vmatmul.f32.gmra.mxu0 %v407
        %v712 = vpop.f32.mrf.mxu0
        %v713 = vadd.f32 %v515, %v712
        %714 = vmatmul.f32.gmra.mxu0 %v409
        %v715 = vpop.f32.mrf.mxu0
        %v716 = vadd.f32 %v515, %v715
        %717 = vmatmul.f32.gmra.mxu0 %v411
        %v718 = vpop.f32.mrf.mxu0
        %v719 = vadd.f32 %v515, %v718
        %720 = vmatmul.f32.gmra.mxu0 %v413
        %v721 = vpop.f32.mrf.mxu0
        %v722 = vadd.f32 %v515, %v721
        %723 = vdwg.mxu0
        %724 = vmatpush.msra.mxu0 %v510
        %725 = vmatpush.msra.mxu0 %v507
        %726 = vmatpush.msra.mxu0 %v504
        %727 = vmatpush.msra.mxu0 %v501
        %728 = vmatpush.msra.mxu0 %v498
        %729 = vmatpush.msra.mxu0 %v495
        %730 = vmatpush.msra.mxu0 %v492
        %731 = vmatpush.msra.mxu0 %v489
        %732 = vmatpush.msra.mxu0 %v486
        %733 = vmatpush.msra.mxu0 %v483
        %734 = vmatpush.msra.mxu0 %v480
        %735 = vmatpush.msra.mxu0 %v477
        %736 = vmatpush.msra.mxu0 %v474
        %737 = vmatpush.msra.mxu0 %v471
        %738 = vmatpush.msra.mxu0 %v468
        %739 = vmatpush.msra.mxu0 %v465
        %740 = vmatmul.f32.gmra.mxu0 %v400
        %v741 = vpop.f32.mrf.mxu0
        %v742 = vadd.f32 %v701, %v741
        %743 = vmatmul.f32.gmra.mxu0 %v402
        %v744 = vpop.f32.mrf.mxu0
        %v745 = vadd.f32 %v704, %v744
        %746 = vmatmul.f32.gmra.mxu0 %v404
        %v747 = vpop.f32.mrf.mxu0
        %v748 = vadd.f32 %v707, %v747
        %749 = vmatmul.f32.gmra.mxu0 %v406
        %v750 = vpop.f32.mrf.mxu0
        %v751 = vadd.f32 %v710, %v750
        %752 = vmatmul.f32.gmra.mxu0 %v408
        %v753 = vpop.f32.mrf.mxu0
        %v754 = vadd.f32 %v713, %v753
        %755 = vmatmul.f32.gmra.mxu0 %v410
        %v756 = vpop.f32.mrf.mxu0
        %v757 = vadd.f32 %v716, %v756
        %758 = vmatmul.f32.gmra.mxu0 %v412
        %v759 = vpop.f32.mrf.mxu0
        %v760 = vadd.f32 %v719, %v759
        %761 = vmatmul.f32.gmra.mxu0 %v414
        %v762 = vpop.f32.mrf.mxu0
        %v763 = vadd.f32 %v722, %v762
        %764 = vdwg.mxu0
        %765 = vst [vmem:[#allocation2] sm:$0xff] %v578
        %766 = vst [vmem:[#allocation2 + $0x8] sm:$0xff] %v660
        %767 = vst [vmem:[#allocation2 + $0x10] sm:$0xff] %v742
        %768 = vst [vmem:[#allocation2 + $0x18] sm:$0xff] %v581
        %769 = vst [vmem:[#allocation2 + $0x20] sm:$0xff] %v663
        %770 = vst [vmem:[#allocation2 + $0x28] sm:$0xff] %v745
        %771 = vst [vmem:[#allocation2 + $0x30] sm:$0xff] %v584
        %772 = vst [vmem:[#allocation2 + $0x38] sm:$0xff] %v666
        %773 = vst [vmem:[#allocation2 + $0x40] sm:$0xff] %v748
        %774 = vst [vmem:[#allocation2 + $0x48] sm:$0xff] %v587
        %775 = vst [vmem:[#allocation2 + $0x50] sm:$0xff] %v669
        %776 = vst [vmem:[#allocation2 + $0x58] sm:$0xff] %v751
        %777 = vst [vmem:[#allocation2 + $0x60] sm:$0xff] %v590
        %778 = vst [vmem:[#allocation2 + $0x68] sm:$0xff] %v672
        %779 = vst [vmem:[#allocation2 + $0x70] sm:$0xff] %v754
        %780 = vst [vmem:[#allocation2 + $0x78] sm:$0xff] %v593
        %781 = vst [vmem:[#allocation2 + $0x80] sm:$0xff] %v675
        %782 = vst [vmem:[#allocation2 + $0x88] sm:$0xff] %v757
        %783 = vst [vmem:[#allocation2 + $0x90] sm:$0xff] %v596
        %784 = vst [vmem:[#allocation2 + $0x98] sm:$0xff] %v678
        %785 = vst [vmem:[#allocation2 + $0xa0] sm:$0xff] %v760
        %786 = vst [vmem:[#allocation2 + $0xa8] sm:$0xff] %v599
        %787 = vst [vmem:[#allocation2 + $0xb0] sm:$0xff] %v681
        %788 = vst [vmem:[#allocation2 + $0xb8] sm:$0xff] %v763
        %v789 = vld [vmem:[%s318] sm:$0xff]
        %v790 = vld [vmem:[%s318 + $0x8] sm:$0xff]
        %v791 = vld [vmem:[%s318 + $0x10] sm:$0xff]
        %v792 = vld [vmem:[%s318 + $0x18] sm:$0xff]
        %v793 = vld [vmem:[%s318 + $0x20] sm:$0xff]
        %v794 = vld [vmem:[%s318 + $0x28] sm:$0xff]
        %v795 = vld [vmem:[%s318 + $0x30] sm:$0xff]
        %v796 = vld [vmem:[%s318 + $0x38] sm:$0xff]
        %v797 = vld [vmem:[%s318 + $0x40] sm:$0xff]
        %v798 = vld [vmem:[%s318 + $0x48] sm:$0xff]
        %v799 = vld [vmem:[%s318 + $0x50] sm:$0xff]
        %v800 = vld [vmem:[%s318 + $0x58] sm:$0xff]
        %v801 = vld [vmem:[%s318 + $0x60] sm:$0xff]
        %v802 = vld [vmem:[%s318 + $0x68] sm:$0xff]
        %v803 = vld [vmem:[%s318 + $0x70] sm:$0xff]
        %v804 = vld [vmem:[%s318 + $0x78] sm:$0xff]
        %v805 = vld [vmem:[%s318 + $0x80] sm:$0xff]
        %v806 = vld [vmem:[%s318 + $0x88] sm:$0xff]
        %v807 = vld [vmem:[%s318 + $0x90] sm:$0xff]
        %v808 = vld [vmem:[%s318 + $0x98] sm:$0xff]
        %v809 = vld [vmem:[%s318 + $0xa0] sm:$0xff]
        %v810 = vld [vmem:[%s318 + $0xa8] sm:$0xff]
        %v811 = vld [vmem:[%s318 + $0xb0] sm:$0xff]
        %v812 = vld [vmem:[%s318 + $0xb8] sm:$0xff]
        %v813 = vld [vmem:[%s318 + $0xc0] sm:$0xff]
        %v814 = vld [vmem:[%s318 + $0xc8] sm:$0xff]
        %v815 = vld [vmem:[%s318 + $0xd0] sm:$0xff]
        %v816 = vld [vmem:[%s318 + $0xd8] sm:$0xff]
        %v817 = vld [vmem:[%s318 + $0xe0] sm:$0xff]
        %v818 = vld [vmem:[%s318 + $0xe8] sm:$0xff]
        %v819 = vld [vmem:[%s318 + $0xf0] sm:$0xff]
        %v820 = vld [vmem:[%s318 + $0xf8] sm:$0xff]
        %v821 = vld [vmem:[%s318 + $0x100] sm:$0xff]
        %v822 = vld [vmem:[%s318 + $0x108] sm:$0xff]
        %v823 = vld [vmem:[%s318 + $0x110] sm:$0xff]
        %v824 = vld [vmem:[%s318 + $0x118] sm:$0xff]
        %v825 = vld [vmem:[%s318 + $0x120] sm:$0xff]
        %v826 = vld [vmem:[%s318 + $0x128] sm:$0xff]
        %v827 = vld [vmem:[%s318 + $0x130] sm:$0xff]
        %v828 = vld [vmem:[%s318 + $0x138] sm:$0xff]
        %v829 = vld [vmem:[%s318 + $0x140] sm:$0xff]
        %v830 = vld [vmem:[%s318 + $0x148] sm:$0xff]
        %v831 = vld [vmem:[%s318 + $0x150] sm:$0xff]
        %v832 = vld [vmem:[%s318 + $0x158] sm:$0xff]
        %v833 = vld [vmem:[%s318 + $0x160] sm:$0xff]
        %v834 = vld [vmem:[%s318 + $0x168] sm:$0xff]
        %v835 = vld [vmem:[%s318 + $0x170] sm:$0xff]
        %v836 = vld [vmem:[%s318 + $0x178] sm:$0xff]
        %v837 = vld [vmem:[%s388] sm:$0x1]
        %v838 = vld [vmem:[#allocation3] sm:$0xff]
        %s839 = smul.u32 %s26, 56
        %s840 = sshra.s32 %s839, 3
        %s841 = sand.u32 %s839, 7
        %s842 = smul.u32 %s840, 3
        %s843 = smul.addr %s842, 8
        %s844 = scalar_lea.vmem [#allocation2], %s843
        %v845 = vld [vmem:[%s844] sm:$0xff]
        %v846 = vld [vmem:[%s844 + $0x8] sm:$0xff]
        %v847 = vld [vmem:[%s844 + $0x10] sm:$0xff]
        %848 = vmatpush.msra.mxu0 %v834
        %849 = vmatpush.msra.mxu0 %v831
        %850 = vmatpush.msra.mxu0 %v828
        %851 = vmatpush.msra.mxu0 %v825
        %852 = vmatpush.msra.mxu0 %v822
        %853 = vmatpush.msra.mxu0 %v819
        %854 = vmatpush.msra.mxu0 %v816
        %855 = vmatpush.msra.mxu0 %v813
        %856 = vmatpush.msra.mxu0 %v810
        %857 = vmatpush.msra.mxu0 %v807
        %858 = vmatpush.msra.mxu0 %v804
        %859 = vmatpush.msra.mxu0 %v801
        %860 = vmatpush.msra.mxu0 %v798
        %861 = vmatpush.msra.mxu0 %v795
        %862 = vmatpush.msra.mxu0 %v792
        %863 = vmatpush.msra.mxu0 %v789
        %864 = vmatmul.f32.gmra.mxu0 %v838
        %v865 = vpop.f32.mrf.mxu0
        %v866 = vadd.f32 0.0, %v865
        %867 = vdwg.mxu0
        %868 = vmatpush.msra.mxu0 %v835
        %869 = vmatpush.msra.mxu0 %v832
        %870 = vmatpush.msra.mxu0 %v829
        %871 = vmatpush.msra.mxu0 %v826
        %872 = vmatpush.msra.mxu0 %v823
        %873 = vmatpush.msra.mxu0 %v820
        %874 = vmatpush.msra.mxu0 %v817
        %875 = vmatpush.msra.mxu0 %v814
        %876 = vmatpush.msra.mxu0 %v811
        %877 = vmatpush.msra.mxu0 %v808
        %878 = vmatpush.msra.mxu0 %v805
        %879 = vmatpush.msra.mxu0 %v802
        %880 = vmatpush.msra.mxu0 %v799
        %881 = vmatpush.msra.mxu0 %v796
        %882 = vmatpush.msra.mxu0 %v793
        %883 = vmatpush.msra.mxu0 %v790
        %884 = vmatmul.f32.gmra.mxu0 %v838
        %v885 = vpop.f32.mrf.mxu0
        %v886 = vadd.f32 0.0, %v885
        %887 = vdwg.mxu0
        %888 = vmatpush.msra.mxu0 %v836
        %889 = vmatpush.msra.mxu0 %v833
        %890 = vmatpush.msra.mxu0 %v830
        %891 = vmatpush.msra.mxu0 %v827
        %892 = vmatpush.msra.mxu0 %v824
        %893 = vmatpush.msra.mxu0 %v821
        %894 = vmatpush.msra.mxu0 %v818
        %895 = vmatpush.msra.mxu0 %v815
        %896 = vmatpush.msra.mxu0 %v812
        %897 = vmatpush.msra.mxu0 %v809
        %898 = vmatpush.msra.mxu0 %v806
        %899 = vmatpush.msra.mxu0 %v803
        %900 = vmatpush.msra.mxu0 %v800
        %901 = vmatpush.msra.mxu0 %v797
        %902 = vmatpush.msra.mxu0 %v794
        %903 = vmatpush.msra.mxu0 %v791
        %904 = vmatmul.f32.gmra.mxu0 %v838
        %v905 = vpop.f32.mrf.mxu0
        %v906 = vadd.f32 0.0, %v905
        %907 = vdwg.mxu0
        %v908 = vadd.f32 %v845, %v866
        %v909 = vxor.u32 %v908, 2147483648
        %v910 = vmul.f32 %v909, 1.442695
        %v911 = vpow.pop %v910
        %v912 = vadd.f32 %v911, 1.0
        %v913 = vrcp.pop %v912
        %v914 = vmul.f32 %v912, %v913
        %v915 = vsub.f32 1.0, %v914
        %v916 = vmul.f32 %v913, %v915
        %v917 = vadd.f32 %v913, %v916
        %vm918 = vweird.f32 %v912
        %vm919 = vweird.f32 %v913
        %vm920 = vmor %vm918, %vm919
        %v921 = vsel %vm920, %v913, %v917
        %v922 = vand.u32 2147483647, %v912
        %vm923 = vcmp.eq.f32.partialorder %v922, 8.507059e+37
        %v924 = vand.u32 %v912, 2147483648
        %v925 = vor.u32 1.1754944e-38, %v924
        %v926 = vsel %vm923, %v925, %v921
        %v927 = vmul.f32 1.0, %v926
        %v928 = vadd.f32 %v846, %v886
        %v929 = vxor.u32 %v928, 2147483648
        %v930 = vmul.f32 %v929, 1.442695
        %v931 = vpow.pop %v930
        %v932 = vadd.f32 %v931, 1.0
        %v933 = vrcp.pop %v932
        %v934 = vmul.f32 %v932, %v933
        %v935 = vsub.f32 1.0, %v934
        %v936 = vmul.f32 %v933, %v935
        %v937 = vadd.f32 %v933, %v936
        %vm938 = vweird.f32 %v932
        %vm939 = vweird.f32 %v933
        %vm940 = vmor %vm938, %vm939
        %v941 = vsel %vm940, %v933, %v937
        %v942 = vand.u32 2147483647, %v932
        %vm943 = vcmp.eq.f32.partialorder %v942, 8.507059e+37
        %v944 = vand.u32 %v932, 2147483648
        %v945 = vor.u32 1.1754944e-38, %v944
        %v946 = vsel %vm943, %v945, %v941
        %v947 = vmul.f32 1.0, %v946
        %v949 = vperm.slane %v837, 0
        %v951 = vadd.f32 %v906, %v949
        %v952 = vmul.f32 %v927, %v951
        %v953 = vadd.f32 %v847, %v952
        %v954 = vtanh.pop %v953
        %v955 = vsub.f32 1.0, %v947
        %v956 = vmul.f32 %v955, %v954
        %v957 = vmul.f32 %v947, %v838
        %v958 = vadd.f32 %v956, %v957
        %s959 = scalar_lea.vmem %s366, %s839 [#allocation8]
        %960 = vst [vmem:[%s959] sm:$0xff] %v958
        %s961 = smul.u32 %s26, 5
        %s962 = sadd.s32 %s961, 1
        %s963 = smul.u32 %s962, 8
        %s964 = sshra.s32 %s963, 3
        %s965 = sand.u32 %s963, 7
        %s966 = smul.u32 %s964, 3
        %s967 = smul.addr %s966, 8
        %s968 = scalar_lea.vmem [#allocation2], %s967
        %v969 = vld [vmem:[%s968] sm:$0xff]
        %v970 = vld [vmem:[%s968 + $0x8] sm:$0xff]
        %v971 = vld [vmem:[%s968 + $0x10] sm:$0xff]
        %972 = vmatpush.msra.mxu0 %v834
        %973 = vmatpush.msra.mxu0 %v831
        %974 = vmatpush.msra.mxu0 %v828
        %975 = vmatpush.msra.mxu0 %v825
        %976 = vmatpush.msra.mxu0 %v822
        %977 = vmatpush.msra.mxu0 %v819
        %978 = vmatpush.msra.mxu0 %v816
        %979 = vmatpush.msra.mxu0 %v813
        %980 = vmatpush.msra.mxu0 %v810
        %981 = vmatpush.msra.mxu0 %v807
        %982 = vmatpush.msra.mxu0 %v804
        %983 = vmatpush.msra.mxu0 %v801
        %984 = vmatpush.msra.mxu0 %v798
        %985 = vmatpush.msra.mxu0 %v795
        %986 = vmatpush.msra.mxu0 %v792
        %987 = vmatpush.msra.mxu0 %v789
        %988 = vmatmul.f32.gmra.mxu0 %v958
        %v989 = vpop.f32.mrf.mxu0
        %v990 = vadd.f32 0.0, %v989
        %991 = vdwg.mxu0
        %992 = vmatpush.msra.mxu0 %v835
        %993 = vmatpush.msra.mxu0 %v832
        %994 = vmatpush.msra.mxu0 %v829
        %995 = vmatpush.msra.mxu0 %v826
        %996 = vmatpush.msra.mxu0 %v823
        %997 = vmatpush.msra.mxu0 %v820
        %998 = vmatpush.msra.mxu0 %v817
        %999 = vmatpush.msra.mxu0 %v814
        %1000 = vmatpush.msra.mxu0 %v811
        %1001 = vmatpush.msra.mxu0 %v808
        %1002 = vmatpush.msra.mxu0 %v805
        %1003 = vmatpush.msra.mxu0 %v802
        %1004 = vmatpush.msra.mxu0 %v799
        %1005 = vmatpush.msra.mxu0 %v796
        %1006 = vmatpush.msra.mxu0 %v793
        %1007 = vmatpush.msra.mxu0 %v790
        %1008 = vmatmul.f32.gmra.mxu0 %v958
        %v1009 = vpop.f32.mrf.mxu0
        %v1010 = vadd.f32 0.0, %v1009
        %1011 = vdwg.mxu0
        %1012 = vmatpush.msra.mxu0 %v836
        %1013 = vmatpush.msra.mxu0 %v833
        %1014 = vmatpush.msra.mxu0 %v830
        %1015 = vmatpush.msra.mxu0 %v827
        %1016 = vmatpush.msra.mxu0 %v824
        %1017 = vmatpush.msra.mxu0 %v821
        %1018 = vmatpush.msra.mxu0 %v818
        %1019 = vmatpush.msra.mxu0 %v815
        %1020 = vmatpush.msra.mxu0 %v812
        %1021 = vmatpush.msra.mxu0 %v809
        %1022 = vmatpush.msra.mxu0 %v806
        %1023 = vmatpush.msra.mxu0 %v803
        %1024 = vmatpush.msra.mxu0 %v800
        %1025 = vmatpush.msra.mxu0 %v797
        %1026 = vmatpush.msra.mxu0 %v794
        %1027 = vmatpush.msra.mxu0 %v791
        %1028 = vmatmul.f32.gmra.mxu0 %v958
        %v1029 = vpop.f32.mrf.mxu0
        %v1030 = vadd.f32 0.0, %v1029
        %1031 = vdwg.mxu0
        %v1032 = vadd.f32 %v969, %v990
        %v1033 = vxor.u32 %v1032, 2147483648
        %v1034 = vmul.f32 %v1033, 1.442695
        %v1035 = vpow.pop %v1034
        %v1036 = vadd.f32 %v1035, 1.0
        %v1037 = vrcp.pop %v1036
        %v1038 = vmul.f32 %v1036, %v1037
        %v1039 = vsub.f32 1.0, %v1038
        %v1040 = vmul.f32 %v1037, %v1039
        %v1041 = vadd.f32 %v1037, %v1040
        %vm1042 = vweird.f32 %v1036
        %vm1043 = vweird.f32 %v1037
        %vm1044 = vmor %vm1042, %vm1043
        %v1045 = vsel %vm1044, %v1037, %v1041
        %v1046 = vand.u32 2147483647, %v1036
        %vm1047 = vcmp.eq.f32.partialorder %v1046, 8.507059e+37
        %v1048 = vand.u32 %v1036, 2147483648
        %v1049 = vor.u32 1.1754944e-38, %v1048
        %v1050 = vsel %vm1047, %v1049, %v1045
        %v1051 = vmul.f32 1.0, %v1050
        %v1052 = vadd.f32 %v970, %v1010
        %v1053 = vxor.u32 %v1052, 2147483648
        %v1054 = vmul.f32 %v1053, 1.442695
        %v1055 = vpow.pop %v1054
        %v1056 = vadd.f32 %v1055, 1.0
        %v1057 = vrcp.pop %v1056
        %v1058 = vmul.f32 %v1056, %v1057
        %v1059 = vsub.f32 1.0, %v1058
        %v1060 = vmul.f32 %v1057, %v1059
        %v1061 = vadd.f32 %v1057, %v1060
        %vm1062 = vweird.f32 %v1056
        %vm1063 = vweird.f32 %v1057
        %vm1064 = vmor %vm1062, %vm1063
        %v1065 = vsel %vm1064, %v1057, %v1061
        %v1066 = vand.u32 2147483647, %v1056
        %vm1067 = vcmp.eq.f32.partialorder %v1066, 8.507059e+37
        %v1068 = vand.u32 %v1056, 2147483648
        %v1069 = vor.u32 1.1754944e-38, %v1068
        %v1070 = vsel %vm1067, %v1069, %v1065
        %v1071 = vmul.f32 1.0, %v1070
        %v1072 = vadd.f32 %v1030, %v949
        %v1073 = vmul.f32 %v1051, %v1072
        %v1074 = vadd.f32 %v971, %v1073
        %v1075 = vtanh.pop %v1074
        %v1076 = vsub.f32 1.0, %v1071
        %v1077 = vmul.f32 %v1076, %v1075
        %v1078 = vmul.f32 %v1071, %v958
        %v1079 = vadd.f32 %v1077, %v1078
        %s1080 = scalar_lea.vmem %s366, %s963 [#allocation8]
        %1081 = vst [vmem:[%s1080] sm:$0xff] %v1079
        %s1082 = smul.u32 %s26, 3
        %s1083 = sadd.s32 %s1082, 2
        %s1084 = smul.u32 %s1083, 8
        %s1085 = sshra.s32 %s1084, 3
        %s1086 = sand.u32 %s1084, 7
        %s1087 = smul.u32 %s1085, 3
        %s1088 = smul.addr %s1087, 8
        %s1089 = scalar_lea.vmem [#allocation2], %s1088
        %v1090 = vld [vmem:[%s1089] sm:$0xff]
        %v1091 = vld [vmem:[%s1089 + $0x8] sm:$0xff]
        %v1092 = vld [vmem:[%s1089 + $0x10] sm:$0xff]
        %1093 = vmatpush.msra.mxu0 %v834
        %1094 = vmatpush.msra.mxu0 %v831
        %1095 = vmatpush.msra.mxu0 %v828
        %1096 = vmatpush.msra.mxu0 %v825
        %1097 = vmatpush.msra.mxu0 %v822
        %1098 = vmatpush.msra.mxu0 %v819
        %1099 = vmatpush.msra.mxu0 %v816
        %1100 = vmatpush.msra.mxu0 %v813
        %1101 = vmatpush.msra.mxu0 %v810
        %1102 = vmatpush.msra.mxu0 %v807
        %1103 = vmatpush.msra.mxu0 %v804
        %1104 = vmatpush.msra.mxu0 %v801
        %1105 = vmatpush.msra.mxu0 %v798
        %1106 = vmatpush.msra.mxu0 %v795
        %1107 = vmatpush.msra.mxu0 %v792
        %1108 = vmatpush.msra.mxu0 %v789
        %1109 = vmatmul.f32.gmra.mxu0 %v1079
        %v1110 = vpop.f32.mrf.mxu0
        %v1111 = vadd.f32 0.0, %v1110
        %1112 = vdwg.mxu0
        %1113 = vmatpush.msra.mxu0 %v835
        %1114 = vmatpush.msra.mxu0 %v832
        %1115 = vmatpush.msra.mxu0 %v829
        %1116 = vmatpush.msra.mxu0 %v826
        %1117 = vmatpush.msra.mxu0 %v823
        %1118 = vmatpush.msra.mxu0 %v820
        %1119 = vmatpush.msra.mxu0 %v817
        %1120 = vmatpush.msra.mxu0 %v814
        %1121 = vmatpush.msra.mxu0 %v811
        %1122 = vmatpush.msra.mxu0 %v808
        %1123 = vmatpush.msra.mxu0 %v805
        %1124 = vmatpush.msra.mxu0 %v802
        %1125 = vmatpush.msra.mxu0 %v799
        %1126 = vmatpush.msra.mxu0 %v796
        %1127 = vmatpush.msra.mxu0 %v793
        %1128 = vmatpush.msra.mxu0 %v790
        %1129 = vmatmul.f32.gmra.mxu0 %v1079
        %v1130 = vpop.f32.mrf.mxu0
        %v1131 = vadd.f32 0.0, %v1130
        %1132 = vdwg.mxu0
        %1133 = vmatpush.msra.mxu0 %v836
        %1134 = vmatpush.msra.mxu0 %v833
        %1135 = vmatpush.msra.mxu0 %v830
        %1136 = vmatpush.msra.mxu0 %v827
        %1137 = vmatpush.msra.mxu0 %v824
        %1138 = vmatpush.msra.mxu0 %v821
        %1139 = vmatpush.msra.mxu0 %v818
        %1140 = vmatpush.msra.mxu0 %v815
        %1141 = vmatpush.msra.mxu0 %v812
        %1142 = vmatpush.msra.mxu0 %v809
        %1143 = vmatpush.msra.mxu0 %v806
        %1144 = vmatpush.msra.mxu0 %v803
        %1145 = vmatpush.msra.mxu0 %v800
        %1146 = vmatpush.msra.mxu0 %v797
        %1147 = vmatpush.msra.mxu0 %v794
        %1148 = vmatpush.msra.mxu0 %v791
        %1149 = vmatmul.f32.gmra.mxu0 %v1079
        %v1150 = vpop.f32.mrf.mxu0
        %v1151 = vadd.f32 0.0, %v1150
        %1152 = vdwg.mxu0
        %v1153 = vadd.f32 %v1090, %v1111
        %v1154 = vxor.u32 %v1153, 2147483648
        %v1155 = vmul.f32 %v1154, 1.442695
        %v1156 = vpow.pop %v1155
        %v1157 = vadd.f32 %v1156, 1.0
        %v1158 = vrcp.pop %v1157
        %v1159 = vmul.f32 %v1157, %v1158
        %v1160 = vsub.f32 1.0, %v1159
        %v1161 = vmul.f32 %v1158, %v1160
        %v1162 = vadd.f32 %v1158, %v1161
        %vm1163 = vweird.f32 %v1157
        %vm1164 = vweird.f32 %v1158
        %vm1165 = vmor %vm1163, %vm1164
        %v1166 = vsel %vm1165, %v1158, %v1162
        %v1167 = vand.u32 2147483647, %v1157
        %vm1168 = vcmp.eq.f32.partialorder %v1167, 8.507059e+37
        %v1169 = vand.u32 %v1157, 2147483648
        %v1170 = vor.u32 1.1754944e-38, %v1169
        %v1171 = vsel %vm1168, %v1170, %v1166
        %v1172 = vmul.f32 1.0, %v1171
        %v1173 = vadd.f32 %v1091, %v1131
        %v1174 = vxor.u32 %v1173, 2147483648
        %v1175 = vmul.f32 %v1174, 1.442695
        %v1176 = vpow.pop %v1175
        %v1177 = vadd.f32 %v1176, 1.0
        %v1178 = vrcp.pop %v1177
        %v1179 = vmul.f32 %v1177, %v1178
        %v1180 = vsub.f32 1.0, %v1179
        %v1181 = vmul.f32 %v1178, %v1180
        %v1182 = vadd.f32 %v1178, %v1181
        %vm1183 = vweird.f32 %v1177
        %vm1184 = vweird.f32 %v1178
        %vm1185 = vmor %vm1183, %vm1184
        %v1186 = vsel %vm1185, %v1178, %v1182
        %v1187 = vand.u32 2147483647, %v1177
        %vm1188 = vcmp.eq.f32.partialorder %v1187, 8.507059e+37
        %v1189 = vand.u32 %v1177, 2147483648
        %v1190 = vor.u32 1.1754944e-38, %v1189
        %v1191 = vsel %vm1188, %v1190, %v1186
        %v1192 = vmul.f32 1.0, %v1191
        %v1193 = vadd.f32 %v1151, %v949
        %v1194 = vmul.f32 %v1172, %v1193
        %v1195 = vadd.f32 %v1092, %v1194
        %v1196 = vtanh.pop %v1195
        %v1197 = vsub.f32 1.0, %v1192
        %v1198 = vmul.f32 %v1197, %v1196
        %v1199 = vmul.f32 %v1192, %v1079
        %v1200 = vadd.f32 %v1198, %v1199
        %s1201 = scalar_lea.vmem %s366, %s1084 [#allocation8]
        %1202 = vst [vmem:[%s1201] sm:$0xff] %v1200
        %s1203 = sadd.s32 %s26, 3
        %s1204 = smul.u32 %s1203, 8
        %s1205 = sshra.s32 %s1204, 3
        %s1206 = sand.u32 %s1204, 7
        %s1207 = smul.u32 %s1205, 3
        %s1208 = smul.addr %s1207, 8
        %s1209 = scalar_lea.vmem [#allocation2], %s1208
        %v1210 = vld [vmem:[%s1209] sm:$0xff]
        %v1211 = vld [vmem:[%s1209 + $0x8] sm:$0xff]
        %v1212 = vld [vmem:[%s1209 + $0x10] sm:$0xff]
        %1213 = vmatpush.msra.mxu0 %v834
        %1214 = vmatpush.msra.mxu0 %v831
        %1215 = vmatpush.msra.mxu0 %v828
        %1216 = vmatpush.msra.mxu0 %v825
        %1217 = vmatpush.msra.mxu0 %v822
        %1218 = vmatpush.msra.mxu0 %v819
        %1219 = vmatpush.msra.mxu0 %v816
        %1220 = vmatpush.msra.mxu0 %v813
        %1221 = vmatpush.msra.mxu0 %v810
        %1222 = vmatpush.msra.mxu0 %v807
        %1223 = vmatpush.msra.mxu0 %v804
        %1224 = vmatpush.msra.mxu0 %v801
        %1225 = vmatpush.msra.mxu0 %v798
        %1226 = vmatpush.msra.mxu0 %v795
        %1227 = vmatpush.msra.mxu0 %v792
        %1228 = vmatpush.msra.mxu0 %v789
        %1229 = vmatmul.f32.gmra.mxu0 %v1200
        %v1230 = vpop.f32.mrf.mxu0
        %v1231 = vadd.f32 0.0, %v1230
        %1232 = vdwg.mxu0
        %1233 = vmatpush.msra.mxu0 %v835
        %1234 = vmatpush.msra.mxu0 %v832
        %1235 = vmatpush.msra.mxu0 %v829
        %1236 = vmatpush.msra.mxu0 %v826
        %1237 = vmatpush.msra.mxu0 %v823
        %1238 = vmatpush.msra.mxu0 %v820
        %1239 = vmatpush.msra.mxu0 %v817
        %1240 = vmatpush.msra.mxu0 %v814
        %1241 = vmatpush.msra.mxu0 %v811
        %1242 = vmatpush.msra.mxu0 %v808
        %1243 = vmatpush.msra.mxu0 %v805
        %1244 = vmatpush.msra.mxu0 %v802
        %1245 = vmatpush.msra.mxu0 %v799
        %1246 = vmatpush.msra.mxu0 %v796
        %1247 = vmatpush.msra.mxu0 %v793
        %1248 = vmatpush.msra.mxu0 %v790
        %1249 = vmatmul.f32.gmra.mxu0 %v1200
        %v1250 = vpop.f32.mrf.mxu0
        %v1251 = vadd.f32 0.0, %v1250
        %1252 = vdwg.mxu0
        %1253 = vmatpush.msra.mxu0 %v836
        %1254 = vmatpush.msra.mxu0 %v833
        %1255 = vmatpush.msra.mxu0 %v830
        %1256 = vmatpush.msra.mxu0 %v827
        %1257 = vmatpush.msra.mxu0 %v824
        %1258 = vmatpush.msra.mxu0 %v821
        %1259 = vmatpush.msra.mxu0 %v818
        %1260 = vmatpush.msra.mxu0 %v815
        %1261 = vmatpush.msra.mxu0 %v812
        %1262 = vmatpush.msra.mxu0 %v809
        %1263 = vmatpush.msra.mxu0 %v806
        %1264 = vmatpush.msra.mxu0 %v803
        %1265 = vmatpush.msra.mxu0 %v800
        %1266 = vmatpush.msra.mxu0 %v797
        %1267 = vmatpush.msra.mxu0 %v794
        %1268 = vmatpush.msra.mxu0 %v791
        %1269 = vmatmul.f32.gmra.mxu0 %v1200
        %v1270 = vpop.f32.mrf.mxu0
        %v1271 = vadd.f32 0.0, %v1270
        %1272 = vdwg.mxu0
        %v1273 = vadd.f32 %v1210, %v1231
        %v1274 = vxor.u32 %v1273, 2147483648
        %v1275 = vmul.f32 %v1274, 1.442695
        %v1276 = vpow.pop %v1275
        %v1277 = vadd.f32 %v1276, 1.0
        %v1278 = vrcp.pop %v1277
        %v1279 = vmul.f32 %v1277, %v1278
        %v1280 = vsub.f32 1.0, %v1279
        %v1281 = vmul.f32 %v1278, %v1280
        %v1282 = vadd.f32 %v1278, %v1281
        %vm1283 = vweird.f32 %v1277
        %vm1284 = vweird.f32 %v1278
        %vm1285 = vmor %vm1283, %vm1284
        %v1286 = vsel %vm1285, %v1278, %v1282
        %v1287 = vand.u32 2147483647, %v1277
        %vm1288 = vcmp.eq.f32.partialorder %v1287, 8.507059e+37
        %v1289 = vand.u32 %v1277, 2147483648
        %v1290 = vor.u32 1.1754944e-38, %v1289
        %v1291 = vsel %vm1288, %v1290, %v1286
        %v1292 = vmul.f32 1.0, %v1291
        %v1293 = vadd.f32 %v1211, %v1251
        %v1294 = vxor.u32 %v1293, 2147483648
        %v1295 = vmul.f32 %v1294, 1.442695
        %v1296 = vpow.pop %v1295
        %v1297 = vadd.f32 %v1296, 1.0
        %v1298 = vrcp.pop %v1297
        %v1299 = vmul.f32 %v1297, %v1298
        %v1300 = vsub.f32 1.0, %v1299
        %v1301 = vmul.f32 %v1298, %v1300
        %v1302 = vadd.f32 %v1298, %v1301
        %vm1303 = vweird.f32 %v1297
        %vm1304 = vweird.f32 %v1298
        %vm1305 = vmor %vm1303, %vm1304
        %v1306 = vsel %vm1305, %v1298, %v1302
        %v1307 = vand.u32 2147483647, %v1297
        %vm1308 = vcmp.eq.f32.partialorder %v1307, 8.507059e+37
        %v1309 = vand.u32 %v1297, 2147483648
        %v1310 = vor.u32 1.1754944e-38, %v1309
        %v1311 = vsel %vm1308, %v1310, %v1306
        %v1312 = vmul.f32 1.0, %v1311
        %v1313 = vadd.f32 %v1271, %v949
        %v1314 = vmul.f32 %v1292, %v1313
        %v1315 = vadd.f32 %v1212, %v1314
        %v1316 = vtanh.pop %v1315
        %v1317 = vsub.f32 1.0, %v1312
        %v1318 = vmul.f32 %v1317, %v1316
        %v1319 = vmul.f32 %v1312, %v1200
        %v1320 = vadd.f32 %v1318, %v1319
        %s1321 = scalar_lea.vmem %s366, %s1204 [#allocation8]
        %1322 = vst [vmem:[%s1321] sm:$0xff] %v1320
        %s1323 = ssub.s32 4, %s26
        %s1324 = smul.u32 %s1323, 8
        %s1325 = sshra.s32 %s1324, 3
        %s1326 = sand.u32 %s1324, 7
        %s1327 = smul.u32 %s1325, 3
        %s1328 = smul.addr %s1327, 8
        %s1329 = scalar_lea.vmem [#allocation2], %s1328
        %v1330 = vld [vmem:[%s1329] sm:$0xff]
        %v1331 = vld [vmem:[%s1329 + $0x8] sm:$0xff]
        %v1332 = vld [vmem:[%s1329 + $0x10] sm:$0xff]
        %1333 = vmatpush.msra.mxu0 %v834
        %1334 = vmatpush.msra.mxu0 %v831
        %1335 = vmatpush.msra.mxu0 %v828
        %1336 = vmatpush.msra.mxu0 %v825
        %1337 = vmatpush.msra.mxu0 %v822
        %1338 = vmatpush.msra.mxu0 %v819
        %1339 = vmatpush.msra.mxu0 %v816
        %1340 = vmatpush.msra.mxu0 %v813
        %1341 = vmatpush.msra.mxu0 %v810
        %1342 = vmatpush.msra.mxu0 %v807
        %1343 = vmatpush.msra.mxu0 %v804
        %1344 = vmatpush.msra.mxu0 %v801
        %1345 = vmatpush.msra.mxu0 %v798
        %1346 = vmatpush.msra.mxu0 %v795
        %1347 = vmatpush.msra.mxu0 %v792
        %1348 = vmatpush.msra.mxu0 %v789
        %1349 = vmatmul.f32.gmra.mxu0 %v1320
        %v1350 = vpop.f32.mrf.mxu0
        %v1351 = vadd.f32 0.0, %v1350
        %1352 = vdwg.mxu0
        %1353 = vmatpush.msra.mxu0 %v835
        %1354 = vmatpush.msra.mxu0 %v832
        %1355 = vmatpush.msra.mxu0 %v829
        %1356 = vmatpush.msra.mxu0 %v826
        %1357 = vmatpush.msra.mxu0 %v823
        %1358 = vmatpush.msra.mxu0 %v820
        %1359 = vmatpush.msra.mxu0 %v817
        %1360 = vmatpush.msra.mxu0 %v814
        %1361 = vmatpush.msra.mxu0 %v811
        %1362 = vmatpush.msra.mxu0 %v808
        %1363 = vmatpush.msra.mxu0 %v805
        %1364 = vmatpush.msra.mxu0 %v802
        %1365 = vmatpush.msra.mxu0 %v799
        %1366 = vmatpush.msra.mxu0 %v796
        %1367 = vmatpush.msra.mxu0 %v793
        %1368 = vmatpush.msra.mxu0 %v790
        %1369 = vmatmul.f32.gmra.mxu0 %v1320
        %v1370 = vpop.f32.mrf.mxu0
        %v1371 = vadd.f32 0.0, %v1370
        %1372 = vdwg.mxu0
        %1373 = vmatpush.msra.mxu0 %v836
        %1374 = vmatpush.msra.mxu0 %v833
        %1375 = vmatpush.msra.mxu0 %v830
        %1376 = vmatpush.msra.mxu0 %v827
        %1377 = vmatpush.msra.mxu0 %v824
        %1378 = vmatpush.msra.mxu0 %v821
        %1379 = vmatpush.msra.mxu0 %v818
        %1380 = vmatpush.msra.mxu0 %v815
        %1381 = vmatpush.msra.mxu0 %v812
        %1382 = vmatpush.msra.mxu0 %v809
        %1383 = vmatpush.msra.mxu0 %v806
        %1384 = vmatpush.msra.mxu0 %v803
        %1385 = vmatpush.msra.mxu0 %v800
        %1386 = vmatpush.msra.mxu0 %v797
        %1387 = vmatpush.msra.mxu0 %v794
        %1388 = vmatpush.msra.mxu0 %v791
        %1389 = vmatmul.f32.gmra.mxu0 %v1320
        %v1390 = vpop.f32.mrf.mxu0
        %v1391 = vadd.f32 0.0, %v1390
        %1392 = vdwg.mxu0
        %v1393 = vadd.f32 %v1330, %v1351
        %v1394 = vxor.u32 %v1393, 2147483648
        %v1395 = vmul.f32 %v1394, 1.442695
        %v1396 = vpow.pop %v1395
        %v1397 = vadd.f32 %v1396, 1.0
        %v1398 = vrcp.pop %v1397
        %v1399 = vmul.f32 %v1397, %v1398
        %v1400 = vsub.f32 1.0, %v1399
        %v1401 = vmul.f32 %v1398, %v1400
        %v1402 = vadd.f32 %v1398, %v1401
        %vm1403 = vweird.f32 %v1397
        %vm1404 = vweird.f32 %v1398
        %vm1405 = vmor %vm1403, %vm1404
        %v1406 = vsel %vm1405, %v1398, %v1402
        %v1407 = vand.u32 2147483647, %v1397
        %vm1408 = vcmp.eq.f32.partialorder %v1407, 8.507059e+37
        %v1409 = vand.u32 %v1397, 2147483648
        %v1410 = vor.u32 1.1754944e-38, %v1409
        %v1411 = vsel %vm1408, %v1410, %v1406
        %v1412 = vmul.f32 1.0, %v1411
        %v1413 = vadd.f32 %v1331, %v1371
        %v1414 = vxor.u32 %v1413, 2147483648
        %v1415 = vmul.f32 %v1414, 1.442695
        %v1416 = vpow.pop %v1415
        %v1417 = vadd.f32 %v1416, 1.0
        %v1418 = vrcp.pop %v1417
        %v1419 = vmul.f32 %v1417, %v1418
        %v1420 = vsub.f32 1.0, %v1419
        %v1421 = vmul.f32 %v1418, %v1420
        %v1422 = vadd.f32 %v1418, %v1421
        %vm1423 = vweird.f32 %v1417
        %vm1424 = vweird.f32 %v1418
        %vm1425 = vmor %vm1423, %vm1424
        %v1426 = vsel %vm1425, %v1418, %v1422
        %v1427 = vand.u32 2147483647, %v1417
        %vm1428 = vcmp.eq.f32.partialorder %v1427, 8.507059e+37
        %v1429 = vand.u32 %v1417, 2147483648
        %v1430 = vor.u32 1.1754944e-38, %v1429
        %v1431 = vsel %vm1428, %v1430, %v1426
        %v1432 = vmul.f32 1.0, %v1431
        %v1433 = vadd.f32 %v1391, %v949
        %v1434 = vmul.f32 %v1412, %v1433
        %v1435 = vadd.f32 %v1332, %v1434
        %v1436 = vtanh.pop %v1435
        %v1437 = vsub.f32 1.0, %v1432
        %v1438 = vmul.f32 %v1437, %v1436
        %v1439 = vmul.f32 %v1432, %v1320
        %v1440 = vadd.f32 %v1438, %v1439
        %s1441 = scalar_lea.vmem %s366, %s1324 [#allocation8]
        %1442 = vst [vmem:[%s1441] sm:$0xff] %v1440
        %s1443 = smul.u32 %s26, 4294967293
        %s1444 = sadd.s32 %s1443, 5
        %s1445 = smul.u32 %s1444, 8
        %s1446 = sshra.s32 %s1445, 3
        %s1447 = sand.u32 %s1445, 7
        %s1448 = smul.u32 %s1446, 3
        %s1449 = smul.addr %s1448, 8
        %s1450 = scalar_lea.vmem [#allocation2], %s1449
        %v1451 = vld [vmem:[%s1450] sm:$0xff]
        %v1452 = vld [vmem:[%s1450 + $0x8] sm:$0xff]
        %v1453 = vld [vmem:[%s1450 + $0x10] sm:$0xff]
        %1454 = vmatpush.msra.mxu0 %v834
        %1455 = vmatpush.msra.mxu0 %v831
        %1456 = vmatpush.msra.mxu0 %v828
        %1457 = vmatpush.msra.mxu0 %v825
        %1458 = vmatpush.msra.mxu0 %v822
        %1459 = vmatpush.msra.mxu0 %v819
        %1460 = vmatpush.msra.mxu0 %v816
        %1461 = vmatpush.msra.mxu0 %v813
        %1462 = vmatpush.msra.mxu0 %v810
        %1463 = vmatpush.msra.mxu0 %v807
        %1464 = vmatpush.msra.mxu0 %v804
        %1465 = vmatpush.msra.mxu0 %v801
        %1466 = vmatpush.msra.mxu0 %v798
        %1467 = vmatpush.msra.mxu0 %v795
        %1468 = vmatpush.msra.mxu0 %v792
        %1469 = vmatpush.msra.mxu0 %v789
        %1470 = vmatmul.f32.gmra.mxu0 %v1440
        %v1471 = vpop.f32.mrf.mxu0
        %v1472 = vadd.f32 0.0, %v1471
        %1473 = vdwg.mxu0
        %1474 = vmatpush.msra.mxu0 %v835
        %1475 = vmatpush.msra.mxu0 %v832
        %1476 = vmatpush.msra.mxu0 %v829
        %1477 = vmatpush.msra.mxu0 %v826
        %1478 = vmatpush.msra.mxu0 %v823
        %1479 = vmatpush.msra.mxu0 %v820
        %1480 = vmatpush.msra.mxu0 %v817
        %1481 = vmatpush.msra.mxu0 %v814
        %1482 = vmatpush.msra.mxu0 %v811
        %1483 = vmatpush.msra.mxu0 %v808
        %1484 = vmatpush.msra.mxu0 %v805
        %1485 = vmatpush.msra.mxu0 %v802
        %1486 = vmatpush.msra.mxu0 %v799
        %1487 = vmatpush.msra.mxu0 %v796
        %1488 = vmatpush.msra.mxu0 %v793
        %1489 = vmatpush.msra.mxu0 %v790
        %1490 = vmatmul.f32.gmra.mxu0 %v1440
        %v1491 = vpop.f32.mrf.mxu0
        %v1492 = vadd.f32 0.0, %v1491
        %1493 = vdwg.mxu0
        %1494 = vmatpush.msra.mxu0 %v836
        %1495 = vmatpush.msra.mxu0 %v833
        %1496 = vmatpush.msra.mxu0 %v830
        %1497 = vmatpush.msra.mxu0 %v827
        %1498 = vmatpush.msra.mxu0 %v824
        %1499 = vmatpush.msra.mxu0 %v821
        %1500 = vmatpush.msra.mxu0 %v818
        %1501 = vmatpush.msra.mxu0 %v815
        %1502 = vmatpush.msra.mxu0 %v812
        %1503 = vmatpush.msra.mxu0 %v809
        %1504 = vmatpush.msra.mxu0 %v806
        %1505 = vmatpush.msra.mxu0 %v803
        %1506 = vmatpush.msra.mxu0 %v800
        %1507 = vmatpush.msra.mxu0 %v797
        %1508 = vmatpush.msra.mxu0 %v794
        %1509 = vmatpush.msra.mxu0 %v791
        %1510 = vmatmul.f32.gmra.mxu0 %v1440
        %v1511 = vpop.f32.mrf.mxu0
        %v1512 = vadd.f32 0.0, %v1511
        %1513 = vdwg.mxu0
        %v1514 = vadd.f32 %v1451, %v1472
        %v1515 = vxor.u32 %v1514, 2147483648
        %v1516 = vmul.f32 %v1515, 1.442695
        %v1517 = vpow.pop %v1516
        %v1518 = vadd.f32 %v1517, 1.0
        %v1519 = vrcp.pop %v1518
        %v1520 = vmul.f32 %v1518, %v1519
        %v1521 = vsub.f32 1.0, %v1520
        %v1522 = vmul.f32 %v1519, %v1521
        %v1523 = vadd.f32 %v1519, %v1522
        %vm1524 = vweird.f32 %v1518
        %vm1525 = vweird.f32 %v1519
        %vm1526 = vmor %vm1524, %vm1525
        %v1527 = vsel %vm1526, %v1519, %v1523
        %v1528 = vand.u32 2147483647, %v1518
        %vm1529 = vcmp.eq.f32.partialorder %v1528, 8.507059e+37
        %v1530 = vand.u32 %v1518, 2147483648
        %v1531 = vor.u32 1.1754944e-38, %v1530
        %v1532 = vsel %vm1529, %v1531, %v1527
        %v1533 = vmul.f32 1.0, %v1532
        %v1534 = vadd.f32 %v1452, %v1492
        %v1535 = vxor.u32 %v1534, 2147483648
        %v1536 = vmul.f32 %v1535, 1.442695
        %v1537 = vpow.pop %v1536
        %v1538 = vadd.f32 %v1537, 1.0
        %v1539 = vrcp.pop %v1538
        %v1540 = vmul.f32 %v1538, %v1539
        %v1541 = vsub.f32 1.0, %v1540
        %v1542 = vmul.f32 %v1539, %v1541
        %v1543 = vadd.f32 %v1539, %v1542
        %vm1544 = vweird.f32 %v1538
        %vm1545 = vweird.f32 %v1539
        %vm1546 = vmor %vm1544, %vm1545
        %v1547 = vsel %vm1546, %v1539, %v1543
        %v1548 = vand.u32 2147483647, %v1538
        %vm1549 = vcmp.eq.f32.partialorder %v1548, 8.507059e+37
        %v1550 = vand.u32 %v1538, 2147483648
        %v1551 = vor.u32 1.1754944e-38, %v1550
        %v1552 = vsel %vm1549, %v1551, %v1547
        %v1553 = vmul.f32 1.0, %v1552
        %v1554 = vadd.f32 %v1512, %v949
        %v1555 = vmul.f32 %v1533, %v1554
        %v1556 = vadd.f32 %v1453, %v1555
        %v1557 = vtanh.pop %v1556
        %v1558 = vsub.f32 1.0, %v1553
        %v1559 = vmul.f32 %v1558, %v1557
        %v1560 = vmul.f32 %v1553, %v1440
        %v1561 = vadd.f32 %v1559, %v1560
        %s1562 = scalar_lea.vmem %s366, %s1445 [#allocation8]
        %1563 = vst [vmem:[%s1562] sm:$0xff] %v1561
        %s1564 = smul.u32 %s26, 4294967291
        %s1565 = sadd.s32 %s1564, 6
        %s1566 = smul.u32 %s1565, 8
        %s1567 = sshra.s32 %s1566, 3
        %s1568 = sand.u32 %s1566, 7
        %s1569 = smul.u32 %s1567, 3
        %s1570 = smul.addr %s1569, 8
        %s1571 = scalar_lea.vmem [#allocation2], %s1570
        %v1572 = vld [vmem:[%s1571] sm:$0xff]
        %v1573 = vld [vmem:[%s1571 + $0x8] sm:$0xff]
        %v1574 = vld [vmem:[%s1571 + $0x10] sm:$0xff]
        %1575 = vmatpush.msra.mxu0 %v834
        %1576 = vmatpush.msra.mxu0 %v831
        %1577 = vmatpush.msra.mxu0 %v828
        %1578 = vmatpush.msra.mxu0 %v825
        %1579 = vmatpush.msra.mxu0 %v822
        %1580 = vmatpush.msra.mxu0 %v819
        %1581 = vmatpush.msra.mxu0 %v816
        %1582 = vmatpush.msra.mxu0 %v813
        %1583 = vmatpush.msra.mxu0 %v810
        %1584 = vmatpush.msra.mxu0 %v807
        %1585 = vmatpush.msra.mxu0 %v804
        %1586 = vmatpush.msra.mxu0 %v801
        %1587 = vmatpush.msra.mxu0 %v798
        %1588 = vmatpush.msra.mxu0 %v795
        %1589 = vmatpush.msra.mxu0 %v792
        %1590 = vmatpush.msra.mxu0 %v789
        %1591 = vmatmul.f32.gmra.mxu0 %v1561
        %v1592 = vpop.f32.mrf.mxu0
        %v1593 = vadd.f32 0.0, %v1592
        %1594 = vdwg.mxu0
        %1595 = vmatpush.msra.mxu0 %v835
        %1596 = vmatpush.msra.mxu0 %v832
        %1597 = vmatpush.msra.mxu0 %v829
        %1598 = vmatpush.msra.mxu0 %v826
        %1599 = vmatpush.msra.mxu0 %v823
        %1600 = vmatpush.msra.mxu0 %v820
        %1601 = vmatpush.msra.mxu0 %v817
        %1602 = vmatpush.msra.mxu0 %v814
        %1603 = vmatpush.msra.mxu0 %v811
        %1604 = vmatpush.msra.mxu0 %v808
        %1605 = vmatpush.msra.mxu0 %v805
        %1606 = vmatpush.msra.mxu0 %v802
        %1607 = vmatpush.msra.mxu0 %v799
        %1608 = vmatpush.msra.mxu0 %v796
        %1609 = vmatpush.msra.mxu0 %v793
        %1610 = vmatpush.msra.mxu0 %v790
        %1611 = vmatmul.f32.gmra.mxu0 %v1561
        %v1612 = vpop.f32.mrf.mxu0
        %v1613 = vadd.f32 0.0, %v1612
        %1614 = vdwg.mxu0
        %1615 = vmatpush.msra.mxu0 %v836
        %1616 = vmatpush.msra.mxu0 %v833
        %1617 = vmatpush.msra.mxu0 %v830
        %1618 = vmatpush.msra.mxu0 %v827
        %1619 = vmatpush.msra.mxu0 %v824
        %1620 = vmatpush.msra.mxu0 %v821
        %1621 = vmatpush.msra.mxu0 %v818
        %1622 = vmatpush.msra.mxu0 %v815
        %1623 = vmatpush.msra.mxu0 %v812
        %1624 = vmatpush.msra.mxu0 %v809
        %1625 = vmatpush.msra.mxu0 %v806
        %1626 = vmatpush.msra.mxu0 %v803
        %1627 = vmatpush.msra.mxu0 %v800
        %1628 = vmatpush.msra.mxu0 %v797
        %1629 = vmatpush.msra.mxu0 %v794
        %1630 = vmatpush.msra.mxu0 %v791
        %1631 = vmatmul.f32.gmra.mxu0 %v1561
        %v1632 = vpop.f32.mrf.mxu0
        %v1633 = vadd.f32 0.0, %v1632
        %1634 = vdwg.mxu0
        %v1635 = vadd.f32 %v1572, %v1593
        %v1636 = vxor.u32 %v1635, 2147483648
        %v1637 = vmul.f32 %v1636, 1.442695
        %v1638 = vpow.pop %v1637
        %v1639 = vadd.f32 %v1638, 1.0
        %v1640 = vrcp.pop %v1639
        %v1641 = vmul.f32 %v1639, %v1640
        %v1642 = vsub.f32 1.0, %v1641
        %v1643 = vmul.f32 %v1640, %v1642
        %v1644 = vadd.f32 %v1640, %v1643
        %vm1645 = vweird.f32 %v1639
        %vm1646 = vweird.f32 %v1640
        %vm1647 = vmor %vm1645, %vm1646
        %v1648 = vsel %vm1647, %v1640, %v1644
        %v1649 = vand.u32 2147483647, %v1639
        %vm1650 = vcmp.eq.f32.partialorder %v1649, 8.507059e+37
        %v1651 = vand.u32 %v1639, 2147483648
        %v1652 = vor.u32 1.1754944e-38, %v1651
        %v1653 = vsel %vm1650, %v1652, %v1648
        %v1654 = vmul.f32 1.0, %v1653
        %v1655 = vadd.f32 %v1573, %v1613
        %v1656 = vxor.u32 %v1655, 2147483648
        %v1657 = vmul.f32 %v1656, 1.442695
        %v1658 = vpow.pop %v1657
        %v1659 = vadd.f32 %v1658, 1.0
        %v1660 = vrcp.pop %v1659
        %v1661 = vmul.f32 %v1659, %v1660
        %v1662 = vsub.f32 1.0, %v1661
        %v1663 = vmul.f32 %v1660, %v1662
        %v1664 = vadd.f32 %v1660, %v1663
        %vm1665 = vweird.f32 %v1659
        %vm1666 = vweird.f32 %v1660
        %vm1667 = vmor %vm1665, %vm1666
        %v1668 = vsel %vm1667, %v1660, %v1664
        %v1669 = vand.u32 2147483647, %v1659
        %vm1670 = vcmp.eq.f32.partialorder %v1669, 8.507059e+37
        %v1671 = vand.u32 %v1659, 2147483648
        %v1672 = vor.u32 1.1754944e-38, %v1671
        %v1673 = vsel %vm1670, %v1672, %v1668
        %v1674 = vmul.f32 1.0, %v1673
        %v1675 = vadd.f32 %v1633, %v949
        %v1676 = vmul.f32 %v1654, %v1675
        %v1677 = vadd.f32 %v1574, %v1676
        %v1678 = vtanh.pop %v1677
        %v1679 = vsub.f32 1.0, %v1674
        %v1680 = vmul.f32 %v1679, %v1678
        %v1681 = vmul.f32 %v1674, %v1561
        %v1682 = vadd.f32 %v1680, %v1681
        %s1683 = scalar_lea.vmem %s366, %s1566 [#allocation8]
        %1684 = vst [vmem:[%s1683] sm:$0xff] %v1682
        %s1685 = smul.u32 %s26, 4294967289
        %s1686 = sadd.s32 %s1685, 7
        %s1687 = smul.u32 %s1686, 8
        %s1688 = sshra.s32 %s1687, 3
        %s1689 = sand.u32 %s1687, 7
        %s1690 = smul.u32 %s1688, 3
        %s1691 = smul.addr %s1690, 8
        %s1692 = scalar_lea.vmem [#allocation2], %s1691
        %v1693 = vld [vmem:[%s1692] sm:$0xff]
        %v1694 = vld [vmem:[%s1692 + $0x8] sm:$0xff]
        %v1695 = vld [vmem:[%s1692 + $0x10] sm:$0xff]
        %1696 = vmatpush.msra.mxu0 %v834
        %1697 = vmatpush.msra.mxu0 %v831
        %1698 = vmatpush.msra.mxu0 %v828
        %1699 = vmatpush.msra.mxu0 %v825
        %1700 = vmatpush.msra.mxu0 %v822
        %1701 = vmatpush.msra.mxu0 %v819
        %1702 = vmatpush.msra.mxu0 %v816
        %1703 = vmatpush.msra.mxu0 %v813
        %1704 = vmatpush.msra.mxu0 %v810
        %1705 = vmatpush.msra.mxu0 %v807
        %1706 = vmatpush.msra.mxu0 %v804
        %1707 = vmatpush.msra.mxu0 %v801
        %1708 = vmatpush.msra.mxu0 %v798
        %1709 = vmatpush.msra.mxu0 %v795
        %1710 = vmatpush.msra.mxu0 %v792
        %1711 = vmatpush.msra.mxu0 %v789
        %1712 = vmatmul.f32.gmra.mxu0 %v1682
        %v1713 = vpop.f32.mrf.mxu0
        %v1714 = vadd.f32 0.0, %v1713
        %1715 = vdwg.mxu0
        %1716 = vmatpush.msra.mxu0 %v835
        %1717 = vmatpush.msra.mxu0 %v832
        %1718 = vmatpush.msra.mxu0 %v829
        %1719 = vmatpush.msra.mxu0 %v826
        %1720 = vmatpush.msra.mxu0 %v823
        %1721 = vmatpush.msra.mxu0 %v820
        %1722 = vmatpush.msra.mxu0 %v817
        %1723 = vmatpush.msra.mxu0 %v814
        %1724 = vmatpush.msra.mxu0 %v811
        %1725 = vmatpush.msra.mxu0 %v808
        %1726 = vmatpush.msra.mxu0 %v805
        %1727 = vmatpush.msra.mxu0 %v802
        %1728 = vmatpush.msra.mxu0 %v799
        %1729 = vmatpush.msra.mxu0 %v796
        %1730 = vmatpush.msra.mxu0 %v793
        %1731 = vmatpush.msra.mxu0 %v790
        %1732 = vmatmul.f32.gmra.mxu0 %v1682
        %v1733 = vpop.f32.mrf.mxu0
        %v1734 = vadd.f32 0.0, %v1733
        %1735 = vdwg.mxu0
        %1736 = vmatpush.msra.mxu0 %v836
        %1737 = vmatpush.msra.mxu0 %v833
        %1738 = vmatpush.msra.mxu0 %v830
        %1739 = vmatpush.msra.mxu0 %v827
        %1740 = vmatpush.msra.mxu0 %v824
        %1741 = vmatpush.msra.mxu0 %v821
        %1742 = vmatpush.msra.mxu0 %v818
        %1743 = vmatpush.msra.mxu0 %v815
        %1744 = vmatpush.msra.mxu0 %v812
        %1745 = vmatpush.msra.mxu0 %v809
        %1746 = vmatpush.msra.mxu0 %v806
        %1747 = vmatpush.msra.mxu0 %v803
        %1748 = vmatpush.msra.mxu0 %v800
        %1749 = vmatpush.msra.mxu0 %v797
        %1750 = vmatpush.msra.mxu0 %v794
        %1751 = vmatpush.msra.mxu0 %v791
        %1752 = vmatmul.f32.gmra.mxu0 %v1682
        %v1753 = vpop.f32.mrf.mxu0
        %v1754 = vadd.f32 0.0, %v1753
        %1755 = vdwg.mxu0
        %v1756 = vadd.f32 %v1693, %v1714
        %v1757 = vxor.u32 %v1756, 2147483648
        %v1758 = vmul.f32 %v1757, 1.442695
        %v1759 = vpow.pop %v1758
        %v1760 = vadd.f32 %v1759, 1.0
        %v1761 = vrcp.pop %v1760
        %v1762 = vmul.f32 %v1760, %v1761
        %v1763 = vsub.f32 1.0, %v1762
        %v1764 = vmul.f32 %v1761, %v1763
        %v1765 = vadd.f32 %v1761, %v1764
        %vm1766 = vweird.f32 %v1760
        %vm1767 = vweird.f32 %v1761
        %vm1768 = vmor %vm1766, %vm1767
        %v1769 = vsel %vm1768, %v1761, %v1765
        %v1770 = vand.u32 2147483647, %v1760
        %vm1771 = vcmp.eq.f32.partialorder %v1770, 8.507059e+37
        %v1772 = vand.u32 %v1760, 2147483648
        %v1773 = vor.u32 1.1754944e-38, %v1772
        %v1774 = vsel %vm1771, %v1773, %v1769
        %v1775 = vmul.f32 1.0, %v1774
        %v1776 = vadd.f32 %v1694, %v1734
        %v1777 = vxor.u32 %v1776, 2147483648
        %v1778 = vmul.f32 %v1777, 1.442695
        %v1779 = vpow.pop %v1778
        %v1780 = vadd.f32 %v1779, 1.0
        %v1781 = vrcp.pop %v1780
        %v1782 = vmul.f32 %v1780, %v1781
        %v1783 = vsub.f32 1.0, %v1782
        %v1784 = vmul.f32 %v1781, %v1783
        %v1785 = vadd.f32 %v1781, %v1784
        %vm1786 = vweird.f32 %v1780
        %vm1787 = vweird.f32 %v1781
        %vm1788 = vmor %vm1786, %vm1787
        %v1789 = vsel %vm1788, %v1781, %v1785
        %v1790 = vand.u32 2147483647, %v1780
        %vm1791 = vcmp.eq.f32.partialorder %v1790, 8.507059e+37
        %v1792 = vand.u32 %v1780, 2147483648
        %v1793 = vor.u32 1.1754944e-38, %v1792
        %v1794 = vsel %vm1791, %v1793, %v1789
        %v1795 = vmul.f32 1.0, %v1794
        %v1796 = vadd.f32 %v1754, %v949
        %v1797 = vmul.f32 %v1775, %v1796
        %v1798 = vadd.f32 %v1695, %v1797
        %v1799 = vtanh.pop %v1798
        %v1800 = vsub.f32 1.0, %v1795
        %v1801 = vmul.f32 %v1800, %v1799
        %v1802 = vmul.f32 %v1795, %v1682
        %v1803 = vadd.f32 %v1801, %v1802
        %s1804 = scalar_lea.vmem %s366, %s1687 [#allocation8]
        %1805 = vst [vmem:[%s1804] sm:$0xff] %v1803
        %1806 = vst [vmem:[#allocation3] sm:$0xff] %v1803
        %s1807 = sand.u32 %s190, 1
        %s1808 = sand.u32 %s190, 1
        %s1809 = smul.addr %s1808, 64
        %s1810 = scalar_lea.vmem [#allocation8], %s1809
        // Predicated region
        $region53: #{a_call__.3} parent=39 // pred_check
          %p1811 = pneg %p200
        $region54: #{a_call__.3} parent=39 // pred_check_branch
          %1813 = sbr.rel (%p1811) target = $region56
        $region55: #{a_call__.3} parent=39 // pred_region
          %s1814 = smul.u32 %s27, 2
          %s1815 = ssub.s32 0, %s1814
          %s1816 = smul.u32 %s26, %s1815
          %s1817 = sadd.s32 %s27, %s1816
          %s1818 = smul.u32 8, %s1817
          %s1819 = smul.addr %s1818, 2
          %s1820 = sadd.s32 %s26, %s1819
          %s1821 = smul.addr %s1820, 8
          %s1822 = scalar_lea.vmem %s5, %s1821
          // Predicated region
          $region57: #{a_call__.3} parent=55 // pred_check
            _
          $region58: #{a_call__.3} parent=55 // pred_check_branch
            %1824 = sbr.rel (0) target = $region60
          $region59: #{a_call__.3} parent=55 // pred_region
            // Predicated region
            $region61: #{a_call__.3} parent=59 // pred_check
              _
            $region62: #{a_call__.3} parent=59 // pred_check_branch
              %1826 = sbr.rel (0) target = $region64
            $region63: #{a_call__.3} parent=59 // pred_region
              // Predicated region
              $region76: #{a_call__.3} parent=63 // pred_check
                _
              $region77: #{a_call__.3} parent=63 // pred_check_branch
                %1856 = sbr.rel (0) target = $region79
              $region78: #{a_call__.3} parent=63 // pred_region
                loop: start=0, step=1, limit=1
                $region80: #{a_call__.3} parent=78 // loop_pre_header
                  _
                $region81: #{a_call__.3} parent=78 // loop_header
                  %s1858 = sphi 0, %s1862
                  %p1859 = scmp.ge.s32.totalorder %s1858, 1
                  %s1863 = sphi %s1810, %s1810
                  %s1864 = sphi %s1822, %s1822
                $region82: #{a_call__.3} parent=78 // loop_header_branch
                  %1861 = sbr.rel (%p1859) target = $region86
                $region83: #{a_call__.3} parent=78 // loop_body
                  %v1865 = vld [vmem:[%s1863] sm:$0xff]
                  %1866 = vst [vmem:[%s1864] sm:$0xff] %v1865
                  %v1867 = vld [vmem:[%s1863 + $0x8] sm:$0xff]
                  %1868 = vst [vmem:[%s1864 + $0x10] sm:$0xff] %v1867
                  %v1869 = vld [vmem:[%s1863 + $0x10] sm:$0xff]
                  %1870 = vst [vmem:[%s1864 + $0x20] sm:$0xff] %v1869
                  %v1871 = vld [vmem:[%s1863 + $0x18] sm:$0xff]
                  %1872 = vst [vmem:[%s1864 + $0x30] sm:$0xff] %v1871
                  %v1873 = vld [vmem:[%s1863 + $0x20] sm:$0xff]
                  %1874 = vst [vmem:[%s1864 + $0x40] sm:$0xff] %v1873
                  %v1875 = vld [vmem:[%s1863 + $0x28] sm:$0xff]
                  %1876 = vst [vmem:[%s1864 + $0x50] sm:$0xff] %v1875
                  %v1877 = vld [vmem:[%s1863 + $0x30] sm:$0xff]
                  %1878 = vst [vmem:[%s1864 + $0x60] sm:$0xff] %v1877
                  %v1879 = vld [vmem:[%s1863 + $0x38] sm:$0xff]
                  %1880 = vst [vmem:[%s1864 + $0x70] sm:$0xff] %v1879
                $region84: #{a_call__.3} parent=78 // loop_footer
                  %s1862 = sadd.s32 1, %s1858
                $region85: #{a_call__.3} parent=78 // loop_footer_branch
                  %1857 = sbr.rel target = $region81
                $region86: #{a_call__.3} parent=78 // loop_exit
                  _
              $region79: #{a_call__.3} parent=63 // pred_fallthru
                _
              // Predicated region
              $region87: #{a_call__.3} parent=63 // pred_check
                _
              $region88: #{a_call__.3} parent=63 // pred_check_branch
                %1882 = sbr.rel target = $region90
              $region89: #{a_call__.3} parent=63 // pred_region
                _
              $region90: #{a_call__.3} parent=63 // pred_fallthru
                _
            $region64: #{a_call__.3} parent=59 // pred_fallthru
              _
            // Predicated region
            $region65: #{a_call__.3} parent=59 // pred_check
              _
            $region66: #{a_call__.3} parent=59 // pred_check_branch
              %1828 = sbr.rel target = $region68
            $region67: #{a_call__.3} parent=59 // pred_region
              %s1830 = ssub.s32 256, 1
              loop: start=0, step=1, limit=1
              $region69: #{a_call__.3} parent=67 // loop_pre_header
                _
              $region70: #{a_call__.3} parent=67 // loop_header
                %s1832 = sphi 0, %s1836
                %p1833 = scmp.ge.s32.totalorder %s1832, 1
                %s1837 = sphi %s1810, %s1810
                %s1838 = sphi %s1822, %s1822
              $region71: #{a_call__.3} parent=67 // loop_header_branch
                %1835 = sbr.rel (%p1833) target = $region75
              $region72: #{a_call__.3} parent=67 // loop_body
                %v1839 = vld [vmem:[%s1837] sm:%s1830]
                %1840 = vst [vmem:[%s1838] sm:%s1830] %v1839
                %v1841 = vld [vmem:[%s1837 + $0x8] sm:%s1830]
                %1842 = vst [vmem:[%s1838 + $0x10] sm:%s1830] %v1841
                %v1843 = vld [vmem:[%s1837 + $0x10] sm:%s1830]
                %1844 = vst [vmem:[%s1838 + $0x20] sm:%s1830] %v1843
                %v1845 = vld [vmem:[%s1837 + $0x18] sm:%s1830]
                %1846 = vst [vmem:[%s1838 + $0x30] sm:%s1830] %v1845
                %v1847 = vld [vmem:[%s1837 + $0x20] sm:%s1830]
                %1848 = vst [vmem:[%s1838 + $0x40] sm:%s1830] %v1847
                %v1849 = vld [vmem:[%s1837 + $0x28] sm:%s1830]
                %1850 = vst [vmem:[%s1838 + $0x50] sm:%s1830] %v1849
                %v1851 = vld [vmem:[%s1837 + $0x30] sm:%s1830]
                %1852 = vst [vmem:[%s1838 + $0x60] sm:%s1830] %v1851
                %v1853 = vld [vmem:[%s1837 + $0x38] sm:%s1830]
                %1854 = vst [vmem:[%s1838 + $0x70] sm:%s1830] %v1853
              $region73: #{a_call__.3} parent=67 // loop_footer
                %s1836 = sadd.s32 1, %s1832
              $region74: #{a_call__.3} parent=67 // loop_footer_branch
                %1831 = sbr.rel target = $region70
              $region75: #{a_call__.3} parent=67 // loop_exit
                _
            $region68: #{a_call__.3} parent=59 // pred_fallthru
              _
          $region60: #{a_call__.3} parent=55 // pred_fallthru
            _
          %1883 = vnop
        $region56: #{a_call__.3} parent=39 // pred_fallthru
          _
      $region40: #{a_call__.3} parent=5 // pred_fallthru
        _
      %p1884 = scmp.le.s32.totalorder 2, %s17
      // Predicated region
      $region91: #{a_call__.3} parent=5 // pred_check
        %p1885 = pneg %p1884
      $region92: #{a_call__.3} parent=5 // pred_check_branch
        %1887 = sbr.rel (%p1885) target = $region94
      $region93: #{a_call__.3} parent=5 // pred_region
        %s1888 = ssub.s32 %s17, 2
        // Predicated region
        $region95: #{a_call__.3} parent=93 // pred_check
          %p1889 = pneg %p206
        $region96: #{a_call__.3} parent=93 // pred_check_branch
          %1891 = sbr.rel (%p1889) target = $region98
        $region97: #{a_call__.3} parent=93 // pred_region
          %s1892 = sand.u32 %s191, 1
          %s1893 = sand.u32 %s191, 1
          %s1894 = smul.addr %s1893, 64
          %s1895 = scalar_lea.vmem [#allocation8], %s1894
        $region98: #{a_call__.3} parent=93 // pred_fallthru
          _
      $region94: #{a_call__.3} parent=5 // pred_fallthru
        _
    $region6: #{a_call__.3} parent=1 // loop_footer
      %s21 = sadd.s32 1, %s17
    $region7: #{a_call__.3} parent=1 // loop_footer_branch
      %16 = sbr.rel target = $region3
    $region8: #{a_call__.3} parent=1 // loop_exit
      _
    %1896 = vsyncpa [#allocation5], 1
    %s1897 = scalar_lea.sflag [#allocation5], 1
    %1898 = vsyncpa %s1897, 1
    %1899 = vsyncpa [#allocation7], 1
    %s1900 = scalar_lea.sflag [#allocation7], 1
    %1901 = vsyncpa %s1900, 1

</llo_original>
